<compile_context>
chip_gen: v7x
topology: tpu7x:2x2x1
jax: 0.10.0
libtpu: 0.0.40
codegen_flags: <defaults>
</compile_context>

<pallas_src>
import functools
import math

import numpy as np
import jax
import jax.numpy as jnp
from jax import lax
from jax.experimental import pallas as pl
from jax.experimental.pallas import tpu as pltpu

F32 = jnp.float32
BF16 = jnp.bfloat16


def _gelu(x):
    # exact (erf) GELU -- matches torch.nn.GELU() default
    return 0.5 * x * (1.0 + lax.erf(x * 0.7071067811865476))


def _ln(x, g, b, eps=1e-5):
    mu = jnp.mean(x, axis=-1, keepdims=True)
    var = jnp.mean(jnp.square(x - mu), axis=-1, keepdims=True)
    return (x - mu) * lax.rsqrt(var + eps) * g + b


# ======================================================================== tokenizer

def _tokenizer_kernel(cols_ref, w_ref, bns_ref, bnb_ref, pool_ref, o_ref):
    # one im2col contraction for the whole folded front end (spatial conv, FIR bands,
    # 1x1 fusion and the (1,25) st-conv are all baked into w_ref), then BN(eval)+GELU
    # and avg-pool-4 as a single matmul with a precomputed pooling matrix.
    y = jnp.dot(cols_ref[...], w_ref[...], preferred_element_type=jnp.float32)
    y = _gelu(y * bns_ref[...] + bnb_ref[...])
    o_ref[...] = jnp.dot(pool_ref[...], y,
                         preferred_element_type=jnp.float32).astype(o_ref.dtype)


def tokenizer_call(cols, prep, *, B, T):
    MT, Kc = cols.shape                       # MT = B*T (batch folded into rows)
    D = prep["tok_w"].shape[1]
    N = T // 4                                # TODO(synk): assumes T % 4 == 0
    MN = B * N
    # avg-pool-by-4 matrix (batch-boundary safe because T % 4 == 0); trace-time constant
    pool_np = np.where(np.arange(MT)[None, :] // 4 == np.arange(MN)[:, None],
                       0.25, 0.0).astype(np.float32)
    return pl.pallas_call(
        _tokenizer_kernel,
        grid=(1,),
        in_specs=[
            pl.BlockSpec((MT, Kc), lambda i: (0, 0)),
            pl.BlockSpec((Kc, D), lambda i: (0, 0)),
            pl.BlockSpec((1, D), lambda i: (0, 0)),
            pl.BlockSpec((1, D), lambda i: (0, 0)),
            pl.BlockSpec((MN, MT), lambda i: (0, 0)),
        ],
        out_specs=pl.BlockSpec((MN, D), lambda i: (0, 0)),
        out_shape=jax.ShapeDtypeStruct((MN, D), BF16),
        compiler_params=pltpu.CompilerParams(dimension_semantics=("arbitrary",)),
    )(cols, prep["tok_w"], prep["bn_scale"], prep["bn_shift"], jnp.asarray(pool_np))


# ======================================================================== block stack

def _block_stack_kernel(x_ref, sdn_ref, sup_ref, msk_ref,
                        ln1g, ln1b, qkvw, qkvb, rfbd,
                        projw, projb, dww, dwb, ln2g, ln2b,
                        mlpw, mlpb, fc2w, fc2b,
                        o_ref, acc_ref, *, batch):
    # acc_ref (f32 VMEM scratch) carries the residual stream across the depth axis.
    @pl.when(pl.program_id(0) == 0)
    def _():
        acc_ref[...] = x_ref[...].astype(jnp.float32)

    x = acc_ref[...]                          # (M, D) f32, M = B*N
    M, D = x.shape
    N = M // batch
    HF = msk_ref.shape[0]

    # ---- LN1 -> fused QKV -> Performer-style linear attention ------------------
    xn = _ln(x, ln1g[0], ln1b[0]).astype(BF16)
    qkv = jnp.dot(xn, qkvw[0], preferred_element_type=jnp.float32) + qkvb[0]
    q, k, v = qkv[:, :D], qkv[:, D:2 * D], qkv[:, 2 * D:]
    rf = rfbd[0]                              # (D, HF) block-diagonal random features
    qp = jnp.maximum(jnp.dot(q.astype(BF16), rf,
                             preferred_element_type=jnp.float32), 0.0)   # (M, HF)
    kp = jnp.maximum(jnp.dot(k.astype(BF16), rf,
                             preferred_element_type=jnp.float32), 0.0)
    msk = msk_ref[...]                        # (HF, D) same-head indicator
    # per-sample reductions: fold (M, .) -> (B, N, .)
    qp3 = qp.reshape(batch, N, HF)
    kp3 = kp.reshape(batch, N, HF)
    v3 = v.reshape(batch, N, D)
    kv = jnp.einsum("bnf,bnd->bfd", kp3, v3,
                    preferred_element_type=jnp.float32) * msk[None]      # (B, HF, D)
    num = jnp.einsum("bnf,bfd->bnd", qp3, kv,
                     preferred_element_type=jnp.float32).reshape(M, D)
    ksum = jnp.sum(kp3, axis=1, keepdims=True)                           # (B, 1, HF)
    z = jnp.dot((qp3 * ksum).reshape(M, HF), msk,
                preferred_element_type=jnp.float32)                      # (M, D)
    attn = num * pl.reciprocal(z + 1e-6, approx=True)
    x = x + jnp.dot(attn.astype(BF16), projw[0],
                    preferred_element_type=jnp.float32) + projb[0]

    # ---- depthwise 3-tap conv (per-sample zero padding via shift matrices) ------
    w = dww[0]                                # (3, D)
    xm1 = jnp.dot(sdn_ref[...], x, preferred_element_type=jnp.float32)   # x[n-1]
    xp1 = jnp.dot(sup_ref[...], x, preferred_element_type=jnp.float32)   # x[n+1]
    xc = xm1 * w[0:1] + x * w[1:2] + xp1 * w[2:3] + dwb[0]

    # ---- LN2 -> gated adaptive MLP (fc1 ‖ gate fused) ---------------------------
    xn2 = _ln(x + xc, ln2g[0], ln2b[0]).astype(BF16)
    hg = jnp.dot(xn2, mlpw[0], preferred_element_type=jnp.float32) + mlpb[0]
    hidden = hg.shape[-1] // 2
    y = _gelu(hg[:, :hidden]) * jax.nn.sigmoid(hg[:, hidden:])
    y = jnp.dot(y.astype(BF16), fc2w[0],
                preferred_element_type=jnp.float32) + fc2b[0]

    xf = x + y                                # reference: x = x + mlp(norm2(x + xc))
    acc_ref[...] = xf
    o_ref[...] = xf.astype(o_ref.dtype)


def block_stack_call(x, prep, *, B):
    M, D = x.shape
    N = M // B
    depth = prep["ln1_g"].shape[0]
    HF = prep["rf_bd"].shape[-1]
    hidden2 = prep["mlp_w"].shape[-1]
    hidden = hidden2 // 2

    # shift matrices for the depthwise conv, zero at per-sample sequence boundaries
    i = np.arange(M)
    sdn = ((i[:, None] - 1 == i[None, :]) & (i[:, None] % N != 0)).astype(np.float32)
    sup = ((i[:, None] + 1 == i[None, :]) & (i[:, None] % N != N - 1)).astype(np.float32)

    def cspec(*shape):
        return pl.BlockSpec(shape, lambda d, _n=len(shape): (0,) * _n)

    def wspec(*tail):
        return pl.BlockSpec((1,) + tail, lambda d, _n=len(tail): (d,) + (0,) * _n)

    in_specs = [
        cspec(M, D),                              # x (read only at d == 0)
        cspec(M, M), cspec(M, M),                 # shift matrices
        cspec(HF, D),                             # same-head mask
        wspec(1, D), wspec(1, D),                 # ln1
        wspec(D, 3 * D), wspec(1, 3 * D),         # qkv
        wspec(D, HF),                             # random features (block diagonal)
        wspec(D, D), wspec(1, D),                 # proj
        wspec(3, D), wspec(1, D),                 # depthwise conv
        wspec(1, D), wspec(1, D),                 # ln2
        wspec(D, hidden2), wspec(1, hidden2),     # fc1 ‖ gate
        wspec(hidden, D), wspec(1, D),            # fc2
    ]

    return pl.pallas_call(
        functools.partial(_block_stack_kernel, batch=B),
        grid=(depth,),
        in_specs=in_specs,
        out_specs=cspec(M, D),
        out_shape=jax.ShapeDtypeStruct((M, D), BF16),
        scratch_shapes=[pltpu.VMEM((M, D), jnp.float32)],
        compiler_params=pltpu.CompilerParams(dimension_semantics=("arbitrary",)),
    )(x, jnp.asarray(sdn), jnp.asarray(sup), prep["attn_mask"],
      prep["ln1_g"], prep["ln1_b"], prep["qkv_w"], prep["qkv_b"], prep["rf_bd"],
      prep["proj_w"], prep["proj_b"], prep["dw_w"], prep["dw_b"],
      prep["ln2_g"], prep["ln2_b"], prep["mlp_w"], prep["mlp_b"],
      prep["fc2_w"], prep["fc2_b"])


# ======================================================================== pooling head

def _head_kernel(h_ref, ng, nb, cls_ref, wqkvc, bqkvc, wkvt, bkvt,
                 hsum_ref, hexp_ref, wo, bo, w1, b1, w2, b2, o_ref, *, batch):
    h = h_ref[...].astype(jnp.float32)        # (M, D), M = B*N
    M, D = h.shape
    N = M // batch
    nh = hsum_ref.shape[1]
    scale = 1.0 / math.sqrt(D // nh)

    hn = _ln(h, ng[...], nb[...]).astype(BF16)            # final LayerNorm (tokens only)
    cls = cls_ref[...]                                    # (1, D) shared cls token

    # fused projections: Q|K|V for the (un-normed) cls token, K|V for tokens
    qkv_c = jnp.dot(cls.astype(BF16), wqkvc[...],
                    preferred_element_type=jnp.float32) + bqkvc[...]
    q, k_cls, v_cls = qkv_c[:, :D], qkv_c[:, D:2 * D], qkv_c[:, 2 * D:]
    kv_t = jnp.dot(hn, wkvt[...], preferred_element_type=jnp.float32) + bkvt[...]
    k_tok, v_tok = kv_t[:, :D], kv_t[:, D:]

    hsum = hsum_ref[...]                                  # (D, nh)  lane -> head reduce
    hexp = hexp_ref[...]                                  # (nh, D)  head -> lane expand
    s_tok = jnp.dot(k_tok * q, hsum, preferred_element_type=jnp.float32) * scale  # (M, nh)
    s_cls = jnp.dot(k_cls * q, hsum, preferred_element_type=jnp.float32) * scale  # (1, nh)

    # per-sample softmax over {cls} ∪ {tokens of that sample}
    s3 = s_tok.reshape(batch, N, nh)
    m = jnp.maximum(jnp.max(s3, axis=1, keepdims=True), s_cls[None])     # (B, 1, nh)
    e_tok = jnp.exp(s3 - m)
    e_cls = jnp.exp(s_cls[None] - m)
    zinv = pl.reciprocal(e_cls + jnp.sum(e_tok, axis=1, keepdims=True), approx=True)
    p_tok = (e_tok * zinv).reshape(M, nh)
    p_cls = (e_cls * zinv).reshape(batch, nh)

    pd = jnp.dot(p_tok, hexp, preferred_element_type=jnp.float32)        # (M, D)
    ctx = jnp.sum((pd * v_tok).reshape(batch, N, D), axis=1)             # (B, D)
    ctx = ctx + jnp.dot(p_cls, hexp, preferred_element_type=jnp.float32) * v_cls

    pooled = jnp.dot(ctx.astype(BF16), wo[...],
                     preferred_element_type=jnp.float32) + bo[...]
    h1 = _gelu(jnp.dot(pooled.astype(BF16), w1[...],
                       preferred_element_type=jnp.float32) + b1[...])
    logits = jnp.dot(h1.astype(BF16), w2[...],
                     preferred_element_type=jnp.float32) + b2[...]
    o_ref[...] = logits.astype(o_ref.dtype)               # single (B, n_classes) store


def head_call(h, prep, *, B):
    M, D = h.shape
    n_classes = prep["head2_w"].shape[-1]
    Dh = prep["head1_w"].shape[-1]
    nh = prep["hsum"].shape[-1]

    def spec(*shape):
        return pl.BlockSpec(shape, lambda i, _n=len(shape): (0,) * _n)

    return pl.pallas_call(
        functools.partial(_head_kernel, batch=B),
        grid=(1,),
        in_specs=[
            spec(M, D),
            spec(1, D), spec(1, D),                   # final LayerNorm
            spec(1, D),                               # cls token
            spec(D, 3 * D), spec(1, 3 * D),           # Q|K|V (cls)
            spec(D, 2 * D), spec(1, 2 * D),           # K|V (tokens)
            spec(D, nh), spec(nh, D),                 # head indicator matrices
            spec(D, D), spec(1, D),                   # MHA out proj
            spec(D, Dh), spec(1, Dh),                 # classifier fc1
            spec(Dh, n_classes), spec(1, n_classes),  # classifier fc2
        ],
        out_specs=spec(B, n_classes),
        out_shape=jax.ShapeDtypeStruct((B, n_classes), F32),
        compiler_params=pltpu.CompilerParams(dimension_semantics=("arbitrary",)),
    )(h, prep["norm_g"], prep["norm_b"], prep["cls"],
      prep["w_qkv_cls"], prep["b_qkv_cls"], prep["w_kv_tok"], prep["b_kv_tok"],
      prep["hsum"], prep["hexp"], prep["mha_out_wT"], prep["mha_out_b"],
      prep["head1_w"], prep["head1_b"], prep["head2_w"], prep["head2_b"])


# ======================================================================== parameters

def bandpass_filter(low, high, ks=51, sr=250.0):
    nyq = sr / 2.0
    ln_, hn_ = low / nyq, high / nyq
    n = np.arange(ks, dtype=np.float64) - (ks - 1) / 2.0
    denom = np.where(n == 0, 1.0, np.pi * n)
    h = (np.sin(np.pi * hn_ * n) - np.sin(np.pi * ln_ * n)) / denom
    h[ks // 2] = hn_ - ln_
    window = 0.54 - 0.46 * np.cos(2 * np.pi * np.arange(ks) / (ks - 1))
    h = h * window
    h = h / h.sum()
    return h.astype(np.float32)


def init_params(key, *, n_channels=22, n_classes=2, dim=64, depth=2,
                num_heads=8, mlp_ratio=4.0):
    hidden = int(dim * mlp_ratio)
    head_dim = dim // num_heads
    nb_features = max(32, dim // 4)
    keys = iter(jax.random.split(key, 256))

    def nrm(shape, std=0.02):
        return jax.random.normal(next(keys), shape, F32) * std

    freq_bands = [(0.5, 4.0), (4.0, 8.0), (8.0, 13.0), (13.0, 30.0), (30.0, 100.0)]
    fir_w = np.stack([bandpass_filter(lo, hi) for lo, hi in freq_bands], axis=1)  # (51, 5)

    tokenizer = dict(
        spatial_w=nrm((n_channels, 16), 0.05),
        fir_w=jnp.asarray(fir_w, F32),
        fusion_w=nrm((5, dim // 2), 0.05),
        st_w=nrm((25, dim // 2 + 16, dim), 0.05),
        # TODO(synk): BatchNorm2d folded with eval-mode running stats (mean 0, var 1).
        bn_scale=jnp.full((dim,), 1.0 / np.sqrt(1.0 + 1e-5), F32),
        bn_shift=jnp.zeros((dim,), F32),
    )

    blocks = []
    for _ in range(depth):
        blocks.append(dict(
            ln1_g=jnp.ones((dim,), F32), ln1_b=jnp.zeros((dim,), F32),
            qkv_w=nrm((dim, 3 * dim)), qkv_b=jnp.zeros((3 * dim,), F32),
            rf=jax.random.normal(next(keys), (num_heads, head_dim, nb_features), F32),
            proj_w=nrm((dim, dim)), proj_b=jnp.zeros((dim,), F32),
            dw_w=nrm((3, dim), 0.1), dw_b=jnp.zeros((dim,), F32),
            ln2_g=jnp.ones((dim,), F32), ln2_b=jnp.zeros((dim,), F32),
            fc1_w=nrm((dim, hidden)), fc1_b=jnp.zeros((hidden,), F32),
            gate_w=nrm((dim, hidden)), gate_b=jnp.zeros((hidden,), F32),
            fc2_w=nrm((hidden, dim)), fc2_b=jnp.zeros((dim,), F32),
        ))

    return dict(
        tokenizer=tokenizer,
        blocks=blocks,
        norm_g=jnp.ones((dim,), F32), norm_b=jnp.zeros((dim,), F32),
        cls_token=jax.random.normal(next(keys), (1, 1, dim), F32),
        mha_in_w=nrm((3 * dim, dim)), mha_in_b=jnp.zeros((3 * dim,), F32),
        mha_out_w=nrm((dim, dim)), mha_out_b=jnp.zeros((dim,), F32),
        head1_w=nrm((dim, dim // 2)), head1_b=jnp.zeros((dim // 2,), F32),
        head2_w=nrm((dim // 2, n_classes)), head2_b=jnp.zeros((n_classes,), F32),
    )


def prepare_params(params, *, num_heads=8, pool_heads=4):
    """One-time (outside jit) weight folding / stacking / casting."""
    tk = params["tokenizer"]
    C = tk["spatial_w"].shape[0]
    D = tk["st_w"].shape[2]

    # ---- tokenizer: fold spatial conv & 1x1 fusion into the (1,25) st-conv weight ---
    st_sp = tk["st_w"][:, :16, :]                                    # (25, 16, D)
    st_fr = tk["st_w"][:, 16:, :]                                    # (25, 32, D)
    st_fr_eff = jnp.einsum("cf,kfd->kcd", tk["fusion_w"], st_fr)     # (25, 5, D)
    w_spat = jnp.einsum("co,kod->kcd", tk["spatial_w"], st_sp)       # (25, C, D)
    tok_w = jnp.concatenate([w_spat, st_fr_eff], axis=1).reshape(25 * (C + 5), D)

    # ---- block stack: depth-stacked weights, block-diagonal random features ---------
    blocks = params["blocks"]
    depth = len(blocks)

    def stk(key, dtype, shape=None):
        a = jnp.stack([b[key] for b in blocks], 0)
        if shape is not None:
            a = a.reshape(shape)
        return a.astype(dtype)

    hd = D // num_heads
    Fdim = blocks[0]["rf"].shape[-1]
    HF = num_heads * Fdim
    rf_bd = np.zeros((depth, D, HF), np.float32)
    for l, b in enumerate(blocks):
        rf = np.asarray(b["rf"], np.float32)
        for h in range(num_heads):
            rf_bd[l, h * hd:(h + 1) * hd, h * Fdim:(h + 1) * Fdim] = rf[h]
    attn_mask = np.kron(np.eye(num_heads, dtype=np.float32),
                        np.ones((Fdim, hd), np.float32))             # (HF, D)

    hidden = blocks[0]["fc1_w"].shape[1]
    mlp_w = jnp.concatenate(
        [jnp.stack([b["fc1_w"] for b in blocks], 0),
         jnp.stack([b["gate_w"] for b in blocks], 0)], axis=-1)      # (depth, D, 2*hid)
    mlp_b = jnp.concatenate(
        [jnp.stack([b["fc1_b"] for b in blocks], 0),
         jnp.stack([b["gate_b"] for b in blocks], 0)], axis=-1).reshape(depth, 1, 2 * hidden)

    # ---- head: fused / transposed MHA-pooling + classifier weights ------------------
    w_in = params["mha_in_w"].astype(F32)                            # (3D, D)
    b_in = params["mha_in_b"].astype(F32)
    WqT, WkT, WvT = w_in[:D].T, w_in[D:2 * D].T, w_in[2 * D:].T
    hd_p = D // pool_heads
    hsum = np.kron(np.eye(pool_heads, dtype=np.float32),
                   np.ones((hd_p, 1), np.float32))                   # (D, nh)
    Dh = params["head1_w"].shape[1]

    return dict(
        tok_w=tok_w.astype(BF16),
        bn_scale=tk["bn_scale"].reshape(1, D).astype(F32),
        bn_shift=tk["bn_shift"].reshape(1, D).astype(F32),
        fir_w=tk["fir_w"].astype(F32),
        ln1_g=stk("ln1_g", F32, (depth, 1, D)), ln1_b=stk("ln1_b", F32, (depth, 1, D)),
        qkv_w=stk("qkv_w", BF16), qkv_b=stk("qkv_b", F32, (depth, 1, 3 * D)),
        rf_bd=jnp.asarray(rf_bd, BF16),
        attn_mask=jnp.asarray(attn_mask, F32),
        proj_w=stk("proj_w", BF16), proj_b=stk("proj_b", F32, (depth, 1, D)),
        dw_w=stk("dw_w", F32), dw_b=stk("dw_b", F32, (depth, 1, D)),
        ln2_g=stk("ln2_g", F32, (depth, 1, D)), ln2_b=stk("ln2_b", F32, (depth, 1, D)),
        mlp_w=mlp_w.astype(BF16), mlp_b=mlp_b.astype(F32),
        fc2_w=stk("fc2_w", BF16), fc2_b=stk("fc2_b", F32, (depth, 1, D)),
        norm_g=params["norm_g"].reshape(1, D).astype(F32),
        norm_b=params["norm_b"].reshape(1, D).astype(F32),
        cls=params["cls_token"].reshape(1, D).astype(F32),
        w_qkv_cls=jnp.concatenate([WqT, WkT, WvT], axis=1).astype(BF16),
        b_qkv_cls=b_in.reshape(1, 3 * D),
        w_kv_tok=jnp.concatenate([WkT, WvT], axis=1).astype(BF16),
        b_kv_tok=b_in[D:].reshape(1, 2 * D),
        hsum=jnp.asarray(hsum), hexp=jnp.asarray(hsum.T),
        mha_out_wT=params["mha_out_w"].T.astype(BF16),
        mha_out_b=params["mha_out_b"].reshape(1, D).astype(F32),
        head1_w=params["head1_w"].astype(BF16),
        head1_b=params["head1_b"].reshape(1, Dh).astype(F32),
        head2_w=params["head2_w"].astype(BF16),
        head2_b=params["head2_b"].reshape(1, -1).astype(F32),
    )


# ======================================================================== forward

def msfaet_forward(x, prep):
    # x: (B, 1, C, T) NCHW EEG input; B/C/T are static shapes under jit.
    B, _, C, T = x.shape
    xs = x[:, 0].astype(F32)                          # (B, C, T)
    xt = jnp.transpose(xs, (0, 2, 1))                 # (B, T, C)
    xmean = jnp.mean(xs, axis=1)                      # (B, T) (electrode pool commutes
                                                      #  with the linear FIR/fusion path)
    # exact 51-tap FIR band features on the zero-padded averaged signal
    xm_pad = jnp.pad(xmean, ((0, 0), (25, 25)))
    win = jnp.stack([xm_pad[:, j:j + T] for j in range(51)], axis=-1)   # (B, T, 51)
    ifeat = jnp.dot(win, prep["fir_w"])               # (B, T, 5)

    # im2col for the (1,25) st-conv over the combined (x, FIR-band) features
    comb = jnp.concatenate([xt, ifeat], axis=-1)      # (B, T, C+5)
    comb = jnp.pad(comb, ((0, 0), (12, 12), (0, 0)))
    cols = jnp.concatenate([comb[:, k:k + T, :] for k in range(25)], axis=-1)
    cols = cols.reshape(B * T, 25 * (C + 5)).astype(BF16)

    tok = tokenizer_call(cols, prep, B=B, T=T)        # (B*N, D) bf16   1 pallas_call
    h = block_stack_call(tok, prep, B=B)              # (B*N, D) bf16   1 pallas_call
    return head_call(h, prep, B=B)                    # (B, n_classes)  1 pallas_call


# ======================================================================== main

if __name__ == "__main__":
    key = jax.random.PRNGKey(0)
    pkey, xkey = jax.random.split(key)

    B, n_channels, T = 2, 22, 64                 # seq_len after tokenizer = T // 4 = 16
    dim, depth, heads, n_classes = 64, 2, 8, 2

    params = init_params(pkey, n_channels=n_channels, n_classes=n_classes,
                         dim=dim, depth=depth, num_heads=heads)
    prep = prepare_params(params, num_heads=heads, pool_heads=4)   # one-time, outside jit
    x = jax.random.normal(xkey, (B, 1, n_channels, T), F32)        # NCHW EEG input

    fwd = jax.jit(msfaet_forward)
    logits = jax.block_until_ready(fwd(x, prep))
    assert logits.shape == (B, n_classes)
    assert bool(jnp.all(jnp.isfinite(logits)))
    print("KERNEL_OK")
</pallas_src>

<mosaic_0001>
module attributes {stable_mosaic.version = 11 : i64} {
  func.func @_tokenizer_kernel(%arg0: i32, %arg1: memref<128x675xbf16, #tpu.memory_space<vmem>>, %arg2: memref<675x64xbf16, #tpu.memory_space<vmem>>, %arg3: memref<1x64xf32, #tpu.memory_space<vmem>>, %arg4: memref<1x64xf32, #tpu.memory_space<vmem>>, %arg5: memref<32x128xf32, #tpu.memory_space<vmem>>, %arg6: memref<32x64xbf16, #tpu.memory_space<vmem>>) attributes {dimension_semantics = [#tpu.dimension_semantics<arbitrary>], iteration_bounds = array<i64: 1>, scalar_prefetch = 0 : i64, scratch_operands = 0 : i64, tpu.core_type = #tpu.core_type<tc>, window_params = [{pipeline_mode = #tpu.pipeline_mode<synchronous>, transform_indices = @transform_0, window_bounds = array<i64: 128, 675>}, {pipeline_mode = #tpu.pipeline_mode<synchronous>, transform_indices = @transform_1, window_bounds = array<i64: 675, 64>}, {pipeline_mode = #tpu.pipeline_mode<synchronous>, transform_indices = @transform_2, window_bounds = array<i64: 1, 64>}, {pipeline_mode = #tpu.pipeline_mode<synchronous>, transform_indices = @transform_3, window_bounds = array<i64: 1, 64>}, {pipeline_mode = #tpu.pipeline_mode<synchronous>, transform_indices = @transform_4, window_bounds = array<i64: 32, 128>}, {pipeline_mode = #tpu.pipeline_mode<synchronous>, transform_indices = @transform_5, window_bounds = array<i64: 32, 64>}]} {
    %c0 = arith.constant 0 : index
    %c0_0 = arith.constant 0 : index
    %0 = vector.load %arg1[%c0, %c0_0] : memref<128x675xbf16, #tpu.memory_space<vmem>>, vector<128x675xbf16>
    %c0_1 = arith.constant 0 : index
    %c0_2 = arith.constant 0 : index
    %1 = vector.load %arg2[%c0_1, %c0_2] : memref<675x64xbf16, #tpu.memory_space<vmem>>, vector<675x64xbf16>
    %cst = arith.constant dense<0.000000e+00> : vector<128x64xf32>
    %2 = tpu.matmul %0, %1, %cst {dimension_numbers = #tpu.dot_dimension_numbers<[1], [0], [0], [1], [0, 0, 1, 1], [], []>} : vector<128x675xbf16>, vector<675x64xbf16>, vector<128x64xf32> -> vector<128x64xf32>
    %c0_3 = arith.constant 0 : index
    %c0_4 = arith.constant 0 : index
    %3 = vector.load %arg3[%c0_3, %c0_4] : memref<1x64xf32, #tpu.memory_space<vmem>>, vector<1x64xf32>
    %4 = vector.broadcast %3 : vector<1x64xf32> to vector<128x64xf32>
    %5 = arith.mulf %2, %4 : vector<128x64xf32>
    %c0_5 = arith.constant 0 : index
    %c0_6 = arith.constant 0 : index
    %6 = vector.load %arg4[%c0_5, %c0_6] : memref<1x64xf32, #tpu.memory_space<vmem>>, vector<1x64xf32>
    %7 = vector.broadcast %6 : vector<1x64xf32> to vector<128x64xf32>
    %8 = arith.addf %5, %7 : vector<128x64xf32>
    %cst_7 = arith.constant 5.000000e-01 : f32
    %9 = vector.broadcast %cst_7 : f32 to vector<128x64xf32>
    %10 = arith.mulf %9, %8 : vector<128x64xf32>
    %cst_8 = arith.constant 0.707106769 : f32
    %11 = vector.broadcast %cst_8 : f32 to vector<128x64xf32>
    %12 = arith.mulf %8, %11 : vector<128x64xf32>
    %13 = math.erf %12 : vector<128x64xf32>
    %cst_9 = arith.constant 1.000000e+00 : f32
    %14 = vector.broadcast %cst_9 : f32 to vector<128x64xf32>
    %15 = arith.addf %14, %13 : vector<128x64xf32>
    %16 = arith.mulf %10, %15 : vector<128x64xf32>
    %c0_10 = arith.constant 0 : index
    %c0_11 = arith.constant 0 : index
    %17 = vector.load %arg5[%c0_10, %c0_11] : memref<32x128xf32, #tpu.memory_space<vmem>>, vector<32x128xf32>
    %cst_12 = arith.constant dense<0.000000e+00> : vector<32x64xf32>
    %18 = tpu.matmul %17, %16, %cst_12 {dimension_numbers = #tpu.dot_dimension_numbers<[1], [0], [0], [1], [0, 0, 1, 1], [], []>} : vector<32x128xf32>, vector<128x64xf32>, vector<32x64xf32> -> vector<32x64xf32>
    %19 = arith.truncf %18 : vector<32x64xf32> to vector<32x64xbf16>
    %c0_13 = arith.constant 0 : index
    %c0_14 = arith.constant 0 : index
    %20 = vector.load %arg6[%c0_13, %c0_14] : memref<32x64xbf16, #tpu.memory_space<vmem>>, vector<32x64xbf16>
    tpu.vector_store %arg6[%c0_13, %c0_14], %19 {strides = array<i32>} : memref<32x64xbf16, #tpu.memory_space<vmem>>, vector<32x64xbf16>,
    return
  }
  func.func @transform_0(%arg0: i32) -> (i32, i32) {
    %c0_i32 = arith.constant 0 : i32
    %c0_i32_0 = arith.constant 0 : i32
    %c0_i32_1 = arith.constant 0 : i32
    return %c0_i32, %c0_i32_0 : i32, i32
  }
  func.func @transform_1(%arg0: i32) -> (i32, i32) {
    %c0_i32 = arith.constant 0 : i32
    %c0_i32_0 = arith.constant 0 : i32
    %c0_i32_1 = arith.constant 0 : i32
    return %c0_i32, %c0_i32_0 : i32, i32
  }
  func.func @transform_2(%arg0: i32) -> (i32, i32) {
    %c0_i32 = arith.constant 0 : i32
    %c0_i32_0 = arith.constant 0 : i32
    %c0_i32_1 = arith.constant 0 : i32
    return %c0_i32, %c0_i32_0 : i32, i32
  }
  func.func @transform_3(%arg0: i32) -> (i32, i32) {
    %c0_i32 = arith.constant 0 : i32
    %c0_i32_0 = arith.constant 0 : i32
    %c0_i32_1 = arith.constant 0 : i32
    return %c0_i32, %c0_i32_0 : i32, i32
  }
  func.func @transform_4(%arg0: i32) -> (i32, i32) {
    %c0_i32 = arith.constant 0 : i32
    %c0_i32_0 = arith.constant 0 : i32
    %c0_i32_1 = arith.constant 0 : i32
    return %c0_i32, %c0_i32_0 : i32, i32
  }
  func.func @transform_5(%arg0: i32) -> (i32, i32) {
    %c0_i32 = arith.constant 0 : i32
    %c0_i32_0 = arith.constant 0 : i32
    %c0_i32_1 = arith.constant 0 : i32
    return %c0_i32, %c0_i32_0 : i32, i32
  }
}

module attributes {stable_mosaic.version = 11 : i64} {
  func.func @_block_stack_kernel(%arg0: i32, %arg1: memref<32x64xbf16, #tpu.memory_space<vmem>>, %arg2: memref<32x32xf32, #tpu.memory_space<vmem>>, %arg3: memref<32x32xf32, #tpu.memory_space<vmem>>, %arg4: memref<256x64xf32, #tpu.memory_space<vmem>>, %arg5: memref<1x1x64xf32, #tpu.memory_space<vmem>>, %arg6: memref<1x1x64xf32, #tpu.memory_space<vmem>>, %arg7: memref<1x64x192xbf16, #tpu.memory_space<vmem>>, %arg8: memref<1x1x192xf32, #tpu.memory_space<vmem>>, %arg9: memref<1x64x256xbf16, #tpu.memory_space<vmem>>, %arg10: memref<1x64x64xbf16, #tpu.memory_space<vmem>>, %arg11: memref<1x1x64xf32, #tpu.memory_space<vmem>>, %arg12: memref<1x3x64xf32, #tpu.memory_space<vmem>>, %arg13: memref<1x1x64xf32, #tpu.memory_space<vmem>>, %arg14: memref<1x1x64xf32, #tpu.memory_space<vmem>>, %arg15: memref<1x1x64xf32, #tpu.memory_space<vmem>>, %arg16: memref<1x64x512xbf16, #tpu.memory_space<vmem>>, %arg17: memref<1x1x512xf32, #tpu.memory_space<vmem>>, %arg18: memref<1x256x64xbf16, #tpu.memory_space<vmem>>, %arg19: memref<1x1x64xf32, #tpu.memory_space<vmem>>, %arg20: memref<32x64xbf16, #tpu.memory_space<vmem>>, %arg21: memref<32x64xf32, #tpu.memory_space<vmem>>) attributes {dimension_semantics = [#tpu.dimension_semantics<arbitrary>], iteration_bounds = array<i64: 2>, scalar_prefetch = 0 : i64, scratch_operands = 1 : i64, tpu.core_type = #tpu.core_type<tc>, window_params = [{pipeline_mode = #tpu.pipeline_mode<synchronous>, transform_indices = @transform_0, window_bounds = array<i64: 32, 64>}, {pipeline_mode = #tpu.pipeline_mode<synchronous>, transform_indices = @transform_1, window_bounds = array<i64: 32, 32>}, {pipeline_mode = #tpu.pipeline_mode<synchronous>, transform_indices = @transform_2, window_bounds = array<i64: 32, 32>}, {pipeline_mode = #tpu.pipeline_mode<synchronous>, transform_indices = @transform_3, window_bounds = array<i64: 256, 64>}, {transform_indices = @transform_4, window_bounds = array<i64: 1, 1, 64>}, {transform_indices = @transform_5, window_bounds = array<i64: 1, 1, 64>}, {transform_indices = @transform_6, window_bounds = array<i64: 1, 64, 192>}, {transform_indices = @transform_7, window_bounds = array<i64: 1, 1, 192>}, {transform_indices = @transform_8, window_bounds = array<i64: 1, 64, 256>}, {transform_indices = @transform_9, window_bounds = array<i64: 1, 64, 64>}, {transform_indices = @transform_10, window_bounds = array<i64: 1, 1, 64>}, {transform_indices = @transform_11, window_bounds = array<i64: 1, 3, 64>}, {transform_indices = @transform_12, window_bounds = array<i64: 1, 1, 64>}, {transform_indices = @transform_13, window_bounds = array<i64: 1, 1, 64>}, {transform_indices = @transform_14, window_bounds = array<i64: 1, 1, 64>}, {transform_indices = @transform_15, window_bounds = array<i64: 1, 64, 512>}, {transform_indices = @transform_16, window_bounds = array<i64: 1, 1, 512>}, {transform_indices = @transform_17, window_bounds = array<i64: 1, 256, 64>}, {transform_indices = @transform_18, window_bounds = array<i64: 1, 1, 64>}, {pipeline_mode = #tpu.pipeline_mode<synchronous>, transform_indices = @transform_19, window_bounds = array<i64: 32, 64>}]} {
    %c0_i32 = arith.constant 0 : i32
    %0 = arith.cmpi eq, %arg0, %c0_i32 : i32
    %1 = arith.extui %0 : i1 to i32
    %c0_i32_0 = arith.constant 0 : i32
    %2 = arith.cmpi ne, %1, %c0_i32_0 : i32
    scf.if %2 {
      %c0_85 = arith.constant 0 : index
      %c0_86 = arith.constant 0 : index
      %164 = vector.load %arg1[%c0_85, %c0_86] : memref<32x64xbf16, #tpu.memory_space<vmem>>, vector<32x64xbf16>
      %165 = arith.extf %164 : vector<32x64xbf16> to vector<32x64xf32>
      %c0_87 = arith.constant 0 : index
      %c0_88 = arith.constant 0 : index
      %166 = vector.load %arg21[%c0_87, %c0_88] : memref<32x64xf32, #tpu.memory_space<vmem>>, vector<32x64xf32>
      tpu.vector_store %arg21[%c0_87, %c0_88], %165 {strides = array<i32>} : memref<32x64xf32, #tpu.memory_space<vmem>>, vector<32x64xf32>,
    } else {
    }
    %c0 = arith.constant 0 : index
    %c0_1 = arith.constant 0 : index
    %3 = vector.load %arg21[%c0, %c0_1] : memref<32x64xf32, #tpu.memory_space<vmem>>, vector<32x64xf32>
    %c0_2 = arith.constant 0 : index
    %c0_3 = arith.constant 0 : index
    %c0_4 = arith.constant 0 : index
    %4 = vector.load %arg5[%c0_2, %c0_3, %c0_4] : memref<1x1x64xf32, #tpu.memory_space<vmem>>, vector<1x1x64xf32>
    %5 = vector.shape_cast %4 : vector<1x1x64xf32> to vector<1x64xf32>
    %c0_5 = arith.constant 0 : index
    %c0_6 = arith.constant 0 : index
    %c0_7 = arith.constant 0 : index
    %6 = vector.load %arg6[%c0_5, %c0_6, %c0_7] : memref<1x1x64xf32, #tpu.memory_space<vmem>>, vector<1x1x64xf32>
    %7 = vector.shape_cast %6 : vector<1x1x64xf32> to vector<1x64xf32>
    %cst = arith.constant dense<0.000000e+00> : vector<32xf32>
    %8 = vector.multi_reduction <add>, %3, %cst [1] : vector<32x64xf32> to vector<32xf32>
    %9 = vector.shape_cast %8 : vector<32xf32> to vector<32x1xf32>
    %cst_8 = arith.constant 6.400000e+01 : f32
    %10 = vector.broadcast %cst_8 : f32 to vector<32x1xf32>
    %11 = arith.divf %9, %10 : vector<32x1xf32>
    %12 = vector.broadcast %11 : vector<32x1xf32> to vector<32x64xf32>
    %13 = arith.subf %3, %12 : vector<32x64xf32>
    %14 = arith.mulf %13, %13 : vector<32x64xf32>
    %cst_9 = arith.constant dense<0.000000e+00> : vector<32xf32>
    %15 = vector.multi_reduction <add>, %14, %cst_9 [1] : vector<32x64xf32> to vector<32xf32>
    %16 = vector.shape_cast %15 : vector<32xf32> to vector<32x1xf32>
    %cst_10 = arith.constant 6.400000e+01 : f32
    %17 = vector.broadcast %cst_10 : f32 to vector<32x1xf32>
    %18 = arith.divf %16, %17 : vector<32x1xf32>
    %19 = vector.broadcast %11 : vector<32x1xf32> to vector<32x64xf32>
    %20 = arith.subf %3, %19 : vector<32x64xf32>
    %cst_11 = arith.constant 9.99999974E-6 : f32
    %21 = vector.broadcast %cst_11 : f32 to vector<32x1xf32>
    %22 = arith.addf %18, %21 : vector<32x1xf32>
    %23 = math.rsqrt %22 : vector<32x1xf32>
    %24 = vector.broadcast %23 : vector<32x1xf32> to vector<32x64xf32>
    %25 = arith.mulf %20, %24 : vector<32x64xf32>
    %26 = vector.broadcast %5 : vector<1x64xf32> to vector<32x64xf32>
    %27 = arith.mulf %25, %26 : vector<32x64xf32>
    %28 = vector.broadcast %7 : vector<1x64xf32> to vector<32x64xf32>
    %29 = arith.addf %27, %28 : vector<32x64xf32>
    %30 = arith.truncf %29 : vector<32x64xf32> to vector<32x64xbf16>
    %c0_12 = arith.constant 0 : index
    %c0_13 = arith.constant 0 : index
    %c0_14 = arith.constant 0 : index
    %31 = vector.load %arg7[%c0_12, %c0_13, %c0_14] : memref<1x64x192xbf16, #tpu.memory_space<vmem>>, vector<1x64x192xbf16>
    %32 = vector.shape_cast %31 : vector<1x64x192xbf16> to vector<64x192xbf16>
    %cst_15 = arith.constant dense<0.000000e+00> : vector<32x192xf32>
    %33 = tpu.matmul %30, %32, %cst_15 {dimension_numbers = #tpu.dot_dimension_numbers<[1], [0], [0], [1], [0, 0, 1, 1], [], []>} : vector<32x64xbf16>, vector<64x192xbf16>, vector<32x192xf32> -> vector<32x192xf32>
    %c0_16 = arith.constant 0 : index
    %c0_17 = arith.constant 0 : index
    %c0_18 = arith.constant 0 : index
    %34 = vector.load %arg8[%c0_16, %c0_17, %c0_18] : memref<1x1x192xf32, #tpu.memory_space<vmem>>, vector<1x1x192xf32>
    %35 = vector.shape_cast %34 : vector<1x1x192xf32> to vector<1x192xf32>
    %36 = vector.broadcast %35 : vector<1x192xf32> to vector<32x192xf32>
    %37 = arith.addf %33, %36 : vector<32x192xf32>
    %38 = vector.extract_strided_slice %37 {offsets = [0, 0], sizes = [32, 64], strides = [1, 1]} : vector<32x192xf32> to vector<32x64xf32>
    %39 = vector.extract_strided_slice %37 {offsets = [0, 64], sizes = [32, 64], strides = [1, 1]} : vector<32x192xf32> to vector<32x64xf32>
    %40 = vector.extract_strided_slice %37 {offsets = [0, 128], sizes = [32, 64], strides = [1, 1]} : vector<32x192xf32> to vector<32x64xf32>
    %c0_19 = arith.constant 0 : index
    %c0_20 = arith.constant 0 : index
    %c0_21 = arith.constant 0 : index
    %41 = vector.load %arg9[%c0_19, %c0_20, %c0_21] : memref<1x64x256xbf16, #tpu.memory_space<vmem>>, vector<1x64x256xbf16>
    %42 = vector.shape_cast %41 : vector<1x64x256xbf16> to vector<64x256xbf16>
    %43 = arith.truncf %38 : vector<32x64xf32> to vector<32x64xbf16>
    %cst_22 = arith.constant dense<0.000000e+00> : vector<32x256xf32>
    %44 = tpu.matmul %43, %42, %cst_22 {dimension_numbers = #tpu.dot_dimension_numbers<[1], [0], [0], [1], [0, 0, 1, 1], [], []>} : vector<32x64xbf16>, vector<64x256xbf16>, vector<32x256xf32> -> vector<32x256xf32>
    %cst_23 = arith.constant 0.000000e+00 : f32
    %45 = vector.broadcast %cst_23 : f32 to vector<32x256xf32>
    %46 = arith.maximumf %44, %45 : vector<32x256xf32>
    %47 = arith.truncf %39 : vector<32x64xf32> to vector<32x64xbf16>
    %cst_24 = arith.constant dense<0.000000e+00> : vector<32x256xf32>
    %48 = tpu.matmul %47, %42, %cst_24 {dimension_numbers = #tpu.dot_dimension_numbers<[1], [0], [0], [1], [0, 0, 1, 1], [], []>} : vector<32x64xbf16>, vector<64x256xbf16>, vector<32x256xf32> -> vector<32x256xf32>
    %cst_25 = arith.constant 0.000000e+00 : f32
    %49 = vector.broadcast %cst_25 : f32 to vector<32x256xf32>
    %50 = arith.maximumf %48, %49 : vector<32x256xf32>
    %c0_26 = arith.constant 0 : index
    %c0_27 = arith.constant 0 : index
    %51 = vector.load %arg4[%c0_26, %c0_27] : memref<256x64xf32, #tpu.memory_space<vmem>>, vector<256x64xf32>
    %52 = vector.shape_cast %46 : vector<32x256xf32> to vector<2x16x256xf32>
    %53 = vector.shape_cast %50 : vector<32x256xf32> to vector<2x16x256xf32>
    %54 = vector.shape_cast %40 : vector<32x64xf32> to vector<2x16x64xf32>
    "tpu.trace_start"() <{level = 10 : i32, message = "bnf,bnd->bfd"}> : () -> ()
    %cst_28 = arith.constant dense<0.000000e+00> : vector<2x256x64xf32>
    %55 = tpu.matmul %53, %54, %cst_28 {dimension_numbers = #tpu.dot_dimension_numbers<[1], [1], [2], [2], [0, 0, 0, 2, 1, 2], [0], [0]>} : vector<2x16x256xf32>, vector<2x16x64xf32>, vector<2x256x64xf32> -> vector<2x256x64xf32>
    "tpu.trace_stop"() : () -> ()
    %56 = vector.shape_cast %51 : vector<256x64xf32> to vector<1x256x64xf32>
    %57 = vector.broadcast %56 : vector<1x256x64xf32> to vector<2x256x64xf32>
    %58 = arith.mulf %55, %57 : vector<2x256x64xf32>
    "tpu.trace_start"() <{level = 10 : i32, message = "bnf,bfd->bnd"}> : () -> ()
    %cst_29 = arith.constant dense<0.000000e+00> : vector<2x16x64xf32>
    %59 = tpu.matmul %52, %58, %cst_29 {dimension_numbers = #tpu.dot_dimension_numbers<[2], [1], [1], [2], [0, 0, 0, 1, 1, 2], [0], [0]>} : vector<2x16x256xf32>, vector<2x256x64xf32>, vector<2x16x64xf32> -> vector<2x16x64xf32>
    "tpu.trace_stop"() : () -> ()
    %60 = vector.shape_cast %59 : vector<2x16x64xf32> to vector<32x64xf32>
    %cst_30 = arith.constant dense<0.000000e+00> : vector<2x256xf32>
    %61 = vector.multi_reduction <add>, %53, %cst_30 [1] : vector<2x16x256xf32> to vector<2x256xf32>
    %62 = vector.shape_cast %61 : vector<2x256xf32> to vector<2x1x256xf32>
    %63 = vector.broadcast %62 : vector<2x1x256xf32> to vector<2x16x256xf32>
    %64 = arith.mulf %52, %63 : vector<2x16x256xf32>
    %65 = vector.shape_cast %64 : vector<2x16x256xf32> to vector<32x256xf32>
    %cst_31 = arith.constant dense<0.000000e+00> : vector<32x64xf32>
    %66 = tpu.matmul %65, %51, %cst_31 {dimension_numbers = #tpu.dot_dimension_numbers<[1], [0], [0], [1], [0, 0, 1, 1], [], []>} : vector<32x256xf32>, vector<256x64xf32>, vector<32x64xf32> -> vector<32x64xf32>
    %cst_32 = arith.constant 9.99999997E-7 : f32
    %67 = vector.broadcast %cst_32 : f32 to vector<32x64xf32>
    %68 = arith.addf %66, %67 : vector<32x64xf32>
    %69 = tpu.reciprocal %68 {approx = true} : vector<32x64xf32> -> vector<32x64xf32>
    %70 = arith.mulf %60, %69 : vector<32x64xf32>
    %71 = arith.truncf %70 : vector<32x64xf32> to vector<32x64xbf16>
    %c0_33 = arith.constant 0 : index
    %c0_34 = arith.constant 0 : index
    %c0_35 = arith.constant 0 : index
    %72 = vector.load %arg10[%c0_33, %c0_34, %c0_35] : memref<1x64x64xbf16, #tpu.memory_space<vmem>>, vector<1x64x64xbf16>
    %73 = vector.shape_cast %72 : vector<1x64x64xbf16> to vector<64x64xbf16>
    %cst_36 = arith.constant dense<0.000000e+00> : vector<32x64xf32>
    %74 = tpu.matmul %71, %73, %cst_36 {dimension_numbers = #tpu.dot_dimension_numbers<[1], [0], [0], [1], [0, 0, 1, 1], [], []>} : vector<32x64xbf16>, vector<64x64xbf16>, vector<32x64xf32> -> vector<32x64xf32>
    %75 = arith.addf %3, %74 : vector<32x64xf32>
    %c0_37 = arith.constant 0 : index
    %c0_38 = arith.constant 0 : index
    %c0_39 = arith.constant 0 : index
    %76 = vector.load %arg11[%c0_37, %c0_38, %c0_39] : memref<1x1x64xf32, #tpu.memory_space<vmem>>, vector<1x1x64xf32>
    %77 = vector.shape_cast %76 : vector<1x1x64xf32> to vector<1x64xf32>
    %78 = vector.broadcast %77 : vector<1x64xf32> to vector<32x64xf32>
    %79 = arith.addf %75, %78 : vector<32x64xf32>
    %c0_40 = arith.constant 0 : index
    %c0_41 = arith.constant 0 : index
    %c0_42 = arith.constant 0 : index
    %80 = vector.load %arg12[%c0_40, %c0_41, %c0_42] : memref<1x3x64xf32, #tpu.memory_space<vmem>>, vector<1x3x64xf32>
    %81 = vector.shape_cast %80 : vector<1x3x64xf32> to vector<3x64xf32>
    %c0_43 = arith.constant 0 : index
    %c0_44 = arith.constant 0 : index
    %82 = vector.load %arg2[%c0_43, %c0_44] : memref<32x32xf32, #tpu.memory_space<vmem>>, vector<32x32xf32>
    %cst_45 = arith.constant dense<0.000000e+00> : vector<32x64xf32>
    %83 = tpu.matmul %82, %79, %cst_45 {dimension_numbers = #tpu.dot_dimension_numbers<[1], [0], [0], [1], [0, 0, 1, 1], [], []>} : vector<32x32xf32>, vector<32x64xf32>, vector<32x64xf32> -> vector<32x64xf32>
    %c0_46 = arith.constant 0 : index
    %c0_47 = arith.constant 0 : index
    %84 = vector.load %arg3[%c0_46, %c0_47] : memref<32x32xf32, #tpu.memory_space<vmem>>, vector<32x32xf32>
    %cst_48 = arith.constant dense<0.000000e+00> : vector<32x64xf32>
    %85 = tpu.matmul %84, %79, %cst_48 {dimension_numbers = #tpu.dot_dimension_numbers<[1], [0], [0], [1], [0, 0, 1, 1], [], []>} : vector<32x32xf32>, vector<32x64xf32>, vector<32x64xf32> -> vector<32x64xf32>
    %86 = vector.extract_strided_slice %81 {offsets = [0, 0], sizes = [1, 64], strides = [1, 1]} : vector<3x64xf32> to vector<1x64xf32>
    %87 = vector.broadcast %86 : vector<1x64xf32> to vector<32x64xf32>
    %88 = arith.mulf %83, %87 : vector<32x64xf32>
    %89 = vector.extract_strided_slice %81 {offsets = [1, 0], sizes = [1, 64], strides = [1, 1]} : vector<3x64xf32> to vector<1x64xf32>
    %90 = vector.broadcast %89 : vector<1x64xf32> to vector<32x64xf32>
    %91 = arith.mulf %79, %90 : vector<32x64xf32>
    %92 = arith.addf %88, %91 : vector<32x64xf32>
    %93 = vector.extract_strided_slice %81 {offsets = [2, 0], sizes = [1, 64], strides = [1, 1]} : vector<3x64xf32> to vector<1x64xf32>
    %94 = vector.broadcast %93 : vector<1x64xf32> to vector<32x64xf32>
    %95 = arith.mulf %85, %94 : vector<32x64xf32>
    %96 = arith.addf %92, %95 : vector<32x64xf32>
    %c0_49 = arith.constant 0 : index
    %c0_50 = arith.constant 0 : index
    %c0_51 = arith.constant 0 : index
    %97 = vector.load %arg13[%c0_49, %c0_50, %c0_51] : memref<1x1x64xf32, #tpu.memory_space<vmem>>, vector<1x1x64xf32>
    %98 = vector.shape_cast %97 : vector<1x1x64xf32> to vector<1x64xf32>
    %99 = vector.broadcast %98 : vector<1x64xf32> to vector<32x64xf32>
    %100 = arith.addf %96, %99 : vector<32x64xf32>
    %101 = arith.addf %79, %100 : vector<32x64xf32>
    %c0_52 = arith.constant 0 : index
    %c0_53 = arith.constant 0 : index
    %c0_54 = arith.constant 0 : index
    %102 = vector.load %arg14[%c0_52, %c0_53, %c0_54] : memref<1x1x64xf32, #tpu.memory_space<vmem>>, vector<1x1x64xf32>
    %103 = vector.shape_cast %102 : vector<1x1x64xf32> to vector<1x64xf32>
    %c0_55 = arith.constant 0 : index
    %c0_56 = arith.constant 0 : index
    %c0_57 = arith.constant 0 : index
    %104 = vector.load %arg15[%c0_55, %c0_56, %c0_57] : memref<1x1x64xf32, #tpu.memory_space<vmem>>, vector<1x1x64xf32>
    %105 = vector.shape_cast %104 : vector<1x1x64xf32> to vector<1x64xf32>
    %cst_58 = arith.constant dense<0.000000e+00> : vector<32xf32>
    %106 = vector.multi_reduction <add>, %101, %cst_58 [1] : vector<32x64xf32> to vector<32xf32>
    %107 = vector.shape_cast %106 : vector<32xf32> to vector<32x1xf32>
    %cst_59 = arith.constant 6.400000e+01 : f32
    %108 = vector.broadcast %cst_59 : f32 to vector<32x1xf32>
    %109 = arith.divf %107, %108 : vector<32x1xf32>
    %110 = vector.broadcast %109 : vector<32x1xf32> to vector<32x64xf32>
    %111 = arith.subf %101, %110 : vector<32x64xf32>
    %112 = arith.mulf %111, %111 : vector<32x64xf32>
    %cst_60 = arith.constant dense<0.000000e+00> : vector<32xf32>
    %113 = vector.multi_reduction <add>, %112, %cst_60 [1] : vector<32x64xf32> to vector<32xf32>
    %114 = vector.shape_cast %113 : vector<32xf32> to vector<32x1xf32>
    %cst_61 = arith.constant 6.400000e+01 : f32
    %115 = vector.broadcast %cst_61 : f32 to vector<32x1xf32>
    %116 = arith.divf %114, %115 : vector<32x1xf32>
    %117 = vector.broadcast %109 : vector<32x1xf32> to vector<32x64xf32>
    %118 = arith.subf %101, %117 : vector<32x64xf32>
    %cst_62 = arith.constant 9.99999974E-6 : f32
    %119 = vector.broadcast %cst_62 : f32 to vector<32x1xf32>
    %120 = arith.addf %116, %119 : vector<32x1xf32>
    %121 = math.rsqrt %120 : vector<32x1xf32>
    %122 = vector.broadcast %121 : vector<32x1xf32> to vector<32x64xf32>
    %123 = arith.mulf %118, %122 : vector<32x64xf32>
    %124 = vector.broadcast %103 : vector<1x64xf32> to vector<32x64xf32>
    %125 = arith.mulf %123, %124 : vector<32x64xf32>
    %126 = vector.broadcast %105 : vector<1x64xf32> to vector<32x64xf32>
    %127 = arith.addf %125, %126 : vector<32x64xf32>
    %128 = arith.truncf %127 : vector<32x64xf32> to vector<32x64xbf16>
    %c0_63 = arith.constant 0 : index
    %c0_64 = arith.constant 0 : index
    %c0_65 = arith.constant 0 : index
    %129 = vector.load %arg16[%c0_63, %c0_64, %c0_65] : memref<1x64x512xbf16, #tpu.memory_space<vmem>>, vector<1x64x512xbf16>
    %130 = vector.shape_cast %129 : vector<1x64x512xbf16> to vector<64x512xbf16>
    %cst_66 = arith.constant dense<0.000000e+00> : vector<32x512xf32>
    %131 = tpu.matmul %128, %130, %cst_66 {dimension_numbers = #tpu.dot_dimension_numbers<[1], [0], [0], [1], [0, 0, 1, 1], [], []>} : vector<32x64xbf16>, vector<64x512xbf16>, vector<32x512xf32> -> vector<32x512xf32>
    %c0_67 = arith.constant 0 : index
    %c0_68 = arith.constant 0 : index
    %c0_69 = arith.constant 0 : index
    %132 = vector.load %arg17[%c0_67, %c0_68, %c0_69] : memref<1x1x512xf32, #tpu.memory_space<vmem>>, vector<1x1x512xf32>
    %133 = vector.shape_cast %132 : vector<1x1x512xf32> to vector<1x512xf32>
    %134 = vector.broadcast %133 : vector<1x512xf32> to vector<32x512xf32>
    %135 = arith.addf %131, %134 : vector<32x512xf32>
    %136 = vector.extract_strided_slice %135 {offsets = [0, 0], sizes = [32, 256], strides = [1, 1]} : vector<32x512xf32> to vector<32x256xf32>
    %cst_70 = arith.constant 5.000000e-01 : f32
    %137 = vector.broadcast %cst_70 : f32 to vector<32x256xf32>
    %138 = arith.mulf %137, %136 : vector<32x256xf32>
    %cst_71 = arith.constant 0.707106769 : f32
    %139 = vector.broadcast %cst_71 : f32 to vector<32x256xf32>
    %140 = arith.mulf %136, %139 : vector<32x256xf32>
    %141 = math.erf %140 : vector<32x256xf32>
    %cst_72 = arith.constant 1.000000e+00 : f32
    %142 = vector.broadcast %cst_72 : f32 to vector<32x256xf32>
    %143 = arith.addf %142, %141 : vector<32x256xf32>
    %144 = arith.mulf %138, %143 : vector<32x256xf32>
    %145 = vector.extract_strided_slice %135 {offsets = [0, 256], sizes = [32, 256], strides = [1, 1]} : vector<32x512xf32> to vector<32x256xf32>
    %146 = arith.negf %145 : vector<32x256xf32>
    %147 = math.exp %146 : vector<32x256xf32>
    %cst_73 = arith.constant 1.000000e+00 : f32
    %148 = vector.broadcast %cst_73 : f32 to vector<32x256xf32>
    %149 = arith.addf %148, %147 : vector<32x256xf32>
    %150 = arith.divf %148, %149 : vector<32x256xf32>
    %151 = arith.mulf %144, %150 : vector<32x256xf32>
    %152 = arith.truncf %151 : vector<32x256xf32> to vector<32x256xbf16>
    %c0_74 = arith.constant 0 : index
    %c0_75 = arith.constant 0 : index
    %c0_76 = arith.constant 0 : index
    %153 = vector.load %arg18[%c0_74, %c0_75, %c0_76] : memref<1x256x64xbf16, #tpu.memory_space<vmem>>, vector<1x256x64xbf16>
    %154 = vector.shape_cast %153 : vector<1x256x64xbf16> to vector<256x64xbf16>
    %cst_77 = arith.constant dense<0.000000e+00> : vector<32x64xf32>
    %155 = tpu.matmul %152, %154, %cst_77 {dimension_numbers = #tpu.dot_dimension_numbers<[1], [0], [0], [1], [0, 0, 1, 1], [], []>} : vector<32x256xbf16>, vector<256x64xbf16>, vector<32x64xf32> -> vector<32x64xf32>
    %c0_78 = arith.constant 0 : index
    %c0_79 = arith.constant 0 : index
    %c0_80 = arith.constant 0 : index
    %156 = vector.load %arg19[%c0_78, %c0_79, %c0_80] : memref<1x1x64xf32, #tpu.memory_space<vmem>>, vector<1x1x64xf32>
    %157 = vector.shape_cast %156 : vector<1x1x64xf32> to vector<1x64xf32>
    %158 = vector.broadcast %157 : vector<1x64xf32> to vector<32x64xf32>
    %159 = arith.addf %155, %158 : vector<32x64xf32>
    %160 = arith.addf %79, %159 : vector<32x64xf32>
    %c0_81 = arith.constant 0 : index
    %c0_82 = arith.constant 0 : index
    %161 = vector.load %arg21[%c0_81, %c0_82] : memref<32x64xf32, #tpu.memory_space<vmem>>, vector<32x64xf32>
    tpu.vector_store %arg21[%c0_81, %c0_82], %160 {strides = array<i32>} : memref<32x64xf32, #tpu.memory_space<vmem>>, vector<32x64xf32>,
    %162 = arith.truncf %160 : vector<32x64xf32> to vector<32x64xbf16>
    %c0_83 = arith.constant 0 : index
    %c0_84 = arith.constant 0 : index
    %163 = vector.load %arg20[%c0_83, %c0_84] : memref<32x64xbf16, #tpu.memory_space<vmem>>, vector<32x64xbf16>
    tpu.vector_store %arg20[%c0_83, %c0_84], %162 {strides = array<i32>} : memref<32x64xbf16, #tpu.memory_space<vmem>>, vector<32x64xbf16>,
    return
  }
  func.func @transform_0(%arg0: i32) -> (i32, i32) {
    %c0_i32 = arith.constant 0 : i32
    %c0_i32_0 = arith.constant 0 : i32
    %c0_i32_1 = arith.constant 0 : i32
    return %c0_i32, %c0_i32_0 : i32, i32
  }
  func.func @transform_1(%arg0: i32) -> (i32, i32) {
    %c0_i32 = arith.constant 0 : i32
    %c0_i32_0 = arith.constant 0 : i32
    %c0_i32_1 = arith.constant 0 : i32
    return %c0_i32, %c0_i32_0 : i32, i32
  }
  func.func @transform_2(%arg0: i32) -> (i32, i32) {
    %c0_i32 = arith.constant 0 : i32
    %c0_i32_0 = arith.constant 0 : i32
    %c0_i32_1 = arith.constant 0 : i32
    return %c0_i32, %c0_i32_0 : i32, i32
  }
  func.func @transform_3(%arg0: i32) -> (i32, i32) {
    %c0_i32 = arith.constant 0 : i32
    %c0_i32_0 = arith.constant 0 : i32
    %c0_i32_1 = arith.constant 0 : i32
    return %c0_i32, %c0_i32_0 : i32, i32
  }
  func.func @transform_4(%arg0: i32) -> (i32, i32, i32) {
    %c0_i32 = arith.constant 0 : i32
    %c0_i32_0 = arith.constant 0 : i32
    %c0_i32_1 = arith.constant 0 : i32
    return %arg0, %c0_i32, %c0_i32_0 : i32, i32, i32
  }
  func.func @transform_5(%arg0: i32) -> (i32, i32, i32) {
    %c0_i32 = arith.constant 0 : i32
    %c0_i32_0 = arith.constant 0 : i32
    %c0_i32_1 = arith.constant 0 : i32
    return %arg0, %c0_i32, %c0_i32_0 : i32, i32, i32
  }
  func.func @transform_6(%arg0: i32) -> (i32, i32, i32) {
    %c0_i32 = arith.constant 0 : i32
    %c0_i32_0 = arith.constant 0 : i32
    %c0_i32_1 = arith.constant 0 : i32
    return %arg0, %c0_i32, %c0_i32_0 : i32, i32, i32
  }
  func.func @transform_7(%arg0: i32) -> (i32, i32, i32) {
    %c0_i32 = arith.constant 0 : i32
    %c0_i32_0 = arith.constant 0 : i32
    %c0_i32_1 = arith.constant 0 : i32
    return %arg0, %c0_i32, %c0_i32_0 : i32, i32, i32
  }
  func.func @transform_8(%arg0: i32) -> (i32, i32, i32) {
    %c0_i32 = arith.constant 0 : i32
    %c0_i32_0 = arith.constant 0 : i32
    %c0_i32_1 = arith.constant 0 : i32
    return %arg0, %c0_i32, %c0_i32_0 : i32, i32, i32
  }
  func.func @transform_9(%arg0: i32) -> (i32, i32, i32) {
    %c0_i32 = arith.constant 0 : i32
    %c0_i32_0 = arith.constant 0 : i32
    %c0_i32_1 = arith.constant 0 : i32
    return %arg0, %c0_i32, %c0_i32_0 : i32, i32, i32
  }
  func.func @transform_10(%arg0: i32) -> (i32, i32, i32) {
    %c0_i32 = arith.constant 0 : i32
    %c0_i32_0 = arith.constant 0 : i32
    %c0_i32_1 = arith.constant 0 : i32
    return %arg0, %c0_i32, %c0_i32_0 : i32, i32, i32
  }
  func.func @transform_11(%arg0: i32) -> (i32, i32, i32) {
    %c0_i32 = arith.constant 0 : i32
    %c0_i32_0 = arith.constant 0 : i32
    %c0_i32_1 = arith.constant 0 : i32
    return %arg0, %c0_i32, %c0_i32_0 : i32, i32, i32
  }
  func.func @transform_12(%arg0: i32) -> (i32, i32, i32) {
    %c0_i32 = arith.constant 0 : i32
    %c0_i32_0 = arith.constant 0 : i32
    %c0_i32_1 = arith.constant 0 : i32
    return %arg0, %c0_i32, %c0_i32_0 : i32, i32, i32
  }
  func.func @transform_13(%arg0: i32) -> (i32, i32, i32) {
    %c0_i32 = arith.constant 0 : i32
    %c0_i32_0 = arith.constant 0 : i32
    %c0_i32_1 = arith.constant 0 : i32
    return %arg0, %c0_i32, %c0_i32_0 : i32, i32, i32
  }
  func.func @transform_14(%arg0: i32) -> (i32, i32, i32) {
    %c0_i32 = arith.constant 0 : i32
    %c0_i32_0 = arith.constant 0 : i32
    %c0_i32_1 = arith.constant 0 : i32
    return %arg0, %c0_i32, %c0_i32_0 : i32, i32, i32
  }
  func.func @transform_15(%arg0: i32) -> (i32, i32, i32) {
    %c0_i32 = arith.constant 0 : i32
    %c0_i32_0 = arith.constant 0 : i32
    %c0_i32_1 = arith.constant 0 : i32
    return %arg0, %c0_i32, %c0_i32_0 : i32, i32, i32
  }
  func.func @transform_16(%arg0: i32) -> (i32, i32, i32) {
    %c0_i32 = arith.constant 0 : i32
    %c0_i32_0 = arith.constant 0 : i32
    %c0_i32_1 = arith.constant 0 : i32
    return %arg0, %c0_i32, %c0_i32_0 : i32, i32, i32
  }
  func.func @transform_17(%arg0: i32) -> (i32, i32, i32) {
    %c0_i32 = arith.constant 0 : i32
    %c0_i32_0 = arith.constant 0 : i32
    %c0_i32_1 = arith.constant 0 : i32
    return %arg0, %c0_i32, %c0_i32_0 : i32, i32, i32
  }
  func.func @transform_18(%arg0: i32) -> (i32, i32, i32) {
    %c0_i32 = arith.constant 0 : i32
    %c0_i32_0 = arith.constant 0 : i32
    %c0_i32_1 = arith.constant 0 : i32
    return %arg0, %c0_i32, %c0_i32_0 : i32, i32, i32
  }
  func.func @transform_19(%arg0: i32) -> (i32, i32) {
    %c0_i32 = arith.constant 0 : i32
    %c0_i32_0 = arith.constant 0 : i32
    %c0_i32_1 = arith.constant 0 : i32
    return %c0_i32, %c0_i32_0 : i32, i32
  }
}

module attributes {stable_mosaic.version = 11 : i64} {
  func.func @_head_kernel(%arg0: i32, %arg1: memref<32x64xbf16, #tpu.memory_space<vmem>>, %arg2: memref<1x64xf32, #tpu.memory_space<vmem>>, %arg3: memref<1x64xf32, #tpu.memory_space<vmem>>, %arg4: memref<1x64xf32, #tpu.memory_space<vmem>>, %arg5: memref<64x192xbf16, #tpu.memory_space<vmem>>, %arg6: memref<1x192xf32, #tpu.memory_space<vmem>>, %arg7: memref<64x128xbf16, #tpu.memory_space<vmem>>, %arg8: memref<1x128xf32, #tpu.memory_space<vmem>>, %arg9: memref<64x4xf32, #tpu.memory_space<vmem>>, %arg10: memref<4x64xf32, #tpu.memory_space<vmem>>, %arg11: memref<64x64xbf16, #tpu.memory_space<vmem>>, %arg12: memref<1x64xf32, #tpu.memory_space<vmem>>, %arg13: memref<64x32xbf16, #tpu.memory_space<vmem>>, %arg14: memref<1x32xf32, #tpu.memory_space<vmem>>, %arg15: memref<32x2xbf16, #tpu.memory_space<vmem>>, %arg16: memref<1x2xf32, #tpu.memory_space<vmem>>, %arg17: memref<2x2xf32, #tpu.memory_space<vmem>>) attributes {dimension_semantics = [#tpu.dimension_semantics<arbitrary>], iteration_bounds = array<i64: 1>, scalar_prefetch = 0 : i64, scratch_operands = 0 : i64, tpu.core_type = #tpu.core_type<tc>, window_params = [{pipeline_mode = #tpu.pipeline_mode<synchronous>, transform_indices = @transform_0, window_bounds = array<i64: 32, 64>}, {pipeline_mode = #tpu.pipeline_mode<synchronous>, transform_indices = @transform_1, window_bounds = array<i64: 1, 64>}, {pipeline_mode = #tpu.pipeline_mode<synchronous>, transform_indices = @transform_2, window_bounds = array<i64: 1, 64>}, {pipeline_mode = #tpu.pipeline_mode<synchronous>, transform_indices = @transform_3, window_bounds = array<i64: 1, 64>}, {pipeline_mode = #tpu.pipeline_mode<synchronous>, transform_indices = @transform_4, window_bounds = array<i64: 64, 192>}, {pipeline_mode = #tpu.pipeline_mode<synchronous>, transform_indices = @transform_5, window_bounds = array<i64: 1, 192>}, {pipeline_mode = #tpu.pipeline_mode<synchronous>, transform_indices = @transform_6, window_bounds = array<i64: 64, 128>}, {pipeline_mode = #tpu.pipeline_mode<synchronous>, transform_indices = @transform_7, window_bounds = array<i64: 1, 128>}, {pipeline_mode = #tpu.pipeline_mode<synchronous>, transform_indices = @transform_8, window_bounds = array<i64: 64, 4>}, {pipeline_mode = #tpu.pipeline_mode<synchronous>, transform_indices = @transform_9, window_bounds = array<i64: 4, 64>}, {pipeline_mode = #tpu.pipeline_mode<synchronous>, transform_indices = @transform_10, window_bounds = array<i64: 64, 64>}, {pipeline_mode = #tpu.pipeline_mode<synchronous>, transform_indices = @transform_11, window_bounds = array<i64: 1, 64>}, {pipeline_mode = #tpu.pipeline_mode<synchronous>, transform_indices = @transform_12, window_bounds = array<i64: 64, 32>}, {pipeline_mode = #tpu.pipeline_mode<synchronous>, transform_indices = @transform_13, window_bounds = array<i64: 1, 32>}, {pipeline_mode = #tpu.pipeline_mode<synchronous>, transform_indices = @transform_14, window_bounds = array<i64: 32, 2>}, {pipeline_mode = #tpu.pipeline_mode<synchronous>, transform_indices = @transform_15, window_bounds = array<i64: 1, 2>}, {pipeline_mode = #tpu.pipeline_mode<synchronous>, transform_indices = @transform_16, window_bounds = array<i64: 2, 2>}]} {
    %c0 = arith.constant 0 : index
    %c0_0 = arith.constant 0 : index
    %0 = vector.load %arg1[%c0, %c0_0] : memref<32x64xbf16, #tpu.memory_space<vmem>>, vector<32x64xbf16>
    %1 = arith.extf %0 : vector<32x64xbf16> to vector<32x64xf32>
    %c0_1 = arith.constant 0 : index
    %c0_2 = arith.constant 0 : index
    %2 = vector.load %arg2[%c0_1, %c0_2] : memref<1x64xf32, #tpu.memory_space<vmem>>, vector<1x64xf32>
    %c0_3 = arith.constant 0 : index
    %c0_4 = arith.constant 0 : index
    %3 = vector.load %arg3[%c0_3, %c0_4] : memref<1x64xf32, #tpu.memory_space<vmem>>, vector<1x64xf32>
    %cst = arith.constant dense<0.000000e+00> : vector<32xf32>
    %4 = vector.multi_reduction <add>, %1, %cst [1] : vector<32x64xf32> to vector<32xf32>
    %5 = vector.shape_cast %4 : vector<32xf32> to vector<32x1xf32>
    %cst_5 = arith.constant 6.400000e+01 : f32
    %6 = vector.broadcast %cst_5 : f32 to vector<32x1xf32>
    %7 = arith.divf %5, %6 : vector<32x1xf32>
    %8 = vector.broadcast %7 : vector<32x1xf32> to vector<32x64xf32>
    %9 = arith.subf %1, %8 : vector<32x64xf32>
    %10 = arith.mulf %9, %9 : vector<32x64xf32>
    %cst_6 = arith.constant dense<0.000000e+00> : vector<32xf32>
    %11 = vector.multi_reduction <add>, %10, %cst_6 [1] : vector<32x64xf32> to vector<32xf32>
    %12 = vector.shape_cast %11 : vector<32xf32> to vector<32x1xf32>
    %cst_7 = arith.constant 6.400000e+01 : f32
    %13 = vector.broadcast %cst_7 : f32 to vector<32x1xf32>
    %14 = arith.divf %12, %13 : vector<32x1xf32>
    %15 = vector.broadcast %7 : vector<32x1xf32> to vector<32x64xf32>
    %16 = arith.subf %1, %15 : vector<32x64xf32>
    %cst_8 = arith.constant 9.99999974E-6 : f32
    %17 = vector.broadcast %cst_8 : f32 to vector<32x1xf32>
    %18 = arith.addf %14, %17 : vector<32x1xf32>
    %19 = math.rsqrt %18 : vector<32x1xf32>
    %20 = vector.broadcast %19 : vector<32x1xf32> to vector<32x64xf32>
    %21 = arith.mulf %16, %20 : vector<32x64xf32>
    %22 = vector.broadcast %2 : vector<1x64xf32> to vector<32x64xf32>
    %23 = arith.mulf %21, %22 : vector<32x64xf32>
    %24 = vector.broadcast %3 : vector<1x64xf32> to vector<32x64xf32>
    %25 = arith.addf %23, %24 : vector<32x64xf32>
    %26 = arith.truncf %25 : vector<32x64xf32> to vector<32x64xbf16>
    %c0_9 = arith.constant 0 : index
    %c0_10 = arith.constant 0 : index
    %27 = vector.load %arg4[%c0_9, %c0_10] : memref<1x64xf32, #tpu.memory_space<vmem>>, vector<1x64xf32>
    %28 = arith.truncf %27 : vector<1x64xf32> to vector<1x64xbf16>
    %c0_11 = arith.constant 0 : index
    %c0_12 = arith.constant 0 : index
    %29 = vector.load %arg5[%c0_11, %c0_12] : memref<64x192xbf16, #tpu.memory_space<vmem>>, vector<64x192xbf16>
    %cst_13 = arith.constant dense<0.000000e+00> : vector<1x192xf32>
    %30 = tpu.matmul %28, %29, %cst_13 {dimension_numbers = #tpu.dot_dimension_numbers<[1], [0], [0], [1], [0, 0, 1, 1], [], []>} : vector<1x64xbf16>, vector<64x192xbf16>, vector<1x192xf32> -> vector<1x192xf32>
    %c0_14 = arith.constant 0 : index
    %c0_15 = arith.constant 0 : index
    %31 = vector.load %arg6[%c0_14, %c0_15] : memref<1x192xf32, #tpu.memory_space<vmem>>, vector<1x192xf32>
    %32 = arith.addf %30, %31 : vector<1x192xf32>
    %33 = vector.extract_strided_slice %32 {offsets = [0, 0], sizes = [1, 64], strides = [1, 1]} : vector<1x192xf32> to vector<1x64xf32>
    %34 = vector.extract_strided_slice %32 {offsets = [0, 64], sizes = [1, 64], strides = [1, 1]} : vector<1x192xf32> to vector<1x64xf32>
    %35 = vector.extract_strided_slice %32 {offsets = [0, 128], sizes = [1, 64], strides = [1, 1]} : vector<1x192xf32> to vector<1x64xf32>
    %c0_16 = arith.constant 0 : index
    %c0_17 = arith.constant 0 : index
    %36 = vector.load %arg7[%c0_16, %c0_17] : memref<64x128xbf16, #tpu.memory_space<vmem>>, vector<64x128xbf16>
    %cst_18 = arith.constant dense<0.000000e+00> : vector<32x128xf32>
    %37 = tpu.matmul %26, %36, %cst_18 {dimension_numbers = #tpu.dot_dimension_numbers<[1], [0], [0], [1], [0, 0, 1, 1], [], []>} : vector<32x64xbf16>, vector<64x128xbf16>, vector<32x128xf32> -> vector<32x128xf32>
    %c0_19 = arith.constant 0 : index
    %c0_20 = arith.constant 0 : index
    %38 = vector.load %arg8[%c0_19, %c0_20] : memref<1x128xf32, #tpu.memory_space<vmem>>, vector<1x128xf32>
    %39 = vector.broadcast %38 : vector<1x128xf32> to vector<32x128xf32>
    %40 = arith.addf %37, %39 : vector<32x128xf32>
    %41 = vector.extract_strided_slice %40 {offsets = [0, 0], sizes = [32, 64], strides = [1, 1]} : vector<32x128xf32> to vector<32x64xf32>
    %42 = vector.extract_strided_slice %40 {offsets = [0, 64], sizes = [32, 64], strides = [1, 1]} : vector<32x128xf32> to vector<32x64xf32>
    %c0_21 = arith.constant 0 : index
    %c0_22 = arith.constant 0 : index
    %43 = vector.load %arg9[%c0_21, %c0_22] : memref<64x4xf32, #tpu.memory_space<vmem>>, vector<64x4xf32>
    %c0_23 = arith.constant 0 : index
    %c0_24 = arith.constant 0 : index
    %44 = vector.load %arg10[%c0_23, %c0_24] : memref<4x64xf32, #tpu.memory_space<vmem>>, vector<4x64xf32>
    %45 = vector.broadcast %33 : vector<1x64xf32> to vector<32x64xf32>
    %46 = arith.mulf %41, %45 : vector<32x64xf32>
    %cst_25 = arith.constant dense<0.000000e+00> : vector<32x4xf32>
    %47 = tpu.matmul %46, %43, %cst_25 {dimension_numbers = #tpu.dot_dimension_numbers<[1], [0], [0], [1], [0, 0, 1, 1], [], []>} : vector<32x64xf32>, vector<64x4xf32>, vector<32x4xf32> -> vector<32x4xf32>
    %cst_26 = arith.constant 2.500000e-01 : f32
    %48 = vector.broadcast %cst_26 : f32 to vector<32x4xf32>
    %49 = arith.mulf %47, %48 : vector<32x4xf32>
    %50 = arith.mulf %34, %33 : vector<1x64xf32>
    %cst_27 = arith.constant dense<0.000000e+00> : vector<1x4xf32>
    %51 = tpu.matmul %50, %43, %cst_27 {dimension_numbers = #tpu.dot_dimension_numbers<[1], [0], [0], [1], [0, 0, 1, 1], [], []>} : vector<1x64xf32>, vector<64x4xf32>, vector<1x4xf32> -> vector<1x4xf32>
    %cst_28 = arith.constant 2.500000e-01 : f32
    %52 = vector.broadcast %cst_28 : f32 to vector<1x4xf32>
    %53 = arith.mulf %51, %52 : vector<1x4xf32>
    %54 = vector.shape_cast %49 : vector<32x4xf32> to vector<2x16x4xf32>
    %cst_29 = arith.constant dense<0xFF800000> : vector<2x4xf32>
    %55 = vector.multi_reduction <maximumf>, %54, %cst_29 [1] : vector<2x16x4xf32> to vector<2x4xf32>
    %56 = vector.shape_cast %55 : vector<2x4xf32> to vector<2x1x4xf32>
    %57 = vector.shape_cast %53 : vector<1x4xf32> to vector<1x1x4xf32>
    %58 = vector.broadcast %57 : vector<1x1x4xf32> to vector<2x1x4xf32>
    %59 = arith.maximumf %56, %58 : vector<2x1x4xf32>
    %60 = vector.broadcast %59 : vector<2x1x4xf32> to vector<2x16x4xf32>
    %61 = arith.subf %54, %60 : vector<2x16x4xf32>
    %62 = math.exp %61 : vector<2x16x4xf32>
    %63 = vector.shape_cast %53 : vector<1x4xf32> to vector<1x1x4xf32>
    %64 = vector.broadcast %63 : vector<1x1x4xf32> to vector<2x1x4xf32>
    %65 = arith.subf %64, %59 : vector<2x1x4xf32>
    %66 = math.exp %65 : vector<2x1x4xf32>
    %cst_30 = arith.constant dense<0.000000e+00> : vector<2x4xf32>
    %67 = vector.multi_reduction <add>, %62, %cst_30 [1] : vector<2x16x4xf32> to vector<2x4xf32>
    %68 = vector.shape_cast %67 : vector<2x4xf32> to vector<2x1x4xf32>
    %69 = arith.addf %66, %68 : vector<2x1x4xf32>
    %70 = tpu.reciprocal %69 {approx = true} : vector<2x1x4xf32> -> vector<2x1x4xf32>
    %71 = vector.broadcast %70 : vector<2x1x4xf32> to vector<2x16x4xf32>
    %72 = arith.mulf %62, %71 : vector<2x16x4xf32>
    %73 = vector.shape_cast %72 : vector<2x16x4xf32> to vector<32x4xf32>
    %74 = arith.mulf %66, %70 : vector<2x1x4xf32>
    %75 = vector.shape_cast %74 : vector<2x1x4xf32> to vector<2x4xf32>
    %cst_31 = arith.constant dense<0.000000e+00> : vector<32x64xf32>
    %76 = tpu.matmul %73, %44, %cst_31 {dimension_numbers = #tpu.dot_dimension_numbers<[1], [0], [0], [1], [0, 0, 1, 1], [], []>} : vector<32x4xf32>, vector<4x64xf32>, vector<32x64xf32> -> vector<32x64xf32>
    %77 = arith.mulf %76, %42 : vector<32x64xf32>
    %78 = vector.shape_cast %77 : vector<32x64xf32> to vector<2x16x64xf32>
    %cst_32 = arith.constant dense<0.000000e+00> : vector<2x64xf32>
    %79 = vector.multi_reduction <add>, %78, %cst_32 [1] : vector<2x16x64xf32> to vector<2x64xf32>
    %cst_33 = arith.constant dense<0.000000e+00> : vector<2x64xf32>
    %80 = tpu.matmul %75, %44, %cst_33 {dimension_numbers = #tpu.dot_dimension_numbers<[1], [0], [0], [1], [0, 0, 1, 1], [], []>} : vector<2x4xf32>, vector<4x64xf32>, vector<2x64xf32> -> vector<2x64xf32>
    %81 = vector.broadcast %35 : vector<1x64xf32> to vector<2x64xf32>
    %82 = arith.mulf %80, %81 : vector<2x64xf32>
    %83 = arith.addf %79, %82 : vector<2x64xf32>
    %84 = arith.truncf %83 : vector<2x64xf32> to vector<2x64xbf16>
    %c0_34 = arith.constant 0 : index
    %c0_35 = arith.constant 0 : index
    %85 = vector.load %arg11[%c0_34, %c0_35] : memref<64x64xbf16, #tpu.memory_space<vmem>>, vector<64x64xbf16>
    %cst_36 = arith.constant dense<0.000000e+00> : vector<2x64xf32>
    %86 = tpu.matmul %84, %85, %cst_36 {dimension_numbers = #tpu.dot_dimension_numbers<[1], [0], [0], [1], [0, 0, 1, 1], [], []>} : vector<2x64xbf16>, vector<64x64xbf16>, vector<2x64xf32> -> vector<2x64xf32>
    %c0_37 = arith.constant 0 : index
    %c0_38 = arith.constant 0 : index
    %87 = vector.load %arg12[%c0_37, %c0_38] : memref<1x64xf32, #tpu.memory_space<vmem>>, vector<1x64xf32>
    %88 = vector.broadcast %87 : vector<1x64xf32> to vector<2x64xf32>
    %89 = arith.addf %86, %88 : vector<2x64xf32>
    %90 = arith.truncf %89 : vector<2x64xf32> to vector<2x64xbf16>
    %c0_39 = arith.constant 0 : index
    %c0_40 = arith.constant 0 : index
    %91 = vector.load %arg13[%c0_39, %c0_40] : memref<64x32xbf16, #tpu.memory_space<vmem>>, vector<64x32xbf16>
    %cst_41 = arith.constant dense<0.000000e+00> : vector<2x32xf32>
    %92 = tpu.matmul %90, %91, %cst_41 {dimension_numbers = #tpu.dot_dimension_numbers<[1], [0], [0], [1], [0, 0, 1, 1], [], []>} : vector<2x64xbf16>, vector<64x32xbf16>, vector<2x32xf32> -> vector<2x32xf32>
    %c0_42 = arith.constant 0 : index
    %c0_43 = arith.constant 0 : index
    %93 = vector.load %arg14[%c0_42, %c0_43] : memref<1x32xf32, #tpu.memory_space<vmem>>, vector<1x32xf32>
    %94 = vector.broadcast %93 : vector<1x32xf32> to vector<2x32xf32>
    %95 = arith.addf %92, %94 : vector<2x32xf32>
    %cst_44 = arith.constant 5.000000e-01 : f32
    %96 = vector.broadcast %cst_44 : f32 to vector<2x32xf32>
    %97 = arith.mulf %96, %95 : vector<2x32xf32>
    %cst_45 = arith.constant 0.707106769 : f32
    %98 = vector.broadcast %cst_45 : f32 to vector<2x32xf32>
    %99 = arith.mulf %95, %98 : vector<2x32xf32>
    %100 = math.erf %99 : vector<2x32xf32>
    %cst_46 = arith.constant 1.000000e+00 : f32
    %101 = vector.broadcast %cst_46 : f32 to vector<2x32xf32>
    %102 = arith.addf %101, %100 : vector<2x32xf32>
    %103 = arith.mulf %97, %102 : vector<2x32xf32>
    %104 = arith.truncf %103 : vector<2x32xf32> to vector<2x32xbf16>
    %c0_47 = arith.constant 0 : index
    %c0_48 = arith.constant 0 : index
    %105 = vector.load %arg15[%c0_47, %c0_48] : memref<32x2xbf16, #tpu.memory_space<vmem>>, vector<32x2xbf16>
    %cst_49 = arith.constant dense<0.000000e+00> : vector<2x2xf32>
    %106 = tpu.matmul %104, %105, %cst_49 {dimension_numbers = #tpu.dot_dimension_numbers<[1], [0], [0], [1], [0, 0, 1, 1], [], []>} : vector<2x32xbf16>, vector<32x2xbf16>, vector<2x2xf32> -> vector<2x2xf32>
    %c0_50 = arith.constant 0 : index
    %c0_51 = arith.constant 0 : index
    %107 = vector.load %arg16[%c0_50, %c0_51] : memref<1x2xf32, #tpu.memory_space<vmem>>, vector<1x2xf32>
    %108 = vector.broadcast %107 : vector<1x2xf32> to vector<2x2xf32>
    %109 = arith.addf %106, %108 : vector<2x2xf32>
    %c0_52 = arith.constant 0 : index
    %c0_53 = arith.constant 0 : index
    %110 = vector.load %arg17[%c0_52, %c0_53] : memref<2x2xf32, #tpu.memory_space<vmem>>, vector<2x2xf32>
    tpu.vector_store %arg17[%c0_52, %c0_53], %109 {strides = array<i32>} : memref<2x2xf32, #tpu.memory_space<vmem>>, vector<2x2xf32>,
    return
  }
  func.func @transform_0(%arg0: i32) -> (i32, i32) {
    %c0_i32 = arith.constant 0 : i32
    %c0_i32_0 = arith.constant 0 : i32
    %c0_i32_1 = arith.constant 0 : i32
    return %c0_i32, %c0_i32_0 : i32, i32
  }
  func.func @transform_1(%arg0: i32) -> (i32, i32) {
    %c0_i32 = arith.constant 0 : i32
    %c0_i32_0 = arith.constant 0 : i32
    %c0_i32_1 = arith.constant 0 : i32
    return %c0_i32, %c0_i32_0 : i32, i32
  }
  func.func @transform_2(%arg0: i32) -> (i32, i32) {
    %c0_i32 = arith.constant 0 : i32
    %c0_i32_0 = arith.constant 0 : i32
    %c0_i32_1 = arith.constant 0 : i32
    return %c0_i32, %c0_i32_0 : i32, i32
  }
  func.func @transform_3(%arg0: i32) -> (i32, i32) {
    %c0_i32 = arith.constant 0 : i32
    %c0_i32_0 = arith.constant 0 : i32
    %c0_i32_1 = arith.constant 0 : i32
    return %c0_i32, %c0_i32_0 : i32, i32
  }
  func.func @transform_4(%arg0: i32) -> (i32, i32) {
    %c0_i32 = arith.constant 0 : i32
    %c0_i32_0 = arith.constant 0 : i32
    %c0_i32_1 = arith.constant 0 : i32
    return %c0_i32, %c0_i32_0 : i32, i32
  }
  func.func @transform_5(%arg0: i32) -> (i32, i32) {
    %c0_i32 = arith.constant 0 : i32
    %c0_i32_0 = arith.constant 0 : i32
    %c0_i32_1 = arith.constant 0 : i32
    return %c0_i32, %c0_i32_0 : i32, i32
  }
  func.func @transform_6(%arg0: i32) -> (i32, i32) {
    %c0_i32 = arith.constant 0 : i32
    %c0_i32_0 = arith.constant 0 : i32
    %c0_i32_1 = arith.constant 0 : i32
    return %c0_i32, %c0_i32_0 : i32, i32
  }
  func.func @transform_7(%arg0: i32) -> (i32, i32) {
    %c0_i32 = arith.constant 0 : i32
    %c0_i32_0 = arith.constant 0 : i32
    %c0_i32_1 = arith.constant 0 : i32
    return %c0_i32, %c0_i32_0 : i32, i32
  }
  func.func @transform_8(%arg0: i32) -> (i32, i32) {
    %c0_i32 = arith.constant 0 : i32
    %c0_i32_0 = arith.constant 0 : i32
    %c0_i32_1 = arith.constant 0 : i32
    return %c0_i32, %c0_i32_0 : i32, i32
  }
  func.func @transform_9(%arg0: i32) -> (i32, i32) {
    %c0_i32 = arith.constant 0 : i32
    %c0_i32_0 = arith.constant 0 : i32
    %c0_i32_1 = arith.constant 0 : i32
    return %c0_i32, %c0_i32_0 : i32, i32
  }
  func.func @transform_10(%arg0: i32) -> (i32, i32) {
    %c0_i32 = arith.constant 0 : i32
    %c0_i32_0 = arith.constant 0 : i32
    %c0_i32_1 = arith.constant 0 : i32
    return %c0_i32, %c0_i32_0 : i32, i32
  }
  func.func @transform_11(%arg0: i32) -> (i32, i32) {
    %c0_i32 = arith.constant 0 : i32
    %c0_i32_0 = arith.constant 0 : i32
    %c0_i32_1 = arith.constant 0 : i32
    return %c0_i32, %c0_i32_0 : i32, i32
  }
  func.func @transform_12(%arg0: i32) -> (i32, i32) {
    %c0_i32 = arith.constant 0 : i32
    %c0_i32_0 = arith.constant 0 : i32
    %c0_i32_1 = arith.constant 0 : i32
    return %c0_i32, %c0_i32_0 : i32, i32
  }
  func.func @transform_13(%arg0: i32) -> (i32, i32) {
    %c0_i32 = arith.constant 0 : i32
    %c0_i32_0 = arith.constant 0 : i32
    %c0_i32_1 = arith.constant 0 : i32
    return %c0_i32, %c0_i32_0 : i32, i32
  }
  func.func @transform_14(%arg0: i32) -> (i32, i32) {
    %c0_i32 = arith.constant 0 : i32
    %c0_i32_0 = arith.constant 0 : i32
    %c0_i32_1 = arith.constant 0 : i32
    return %c0_i32, %c0_i32_0 : i32, i32
  }
  func.func @transform_15(%arg0: i32) -> (i32, i32) {
    %c0_i32 = arith.constant 0 : i32
    %c0_i32_0 = arith.constant 0 : i32
    %c0_i32_1 = arith.constant 0 : i32
    return %c0_i32, %c0_i32_0 : i32, i32
  }
  func.func @transform_16(%arg0: i32) -> (i32, i32) {
    %c0_i32 = arith.constant 0 : i32
    %c0_i32_0 = arith.constant 0 : i32
    %c0_i32_1 = arith.constant 0 : i32
    return %c0_i32, %c0_i32_0 : i32, i32
  }
}

</mosaic_0001>

<llo_original>
// kernel: msfaet_forward.3
$region0: #{msfaet_forward.3}
  #allocation0 [shape = 'u32[]', space=smem, size = 0x4, offset = 0x4, fixed_abs, tag = 'smem constant byte address 0x4 - core index']
  #allocation1 [shape = 'u32[144,128]{1,0:T(1,128)}', space=vmem, size = 0x12000, scoped, tag = 'internal scratch']
  %s0 = inlined_call_operand.vmem [shape: bf16[128,675], index: 0, kind: input, shape index: {}]
  %s1 = inlined_call_operand.vmem [shape: bf16[675,64], index: 1, kind: input, shape index: {}]
  %s2 = inlined_call_operand.vmem [shape: f32[1,64], index: 2, kind: input, shape index: {}]
  %s3 = inlined_call_operand.vmem [shape: f32[1,64], index: 3, kind: input, shape index: {}]
  %s4 = inlined_call_operand.vmem [shape: f32[32,128], index: 4, kind: input, shape index: {}]
  %s5 = inlined_call_operand.vmem [shape: bf16[32,64], index: 5, kind: output, shape index: {}]
  %s6 = sld [smem:[#allocation0]]
  $region30: #{msfaet_forward.3} parent=0
    _
  %s8 = ssub.s32 1, %s6
  %s9 = scalar_select 0, %s8, %s6
  // Predicated region
  $region2: #{msfaet_forward.3} parent=0 // pred_check
    _
  $region3: #{msfaet_forward.3} parent=0 // pred_check_branch
    %11 = sbr.rel (0) target = $region5
  $region4: #{msfaet_forward.3} parent=0 // pred_region
    _
  $region5: #{msfaet_forward.3} parent=0 // pred_fallthru
    _
  // Predicated region
  $region6: #{msfaet_forward.3} parent=0 // pred_check
    _
  $region7: #{msfaet_forward.3} parent=0 // pred_check_branch
    %13 = sbr.rel (0) target = $region9
  $region8: #{msfaet_forward.3} parent=0 // pred_region
    _
  $region9: #{msfaet_forward.3} parent=0 // pred_fallthru
    _
  // Predicated region
  $region10: #{msfaet_forward.3} parent=0 // pred_check
    _
  $region11: #{msfaet_forward.3} parent=0 // pred_check_branch
    %15 = sbr.rel (0) target = $region13
  $region12: #{msfaet_forward.3} parent=0 // pred_region
    _
  $region13: #{msfaet_forward.3} parent=0 // pred_fallthru
    _
  // Predicated region
  $region14: #{msfaet_forward.3} parent=0 // pred_check
    _
  $region15: #{msfaet_forward.3} parent=0 // pred_check_branch
    %17 = sbr.rel (0) target = $region17
  $region16: #{msfaet_forward.3} parent=0 // pred_region
    _
  $region17: #{msfaet_forward.3} parent=0 // pred_fallthru
    _
  // Predicated region
  $region18: #{msfaet_forward.3} parent=0 // pred_check
    _
  $region19: #{msfaet_forward.3} parent=0 // pred_check_branch
    %19 = sbr.rel (0) target = $region21
  $region20: #{msfaet_forward.3} parent=0 // pred_region
    _
  $region21: #{msfaet_forward.3} parent=0 // pred_fallthru
    _
  %v21 = vld [vmem:[%s0] sm:$0xff]
  %v22 = vld [vmem:[%s0 + $0x8] sm:$0xff]
  %v23 = vld [vmem:[%s0 + $0x10] sm:$0xff]
  %v24 = vld [vmem:[%s0 + $0x18] sm:$0xff]
  %v25 = vld [vmem:[%s0 + $0x20] sm:$0xff]
  %v26 = vld [vmem:[%s0 + $0x28] sm:$0xff]
  %v27 = vld [vmem:[%s0 + $0x30] sm:$0xff]
  %v28 = vld [vmem:[%s0 + $0x38] sm:$0xff]
  %v29 = vld [vmem:[%s0 + $0x40] sm:$0xff]
  %v30 = vld [vmem:[%s0 + $0x48] sm:$0xff]
  %v31 = vld [vmem:[%s0 + $0x50] sm:$0xff]
  %v32 = vld [vmem:[%s0 + $0x58] sm:$0xff]
  %v33 = vld [vmem:[%s0 + $0x60] sm:$0xff]
  %v34 = vld [vmem:[%s0 + $0x68] sm:$0xff]
  %v35 = vld [vmem:[%s0 + $0x70] sm:$0xff]
  %v36 = vld [vmem:[%s0 + $0x78] sm:$0xff]
  %v37 = vld [vmem:[%s0 + $0x80] sm:$0xff]
  %v38 = vld [vmem:[%s0 + $0x88] sm:$0xff]
  %v39 = vld [vmem:[%s0 + $0x90] sm:$0xff]
  %v40 = vld [vmem:[%s0 + $0x98] sm:$0xff]
  %v41 = vld [vmem:[%s0 + $0xa0] sm:$0xff]
  %v42 = vld [vmem:[%s0 + $0xa8] sm:$0xff]
  %v43 = vld [vmem:[%s0 + $0xb0] sm:$0xff]
  %v44 = vld [vmem:[%s0 + $0xb8] sm:$0xff]
  %v45 = vld [vmem:[%s0 + $0xc0] sm:$0xff]
  %v46 = vld [vmem:[%s0 + $0xc8] sm:$0xff]
  %v47 = vld [vmem:[%s0 + $0xd0] sm:$0xff]
  %v48 = vld [vmem:[%s0 + $0xd8] sm:$0xff]
  %v49 = vld [vmem:[%s0 + $0xe0] sm:$0xff]
  %v50 = vld [vmem:[%s0 + $0xe8] sm:$0xff]
  %v51 = vld [vmem:[%s0 + $0xf0] sm:$0xff]
  %v52 = vld [vmem:[%s0 + $0xf8] sm:$0xff]
  %v53 = vld [vmem:[%s0 + $0x100] sm:$0xff]
  %v54 = vld [vmem:[%s0 + $0x108] sm:$0xff]
  %v55 = vld [vmem:[%s0 + $0x110] sm:$0xff]
  %v56 = vld [vmem:[%s0 + $0x118] sm:$0xff]
  %v57 = vld [vmem:[%s0 + $0x120] sm:$0xff]
  %v58 = vld [vmem:[%s0 + $0x128] sm:$0xff]
  %v59 = vld [vmem:[%s0 + $0x130] sm:$0xff]
  %v60 = vld [vmem:[%s0 + $0x138] sm:$0xff]
  %v61 = vld [vmem:[%s0 + $0x140] sm:$0xff]
  %v62 = vld [vmem:[%s0 + $0x148] sm:$0xff]
  %v63 = vld [vmem:[%s0 + $0x150] sm:$0xff]
  %v64 = vld [vmem:[%s0 + $0x158] sm:$0xff]
  %v65 = vld [vmem:[%s0 + $0x160] sm:$0xff]
  %v66 = vld [vmem:[%s0 + $0x168] sm:$0xff]
  %v67 = vld [vmem:[%s0 + $0x170] sm:$0xff]
  %v68 = vld [vmem:[%s0 + $0x178] sm:$0xff]
  %v69 = vld [vmem:[%s1] sm:$0xf]
  %v70 = vld [vmem:[%s1 + $0x4] sm:$0xf]
  %v71 = vld [vmem:[%s1 + $0x8] sm:$0xf]
  %v72 = vld [vmem:[%s1 + $0xc] sm:$0xf]
  %v73 = vld [vmem:[%s1 + $0x10] sm:$0xf]
  %v74 = vld [vmem:[%s1 + $0x14] sm:$0xf]
  %v75 = vld [vmem:[%s1 + $0x18] sm:$0xf]
  %v76 = vld [vmem:[%s1 + $0x1c] sm:$0xf]
  %v77 = vld [vmem:[%s1 + $0x20] sm:$0xf]
  %v78 = vld [vmem:[%s1 + $0x24] sm:$0xf]
  %v79 = vld [vmem:[%s1 + $0x28] sm:$0xf]
  %v80 = vld [vmem:[%s1 + $0x2c] sm:$0xf]
  %v81 = vld [vmem:[%s1 + $0x30] sm:$0xf]
  %v82 = vld [vmem:[%s1 + $0x34] sm:$0xf]
  %v83 = vld [vmem:[%s1 + $0x38] sm:$0xf]
  %v84 = vld [vmem:[%s1 + $0x3c] sm:$0xf]
  %v85 = vld [vmem:[%s1 + $0x40] sm:$0xf]
  %v86 = vld [vmem:[%s1 + $0x44] sm:$0xf]
  %v87 = vld [vmem:[%s1 + $0x48] sm:$0xf]
  %v88 = vld [vmem:[%s1 + $0x4c] sm:$0xf]
  %v89 = vld [vmem:[%s1 + $0x50] sm:$0xf]
  %v90 = vld [vmem:[%s1 + $0x54] sm:$0xf]
  %v91 = vld [vmem:[%s1 + $0x58] sm:$0xf]
  %v92 = vld [vmem:[%s1 + $0x5c] sm:$0xf]
  %v93 = vld [vmem:[%s1 + $0x60] sm:$0xf]
  %v94 = vld [vmem:[%s1 + $0x64] sm:$0xf]
  %v95 = vld [vmem:[%s1 + $0x68] sm:$0xf]
  %v96 = vld [vmem:[%s1 + $0x6c] sm:$0xf]
  %v97 = vld [vmem:[%s1 + $0x70] sm:$0xf]
  %v98 = vld [vmem:[%s1 + $0x74] sm:$0xf]
  %v99 = vld [vmem:[%s1 + $0x78] sm:$0xf]
  %v100 = vld [vmem:[%s1 + $0x7c] sm:$0xf]
  %v101 = vld [vmem:[%s1 + $0x80] sm:$0xf]
  %v102 = vld [vmem:[%s1 + $0x84] sm:$0xf]
  %v103 = vld [vmem:[%s1 + $0x88] sm:$0xf]
  %v104 = vld [vmem:[%s1 + $0x8c] sm:$0xf]
  %v105 = vld [vmem:[%s1 + $0x90] sm:$0xf]
  %v106 = vld [vmem:[%s1 + $0x94] sm:$0xf]
  %v107 = vld [vmem:[%s1 + $0x98] sm:$0xf]
  %v108 = vld [vmem:[%s1 + $0x9c] sm:$0xf]
  %v109 = vld [vmem:[%s1 + $0xa0] sm:$0xf]
  %v110 = vld [vmem:[%s1 + $0xa4] sm:$0xf]
  %v111 = vld [vmem:[%s1 + $0xa8] sm:$0xf]
  %v112 = vld [vmem:[%s1 + $0xac] sm:$0xf]
  %v113 = vld [vmem:[%s1 + $0xb0] sm:$0xf]
  %v114 = vld [vmem:[%s1 + $0xb4] sm:$0xf]
  %v115 = vld [vmem:[%s1 + $0xb8] sm:$0xf]
  %v116 = vld [vmem:[%s1 + $0xbc] sm:$0xf]
  %v117 = vld [vmem:[%s1 + $0xc0] sm:$0xf]
  %v118 = vld [vmem:[%s1 + $0xc4] sm:$0xf]
  %v119 = vld [vmem:[%s1 + $0xc8] sm:$0xf]
  %v120 = vld [vmem:[%s1 + $0xcc] sm:$0xf]
  %v121 = vld [vmem:[%s1 + $0xd0] sm:$0xf]
  %v122 = vld [vmem:[%s1 + $0xd4] sm:$0xf]
  %v123 = vld [vmem:[%s1 + $0xd8] sm:$0xf]
  %v124 = vld [vmem:[%s1 + $0xdc] sm:$0xf]
  %v125 = vld [vmem:[%s1 + $0xe0] sm:$0xf]
  %v126 = vld [vmem:[%s1 + $0xe4] sm:$0xf]
  %v127 = vld [vmem:[%s1 + $0xe8] sm:$0xf]
  %v128 = vld [vmem:[%s1 + $0xec] sm:$0xf]
  %v129 = vld [vmem:[%s1 + $0xf0] sm:$0xf]
  %v130 = vld [vmem:[%s1 + $0xf4] sm:$0xf]
  %v131 = vld [vmem:[%s1 + $0xf8] sm:$0xf]
  %v132 = vld [vmem:[%s1 + $0xfc] sm:$0xf]
  %v133 = vld [vmem:[%s1 + $0x100] sm:$0xf]
  %v134 = vld [vmem:[%s1 + $0x104] sm:$0xf]
  %v135 = vld [vmem:[%s1 + $0x108] sm:$0xf]
  %v136 = vld [vmem:[%s1 + $0x10c] sm:$0xf]
  %v137 = vld [vmem:[%s1 + $0x110] sm:$0xf]
  %v138 = vld [vmem:[%s1 + $0x114] sm:$0xf]
  %v139 = vld [vmem:[%s1 + $0x118] sm:$0xf]
  %v140 = vld [vmem:[%s1 + $0x11c] sm:$0xf]
  %v141 = vld [vmem:[%s1 + $0x120] sm:$0xf]
  %v142 = vld [vmem:[%s1 + $0x124] sm:$0xf]
  %v143 = vld [vmem:[%s1 + $0x128] sm:$0xf]
  %v144 = vld [vmem:[%s1 + $0x12c] sm:$0xf]
  %v145 = vld [vmem:[%s1 + $0x130] sm:$0xf]
  %v146 = vld [vmem:[%s1 + $0x134] sm:$0xf]
  %v147 = vld [vmem:[%s1 + $0x138] sm:$0xf]
  %v148 = vld [vmem:[%s1 + $0x13c] sm:$0xf]
  %v149 = vld [vmem:[%s1 + $0x140] sm:$0xf]
  %v150 = vld [vmem:[%s1 + $0x144] sm:$0xf]
  %v151 = vld [vmem:[%s1 + $0x148] sm:$0xf]
  %v152 = vld [vmem:[%s1 + $0x14c] sm:$0xf]
  %v153 = vld [vmem:[%s1 + $0x150] sm:$0x3]
  %v202 = vunpack.c.l.b16 %v21
  %v203 = vunpack.c.h.b16 %v21
  %v204 = vunpack.c.l.b16 %v22
  %v205 = vunpack.c.h.b16 %v22
  %v206 = vunpack.c.l.b16 %v23
  %v207 = vunpack.c.h.b16 %v23
  %v208 = vunpack.c.l.b16 %v24
  %v209 = vunpack.c.h.b16 %v24
  %v210 = vunpack.c.l.b16 %v25
  %v211 = vunpack.c.h.b16 %v25
  %v212 = vunpack.c.l.b16 %v26
  %v213 = vunpack.c.h.b16 %v26
  %v214 = vunpack.c.l.b16 %v27
  %v215 = vunpack.c.h.b16 %v27
  %v216 = vunpack.c.l.b16 %v28
  %v217 = vunpack.c.h.b16 %v28
  %v218 = vunpack.c.l.b16 %v29
  %v219 = vunpack.c.h.b16 %v29
  %v220 = vunpack.c.l.b16 %v30
  %v221 = vunpack.c.h.b16 %v30
  %v222 = vunpack.c.l.b16 %v31
  %v223 = vunpack.c.h.b16 %v31
  %v224 = vunpack.c.l.b16 %v32
  %v225 = vunpack.c.h.b16 %v32
  %v226 = vunpack.c.l.b16 %v33
  %v227 = vunpack.c.h.b16 %v33
  %v228 = vunpack.c.l.b16 %v34
  %v229 = vunpack.c.h.b16 %v34
  %v230 = vunpack.c.l.b16 %v35
  %v231 = vunpack.c.h.b16 %v35
  %v232 = vunpack.c.l.b16 %v36
  %v233 = vunpack.c.h.b16 %v36
  %v234 = vunpack.c.l.b16 %v37
  %v235 = vunpack.c.h.b16 %v37
  %v236 = vunpack.c.l.b16 %v38
  %v237 = vunpack.c.h.b16 %v38
  %v238 = vunpack.c.l.b16 %v39
  %v239 = vunpack.c.h.b16 %v39
  %v240 = vunpack.c.l.b16 %v40
  %v241 = vunpack.c.h.b16 %v40
  %v242 = vunpack.c.l.b16 %v41
  %v243 = vunpack.c.h.b16 %v41
  %v244 = vunpack.c.l.b16 %v42
  %v245 = vunpack.c.h.b16 %v42
  %v246 = vunpack.c.l.b16 %v43
  %v247 = vunpack.c.h.b16 %v43
  %v248 = vunpack.c.l.b16 %v44
  %v249 = vunpack.c.h.b16 %v44
  %v250 = vunpack.c.l.b16 %v45
  %v251 = vunpack.c.h.b16 %v45
  %v252 = vunpack.c.l.b16 %v46
  %v253 = vunpack.c.h.b16 %v46
  %v254 = vunpack.c.l.b16 %v47
  %v255 = vunpack.c.h.b16 %v47
  %v256 = vunpack.c.l.b16 %v48
  %v257 = vunpack.c.h.b16 %v48
  %v258 = vunpack.c.l.b16 %v49
  %v259 = vunpack.c.h.b16 %v49
  %v260 = vunpack.c.l.b16 %v50
  %v261 = vunpack.c.h.b16 %v50
  %v262 = vunpack.c.l.b16 %v51
  %v263 = vunpack.c.h.b16 %v51
  %v264 = vunpack.c.l.b16 %v52
  %v265 = vunpack.c.h.b16 %v52
  %v266 = vunpack.c.l.b16 %v53
  %v267 = vunpack.c.h.b16 %v53
  %v268 = vunpack.c.l.b16 %v54
  %v269 = vunpack.c.h.b16 %v54
  %v270 = vunpack.c.l.b16 %v55
  %v271 = vunpack.c.h.b16 %v55
  %v272 = vunpack.c.l.b16 %v56
  %v273 = vunpack.c.h.b16 %v56
  %v274 = vunpack.c.l.b16 %v57
  %v275 = vunpack.c.h.b16 %v57
  %v276 = vunpack.c.l.b16 %v58
  %v277 = vunpack.c.h.b16 %v58
  %v278 = vunpack.c.l.b16 %v59
  %v279 = vunpack.c.h.b16 %v59
  %v280 = vunpack.c.l.b16 %v60
  %v281 = vunpack.c.h.b16 %v60
  %v282 = vunpack.c.l.b16 %v61
  %v283 = vunpack.c.h.b16 %v61
  %v284 = vunpack.c.l.b16 %v62
  %v285 = vunpack.c.h.b16 %v62
  %v286 = vunpack.c.l.b16 %v63
  %v287 = vunpack.c.h.b16 %v63
  %v288 = vunpack.c.l.b16 %v64
  %v289 = vunpack.c.h.b16 %v64
  %v290 = vunpack.c.l.b16 %v65
  %v291 = vunpack.c.h.b16 %v65
  %v292 = vunpack.c.l.b16 %v66
  %v293 = vunpack.c.h.b16 %v66
  %v294 = vunpack.c.l.b16 %v67
  %v295 = vunpack.c.h.b16 %v67
  %v296 = vunpack.c.l.b16 %v68
  %v297 = vunpack.c.h.b16 %v68
  %v298 = vpack.c.b16 %v208, %v202
  %v299 = vpack.c.b16 %v209, %v203
  %v300 = vpack.c.b16 %v210, %v204
  %v301 = vpack.c.b16 %v211, %v205
  %v302 = vpack.c.b16 %v212, %v206
  %v303 = vpack.c.b16 %v213, %v207
  %v304 = vpack.c.b16 %v220, %v214
  %v305 = vpack.c.b16 %v221, %v215
  %v306 = vpack.c.b16 %v222, %v216
  %v307 = vpack.c.b16 %v223, %v217
  %v308 = vpack.c.b16 %v224, %v218
  %v309 = vpack.c.b16 %v225, %v219
  %v310 = vpack.c.b16 %v232, %v226
  %v311 = vpack.c.b16 %v233, %v227
  %v312 = vpack.c.b16 %v234, %v228
  %v313 = vpack.c.b16 %v235, %v229
  %v314 = vpack.c.b16 %v236, %v230
  %v315 = vpack.c.b16 %v237, %v231
  %v316 = vpack.c.b16 %v244, %v238
  %v317 = vpack.c.b16 %v245, %v239
  %v318 = vpack.c.b16 %v246, %v240
  %v319 = vpack.c.b16 %v247, %v241
  %v320 = vpack.c.b16 %v248, %v242
  %v321 = vpack.c.b16 %v249, %v243
  %v322 = vpack.c.b16 %v256, %v250
  %v323 = vpack.c.b16 %v257, %v251
  %v324 = vpack.c.b16 %v258, %v252
  %v325 = vpack.c.b16 %v259, %v253
  %v326 = vpack.c.b16 %v260, %v254
  %v327 = vpack.c.b16 %v261, %v255
  %v328 = vpack.c.b16 %v268, %v262
  %v329 = vpack.c.b16 %v269, %v263
  %v330 = vpack.c.b16 %v270, %v264
  %v331 = vpack.c.b16 %v271, %v265
  %v332 = vpack.c.b16 %v272, %v266
  %v333 = vpack.c.b16 %v273, %v267
  %v334 = vpack.c.b16 %v280, %v274
  %v335 = vpack.c.b16 %v281, %v275
  %v336 = vpack.c.b16 %v282, %v276
  %v337 = vpack.c.b16 %v283, %v277
  %v338 = vpack.c.b16 %v284, %v278
  %v339 = vpack.c.b16 %v285, %v279
  %v340 = vpack.c.b16 %v292, %v286
  %v341 = vpack.c.b16 %v293, %v287
  %v342 = vpack.c.b16 %v294, %v288
  %v343 = vpack.c.b16 %v295, %v289
  %v344 = vpack.c.b16 %v296, %v290
  %v345 = vpack.c.b16 %v297, %v291
  %v471 = vunpack.c.l.b16 %v69
  %v472 = vunpack.c.l.b16 %v70
  %v473 = vunpack.c.l.b16 %v71
  %v474 = vunpack.c.l.b16 %v72
  %v475 = vunpack.c.l.b16 %v73
  %v476 = vunpack.c.l.b16 %v74
  %v477 = vunpack.c.l.b16 %v75
  %v478 = vunpack.c.l.b16 %v76
  %v479 = vunpack.c.l.b16 %v77
  %v480 = vunpack.c.l.b16 %v78
  %v481 = vunpack.c.l.b16 %v79
  %v482 = vunpack.c.l.b16 %v80
  %v483 = vunpack.c.l.b16 %v81
  %v484 = vunpack.c.l.b16 %v82
  %v485 = vunpack.c.l.b16 %v83
  %v486 = vunpack.c.l.b16 %v84
  %v487 = vunpack.c.l.b16 %v85
  %v488 = vunpack.c.l.b16 %v86
  %v489 = vunpack.c.l.b16 %v87
  %v490 = vunpack.c.l.b16 %v88
  %v491 = vunpack.c.l.b16 %v89
  %v492 = vunpack.c.l.b16 %v90
  %v493 = vunpack.c.l.b16 %v91
  %v494 = vunpack.c.l.b16 %v92
  %v495 = vunpack.c.l.b16 %v93
  %v496 = vunpack.c.l.b16 %v94
  %v497 = vunpack.c.l.b16 %v95
  %v498 = vunpack.c.l.b16 %v96
  %v499 = vunpack.c.l.b16 %v97
  %v500 = vunpack.c.l.b16 %v98
  %v501 = vunpack.c.l.b16 %v99
  %v502 = vunpack.c.l.b16 %v100
  %v503 = vunpack.c.l.b16 %v101
  %v504 = vunpack.c.l.b16 %v102
  %v505 = vunpack.c.l.b16 %v103
  %v506 = vunpack.c.l.b16 %v104
  %v507 = vunpack.c.l.b16 %v105
  %v508 = vunpack.c.l.b16 %v106
  %v509 = vunpack.c.l.b16 %v107
  %v510 = vunpack.c.l.b16 %v108
  %v511 = vunpack.c.l.b16 %v109
  %v512 = vunpack.c.l.b16 %v110
  %v513 = vunpack.c.l.b16 %v111
  %v514 = vunpack.c.l.b16 %v112
  %v515 = vunpack.c.l.b16 %v113
  %v516 = vunpack.c.l.b16 %v114
  %v517 = vunpack.c.l.b16 %v115
  %v518 = vunpack.c.l.b16 %v116
  %v519 = vunpack.c.l.b16 %v117
  %v520 = vunpack.c.l.b16 %v118
  %v521 = vunpack.c.l.b16 %v119
  %v522 = vunpack.c.l.b16 %v120
  %v523 = vunpack.c.l.b16 %v121
  %v524 = vunpack.c.l.b16 %v122
  %v525 = vunpack.c.l.b16 %v123
  %v526 = vunpack.c.l.b16 %v124
  %v527 = vunpack.c.l.b16 %v125
  %v528 = vunpack.c.l.b16 %v126
  %v529 = vunpack.c.l.b16 %v127
  %v530 = vunpack.c.l.b16 %v128
  %v531 = vunpack.c.l.b16 %v129
  %v532 = vunpack.c.l.b16 %v130
  %v533 = vunpack.c.l.b16 %v131
  %v534 = vunpack.c.l.b16 %v132
  %v535 = vunpack.c.l.b16 %v133
  %v536 = vunpack.c.l.b16 %v134
  %v537 = vunpack.c.l.b16 %v135
  %v538 = vunpack.c.l.b16 %v136
  %v539 = vunpack.c.l.b16 %v137
  %v540 = vunpack.c.l.b16 %v138
  %v541 = vunpack.c.l.b16 %v139
  %v542 = vunpack.c.l.b16 %v140
  %v543 = vunpack.c.l.b16 %v141
  %v544 = vunpack.c.l.b16 %v142
  %v545 = vunpack.c.l.b16 %v143
  %v546 = vunpack.c.l.b16 %v144
  %v547 = vunpack.c.l.b16 %v145
  %v548 = vunpack.c.l.b16 %v146
  %v549 = vunpack.c.l.b16 %v147
  %v550 = vunpack.c.l.b16 %v148
  %v551 = vunpack.c.l.b16 %v149
  %v552 = vunpack.c.l.b16 %v150
  %v553 = vunpack.c.l.b16 %v151
  %v554 = vunpack.c.l.b16 %v152
  %v555 = vunpack.c.l.b16 %v153
  %v556 = vpack.c.b16 %v472, %v471
  %v557 = vpack.c.b16 %v474, %v473
  %v558 = vpack.c.b16 %v476, %v475
  %v559 = vpack.c.b16 %v478, %v477
  %v560 = vpack.c.b16 %v480, %v479
  %v561 = vpack.c.b16 %v482, %v481
  %v562 = vpack.c.b16 %v484, %v483
  %v563 = vpack.c.b16 %v486, %v485
  %v564 = vpack.c.b16 %v488, %v487
  %v565 = vpack.c.b16 %v490, %v489
  %v566 = vpack.c.b16 %v492, %v491
  %v567 = vpack.c.b16 %v494, %v493
  %v568 = vpack.c.b16 %v496, %v495
  %v569 = vpack.c.b16 %v498, %v497
  %v570 = vpack.c.b16 %v500, %v499
  %v571 = vpack.c.b16 %v502, %v501
  %v572 = vpack.c.b16 %v504, %v503
  %v573 = vpack.c.b16 %v506, %v505
  %v574 = vpack.c.b16 %v508, %v507
  %v575 = vpack.c.b16 %v510, %v509
  %v576 = vpack.c.b16 %v512, %v511
  %v577 = vpack.c.b16 %v514, %v513
  %v578 = vpack.c.b16 %v516, %v515
  %v579 = vpack.c.b16 %v518, %v517
  %v580 = vpack.c.b16 %v520, %v519
  %v581 = vpack.c.b16 %v522, %v521
  %v582 = vpack.c.b16 %v524, %v523
  %v583 = vpack.c.b16 %v526, %v525
  %v584 = vpack.c.b16 %v528, %v527
  %v585 = vpack.c.b16 %v530, %v529
  %v586 = vpack.c.b16 %v532, %v531
  %v587 = vpack.c.b16 %v534, %v533
  %v588 = vpack.c.b16 %v536, %v535
  %v589 = vpack.c.b16 %v538, %v537
  %v590 = vpack.c.b16 %v540, %v539
  %v591 = vpack.c.b16 %v542, %v541
  %v592 = vpack.c.b16 %v544, %v543
  %v593 = vpack.c.b16 %v546, %v545
  %v594 = vpack.c.b16 %v548, %v547
  %v595 = vpack.c.b16 %v550, %v549
  %v596 = vpack.c.b16 %v552, %v551
  %v597 = vpack.c.b16 %v554, %v553
  %v598 = vpack.c.b16 %v555, %v555
  %vm641 = vcmask 285696
  %v643 = vsel %vm641, %v303, 0
  %v646 = vsel %vm641, %v309, 0
  %v649 = vsel %vm641, %v315, 0
  %v652 = vsel %vm641, %v321, 0
  %v655 = vsel %vm641, %v327, 0
  %v658 = vsel %vm641, %v333, 0
  %v661 = vsel %vm641, %v339, 0
  %v664 = vsel %vm641, %v345, 0
  %vm666 = vcmask 1040384
  %vm667 = vcmask 1041408
  %v668 = vsel %vm666, 4294967295, 65535
  %v669 = vsel %vm667, %v668, 0
  %v671 = vand.u32 %v598, %v669
  %673 = vmatprep.subr.bf16.mxu0 0
  %674 = vmatpush1.bf16.msra.mxu0 %v556
  %675 = vmatprep.subr.bf16.mxu0 0
  %676 = vmatpush1.bf16.msra.mxu0 %v557
  %677 = vmatprep.subr.bf16.mxu0 0
  %678 = vmatpush1.bf16.msra.mxu0 %v558
  %679 = vmatprep.subr.bf16.mxu0 0
  %680 = vmatpush1.bf16.msra.mxu0 %v559
  %681 = vmatprep.subr.bf16.mxu0 0
  %682 = vmatpush1.bf16.msra.mxu0 %v560
  %683 = vmatprep.subr.bf16.mxu0 0
  %684 = vmatpush1.bf16.msra.mxu0 %v561
  %685 = vmatprep.subr.bf16.mxu0 0
  %686 = vmatpush1.bf16.msra.mxu0 %v562
  %687 = vmatprep.subr.bf16.mxu0 0
  %688 = vmatpush1.bf16.msra.mxu0 %v563
  %689 = vmatprep.subr.bf16.mxu0 0
  %690 = vmatpush1.bf16.msra.mxu0 %v564
  %691 = vmatprep.subr.bf16.mxu0 0
  %692 = vmatpush1.bf16.msra.mxu0 %v565
  %693 = vmatprep.subr.bf16.mxu0 0
  %694 = vmatpush1.bf16.msra.mxu0 %v566
  %695 = vmatprep.subr.bf16.mxu0 0
  %696 = vmatpush1.bf16.msra.mxu0 %v567
  %697 = vmatprep.subr.bf16.mxu0 0
  %698 = vmatpush1.bf16.msra.mxu0 %v568
  %699 = vmatprep.subr.bf16.mxu0 0
  %700 = vmatpush1.bf16.msra.mxu0 %v569
  %701 = vmatprep.subr.bf16.mxu0 0
  %702 = vmatpush1.bf16.msra.mxu0 %v570
  %703 = vmatprep.subr.bf16.mxu0 0
  %704 = vmatpush1.bf16.msra.mxu0 %v571
  %705 = vmatprep.mubr.bf16.mxu0 %v299
  %706 = vmatmul.mubr.bf16.gmra.mrb[0].mxu0 %v298
  %v707 = vpop.f32.mrb[0].mxu0
  %v708 = vadd.f32 0.0, %v707
  %v709 = vpop.f32.mrb[0].mxu0
  %v710 = vpop.f32.mrb[0].mxu0
  %v711 = vadd.f32 0.0, %v710
  %v712 = vpop.f32.mrb[0].mxu0
  %713 = vmatprep.mubr.bf16.mxu0 %v305
  %714 = vmatmul.mubr.bf16.gmra.mrb[0].mxu0 %v304
  %v715 = vpop.f32.mrb[0].mxu0
  %v716 = vadd.f32 0.0, %v715
  %v717 = vpop.f32.mrb[0].mxu0
  %v718 = vpop.f32.mrb[0].mxu0
  %v719 = vadd.f32 0.0, %v718
  %v720 = vpop.f32.mrb[0].mxu0
  %721 = vmatprep.mubr.bf16.mxu0 %v311
  %722 = vmatmul.mubr.bf16.gmra.mrb[0].mxu0 %v310
  %v723 = vpop.f32.mrb[0].mxu0
  %v724 = vadd.f32 0.0, %v723
  %v725 = vpop.f32.mrb[0].mxu0
  %v726 = vpop.f32.mrb[0].mxu0
  %v727 = vadd.f32 0.0, %v726
  %v728 = vpop.f32.mrb[0].mxu0
  %729 = vmatprep.mubr.bf16.mxu0 %v317
  %730 = vmatmul.mubr.bf16.gmra.mrb[0].mxu0 %v316
  %v731 = vpop.f32.mrb[0].mxu0
  %v732 = vadd.f32 0.0, %v731
  %v733 = vpop.f32.mrb[0].mxu0
  %v734 = vpop.f32.mrb[0].mxu0
  %v735 = vadd.f32 0.0, %v734
  %v736 = vpop.f32.mrb[0].mxu0
  %737 = vmatprep.mubr.bf16.mxu0 %v323
  %738 = vmatmul.mubr.bf16.gmra.mrb[0].mxu0 %v322
  %v739 = vpop.f32.mrb[0].mxu0
  %v740 = vadd.f32 0.0, %v739
  %v741 = vpop.f32.mrb[0].mxu0
  %v742 = vpop.f32.mrb[0].mxu0
  %v743 = vadd.f32 0.0, %v742
  %v744 = vpop.f32.mrb[0].mxu0
  %745 = vmatprep.mubr.bf16.mxu0 %v329
  %746 = vmatmul.mubr.bf16.gmra.mrb[0].mxu0 %v328
  %v747 = vpop.f32.mrb[0].mxu0
  %v748 = vadd.f32 0.0, %v747
  %v749 = vpop.f32.mrb[0].mxu0
  %v750 = vpop.f32.mrb[0].mxu0
  %v751 = vadd.f32 0.0, %v750
  %v752 = vpop.f32.mrb[0].mxu0
  %753 = vmatprep.mubr.bf16.mxu0 %v335
  %754 = vmatmul.mubr.bf16.gmra.mrb[0].mxu0 %v334
  %v755 = vpop.f32.mrb[0].mxu0
  %v756 = vadd.f32 0.0, %v755
  %v757 = vpop.f32.mrb[0].mxu0
  %v758 = vpop.f32.mrb[0].mxu0
  %v759 = vadd.f32 0.0, %v758
  %v760 = vpop.f32.mrb[0].mxu0
  %761 = vmatprep.mubr.bf16.mxu0 %v341
  %762 = vmatmul.mubr.bf16.gmra.mrb[0].mxu0 %v340
  %v763 = vpop.f32.mrb[0].mxu0
  %v764 = vadd.f32 0.0, %v763
  %v765 = vpop.f32.mrb[0].mxu0
  %v766 = vpop.f32.mrb[0].mxu0
  %v767 = vadd.f32 0.0, %v766
  %v768 = vpop.f32.mrb[0].mxu0
  %769 = vdwg.mxu0
  %770 = vmatprep.subr.bf16.mxu0 0
  %771 = vmatpush1.bf16.msra.mxu0 %v572
  %772 = vmatprep.subr.bf16.mxu0 0
  %773 = vmatpush1.bf16.msra.mxu0 %v573
  %774 = vmatprep.subr.bf16.mxu0 0
  %775 = vmatpush1.bf16.msra.mxu0 %v574
  %776 = vmatprep.subr.bf16.mxu0 0
  %777 = vmatpush1.bf16.msra.mxu0 %v575
  %778 = vmatprep.subr.bf16.mxu0 0
  %779 = vmatpush1.bf16.msra.mxu0 %v576
  %780 = vmatprep.subr.bf16.mxu0 0
  %781 = vmatpush1.bf16.msra.mxu0 %v577
  %782 = vmatprep.subr.bf16.mxu0 0
  %783 = vmatpush1.bf16.msra.mxu0 %v578
  %784 = vmatprep.subr.bf16.mxu0 0
  %785 = vmatpush1.bf16.msra.mxu0 %v579
  %786 = vmatprep.subr.bf16.mxu0 0
  %787 = vmatpush1.bf16.msra.mxu0 %v580
  %788 = vmatprep.subr.bf16.mxu0 0
  %789 = vmatpush1.bf16.msra.mxu0 %v581
  %790 = vmatprep.subr.bf16.mxu0 0
  %791 = vmatpush1.bf16.msra.mxu0 %v582
  %792 = vmatprep.subr.bf16.mxu0 0
  %793 = vmatpush1.bf16.msra.mxu0 %v583
  %794 = vmatprep.subr.bf16.mxu0 0
  %795 = vmatpush1.bf16.msra.mxu0 %v584
  %796 = vmatprep.subr.bf16.mxu0 0
  %797 = vmatpush1.bf16.msra.mxu0 %v585
  %798 = vmatprep.subr.bf16.mxu0 0
  %799 = vmatpush1.bf16.msra.mxu0 %v586
  %800 = vmatprep.subr.bf16.mxu0 0
  %801 = vmatpush1.bf16.msra.mxu0 %v587
  %802 = vmatprep.mubr.bf16.mxu0 %v301
  %803 = vmatmul.mubr.bf16.gmra.mrb[0].mxu0 %v300
  %v804 = vpop.f32.mrb[0].mxu0
  %v805 = vadd.f32 %v708, %v804
  %v806 = vpop.f32.mrb[0].mxu0
  %v807 = vpop.f32.mrb[0].mxu0
  %v808 = vadd.f32 %v711, %v807
  %v809 = vpop.f32.mrb[0].mxu0
  %810 = vmatprep.mubr.bf16.mxu0 %v307
  %811 = vmatmul.mubr.bf16.gmra.mrb[0].mxu0 %v306
  %v812 = vpop.f32.mrb[0].mxu0
  %v813 = vadd.f32 %v716, %v812
  %v814 = vpop.f32.mrb[0].mxu0
  %v815 = vpop.f32.mrb[0].mxu0
  %v816 = vadd.f32 %v719, %v815
  %v817 = vpop.f32.mrb[0].mxu0
  %818 = vmatprep.mubr.bf16.mxu0 %v313
  %819 = vmatmul.mubr.bf16.gmra.mrb[0].mxu0 %v312
  %v820 = vpop.f32.mrb[0].mxu0
  %v821 = vadd.f32 %v724, %v820
  %v822 = vpop.f32.mrb[0].mxu0
  %v823 = vpop.f32.mrb[0].mxu0
  %v824 = vadd.f32 %v727, %v823
  %v825 = vpop.f32.mrb[0].mxu0
  %826 = vmatprep.mubr.bf16.mxu0 %v319
  %827 = vmatmul.mubr.bf16.gmra.mrb[0].mxu0 %v318
  %v828 = vpop.f32.mrb[0].mxu0
  %v829 = vadd.f32 %v732, %v828
  %v830 = vpop.f32.mrb[0].mxu0
  %v831 = vpop.f32.mrb[0].mxu0
  %v832 = vadd.f32 %v735, %v831
  %v833 = vpop.f32.mrb[0].mxu0
  %834 = vmatprep.mubr.bf16.mxu0 %v325
  %835 = vmatmul.mubr.bf16.gmra.mrb[0].mxu0 %v324
  %v836 = vpop.f32.mrb[0].mxu0
  %v837 = vadd.f32 %v740, %v836
  %v838 = vpop.f32.mrb[0].mxu0
  %v839 = vpop.f32.mrb[0].mxu0
  %v840 = vadd.f32 %v743, %v839
  %v841 = vpop.f32.mrb[0].mxu0
  %842 = vmatprep.mubr.bf16.mxu0 %v331
  %843 = vmatmul.mubr.bf16.gmra.mrb[0].mxu0 %v330
  %v844 = vpop.f32.mrb[0].mxu0
  %v845 = vadd.f32 %v748, %v844
  %v846 = vpop.f32.mrb[0].mxu0
  %v847 = vpop.f32.mrb[0].mxu0
  %v848 = vadd.f32 %v751, %v847
  %v849 = vpop.f32.mrb[0].mxu0
  %850 = vmatprep.mubr.bf16.mxu0 %v337
  %851 = vmatmul.mubr.bf16.gmra.mrb[0].mxu0 %v336
  %v852 = vpop.f32.mrb[0].mxu0
  %v853 = vadd.f32 %v756, %v852
  %v854 = vpop.f32.mrb[0].mxu0
  %v855 = vpop.f32.mrb[0].mxu0
  %v856 = vadd.f32 %v759, %v855
  %v857 = vpop.f32.mrb[0].mxu0
  %858 = vmatprep.mubr.bf16.mxu0 %v343
  %859 = vmatmul.mubr.bf16.gmra.mrb[0].mxu0 %v342
  %v860 = vpop.f32.mrb[0].mxu0
  %v861 = vadd.f32 %v764, %v860
  %v862 = vpop.f32.mrb[0].mxu0
  %v863 = vpop.f32.mrb[0].mxu0
  %v864 = vadd.f32 %v767, %v863
  %v865 = vpop.f32.mrb[0].mxu0
  %866 = vdwg.mxu0
  %867 = vmatprep.subr.bf16.mxu0 0
  %868 = vmatpush1.bf16.msra.mxu0 %v588
  %869 = vmatprep.subr.bf16.mxu0 0
  %870 = vmatpush1.bf16.msra.mxu0 %v589
  %871 = vmatprep.subr.bf16.mxu0 0
  %872 = vmatpush1.bf16.msra.mxu0 %v590
  %873 = vmatprep.subr.bf16.mxu0 0
  %874 = vmatpush1.bf16.msra.mxu0 %v591
  %875 = vmatprep.subr.bf16.mxu0 0
  %876 = vmatpush1.bf16.msra.mxu0 %v592
  %877 = vmatprep.subr.bf16.mxu0 0
  %878 = vmatpush1.bf16.msra.mxu0 %v593
  %879 = vmatprep.subr.bf16.mxu0 0
  %880 = vmatpush1.bf16.msra.mxu0 %v594
  %881 = vmatprep.subr.bf16.mxu0 0
  %882 = vmatpush1.bf16.msra.mxu0 %v595
  %883 = vmatprep.subr.bf16.mxu0 0
  %884 = vmatpush1.bf16.msra.mxu0 %v596
  %885 = vmatprep.subr.bf16.mxu0 0
  %886 = vmatpush1.bf16.msra.mxu0 %v597
  %887 = vmatprep.subr.bf16.mxu0 0
  %888 = vmatpush1.bf16.msra.mxu0 %v671
  %889 = vmatprep.subr.bf16.mxu0 0
  %890 = vmatpush1.bf16.msra.mxu0 0
  %891 = vmatprep.subr.bf16.mxu0 0
  %892 = vmatpush1.bf16.msra.mxu0 0
  %893 = vmatprep.subr.bf16.mxu0 0
  %894 = vmatpush1.bf16.msra.mxu0 0
  %895 = vmatprep.subr.bf16.mxu0 0
  %896 = vmatpush1.bf16.msra.mxu0 0
  %897 = vmatprep.subr.bf16.mxu0 0
  %898 = vmatpush1.bf16.msra.mxu0 0
  %899 = vmatprep.mubr.bf16.mxu0 %v643
  %900 = vmatmul.mubr.bf16.gmra.mrb[0].mxu0 %v302
  %v901 = vpop.f32.mrb[0].mxu0
  %v902 = vadd.f32 %v805, %v901
  %v903 = vpop.f32.mrb[0].mxu0
  %v904 = vpop.f32.mrb[0].mxu0
  %v905 = vadd.f32 %v808, %v904
  %v906 = vpop.f32.mrb[0].mxu0
  %907 = vmatprep.mubr.bf16.mxu0 %v646
  %908 = vmatmul.mubr.bf16.gmra.mrb[0].mxu0 %v308
  %v909 = vpop.f32.mrb[0].mxu0
  %v910 = vadd.f32 %v813, %v909
  %v911 = vpop.f32.mrb[0].mxu0
  %v912 = vpop.f32.mrb[0].mxu0
  %v913 = vadd.f32 %v816, %v912
  %v914 = vpop.f32.mrb[0].mxu0
  %915 = vmatprep.mubr.bf16.mxu0 %v649
  %916 = vmatmul.mubr.bf16.gmra.mrb[0].mxu0 %v314
  %v917 = vpop.f32.mrb[0].mxu0
  %v918 = vadd.f32 %v821, %v917
  %v919 = vpop.f32.mrb[0].mxu0
  %v920 = vpop.f32.mrb[0].mxu0
  %v921 = vadd.f32 %v824, %v920
  %v922 = vpop.f32.mrb[0].mxu0
  %923 = vmatprep.mubr.bf16.mxu0 %v652
  %924 = vmatmul.mubr.bf16.gmra.mrb[0].mxu0 %v320
  %v925 = vpop.f32.mrb[0].mxu0
  %v926 = vadd.f32 %v829, %v925
  %v927 = vpop.f32.mrb[0].mxu0
  %v928 = vpop.f32.mrb[0].mxu0
  %v929 = vadd.f32 %v832, %v928
  %v930 = vpop.f32.mrb[0].mxu0
  %931 = vmatprep.mubr.bf16.mxu0 %v655
  %932 = vmatmul.mubr.bf16.gmra.mrb[0].mxu0 %v326
  %v933 = vpop.f32.mrb[0].mxu0
  %v934 = vadd.f32 %v837, %v933
  %v935 = vpop.f32.mrb[0].mxu0
  %v936 = vpop.f32.mrb[0].mxu0
  %v937 = vadd.f32 %v840, %v936
  %v938 = vpop.f32.mrb[0].mxu0
  %939 = vmatprep.mubr.bf16.mxu0 %v658
  %940 = vmatmul.mubr.bf16.gmra.mrb[0].mxu0 %v332
  %v941 = vpop.f32.mrb[0].mxu0
  %v942 = vadd.f32 %v845, %v941
  %v943 = vpop.f32.mrb[0].mxu0
  %v944 = vpop.f32.mrb[0].mxu0
  %v945 = vadd.f32 %v848, %v944
  %v946 = vpop.f32.mrb[0].mxu0
  %947 = vmatprep.mubr.bf16.mxu0 %v661
  %948 = vmatmul.mubr.bf16.gmra.mrb[0].mxu0 %v338
  %v949 = vpop.f32.mrb[0].mxu0
  %v950 = vadd.f32 %v853, %v949
  %v951 = vpop.f32.mrb[0].mxu0
  %v952 = vpop.f32.mrb[0].mxu0
  %v953 = vadd.f32 %v856, %v952
  %v954 = vpop.f32.mrb[0].mxu0
  %955 = vmatprep.mubr.bf16.mxu0 %v664
  %956 = vmatmul.mubr.bf16.gmra.mrb[0].mxu0 %v344
  %v957 = vpop.f32.mrb[0].mxu0
  %v958 = vadd.f32 %v861, %v957
  %v959 = vpop.f32.mrb[0].mxu0
  %v960 = vpop.f32.mrb[0].mxu0
  %v961 = vadd.f32 %v864, %v960
  %v962 = vpop.f32.mrb[0].mxu0
  %963 = vdwg.mxu0
  %v964 = vld [vmem:[%s2] sm:$0x1]
  %v966 = vlaneseq
  %v967 = vshrl.u32 %v966, 7
  %v968 = vsub.s32 0, %v967
  %v969 = vrot.slane %v964, %v968
  %v971 = vmul.f32 %v902, %v969
  %v972 = vmul.f32 %v905, %v969
  %v973 = vmul.f32 %v910, %v969
  %v974 = vmul.f32 %v913, %v969
  %v975 = vmul.f32 %v918, %v969
  %v976 = vmul.f32 %v921, %v969
  %v977 = vmul.f32 %v926, %v969
  %v978 = vmul.f32 %v929, %v969
  %v979 = vmul.f32 %v934, %v969
  %v980 = vmul.f32 %v937, %v969
  %v981 = vmul.f32 %v942, %v969
  %v982 = vmul.f32 %v945, %v969
  %v983 = vmul.f32 %v950, %v969
  %v984 = vmul.f32 %v953, %v969
  %v985 = vmul.f32 %v958, %v969
  %v986 = vmul.f32 %v961, %v969
  %v987 = vld [vmem:[%s3] sm:$0x1]
  %v989 = vlaneseq
  %v990 = vshrl.u32 %v989, 7
  %v991 = vsub.s32 0, %v990
  %v992 = vrot.slane %v987, %v991
  %v994 = vadd.f32 %v971, %v992
  %v995 = vadd.f32 %v972, %v992
  %v996 = vadd.f32 %v973, %v992
  %v997 = vadd.f32 %v974, %v992
  %v998 = vadd.f32 %v975, %v992
  %v999 = vadd.f32 %v976, %v992
  %v1000 = vadd.f32 %v977, %v992
  %v1001 = vadd.f32 %v978, %v992
  %v1002 = vadd.f32 %v979, %v992
  %v1003 = vadd.f32 %v980, %v992
  %v1004 = vadd.f32 %v981, %v992
  %v1005 = vadd.f32 %v982, %v992
  %v1006 = vadd.f32 %v983, %v992
  %v1007 = vadd.f32 %v984, %v992
  %v1008 = vadd.f32 %v985, %v992
  %v1009 = vadd.f32 %v986, %v992
  %v1010 = vmul.f32 %v994, 0.5
  %v1011 = vmul.f32 %v995, 0.5
  %v1012 = vmul.f32 %v996, 0.5
  %v1013 = vmul.f32 %v997, 0.5
  %v1014 = vmul.f32 %v998, 0.5
  %v1015 = vmul.f32 %v999, 0.5
  %v1016 = vmul.f32 %v1000, 0.5
  %v1017 = vmul.f32 %v1001, 0.5
  %v1018 = vmul.f32 %v1002, 0.5
  %v1019 = vmul.f32 %v1003, 0.5
  %v1020 = vmul.f32 %v1004, 0.5
  %v1021 = vmul.f32 %v1005, 0.5
  %v1022 = vmul.f32 %v1006, 0.5
  %v1023 = vmul.f32 %v1007, 0.5
  %v1024 = vmul.f32 %v1008, 0.5
  %v1025 = vmul.f32 %v1009, 0.5
  %v1026 = vmul.f32 %v994, 0.70710677
  %v1027 = vmul.f32 %v995, 0.70710677
  %v1028 = vmul.f32 %v996, 0.70710677
  %v1029 = vmul.f32 %v997, 0.70710677
  %v1030 = vmul.f32 %v998, 0.70710677
  %v1031 = vmul.f32 %v999, 0.70710677
  %v1032 = vmul.f32 %v1000, 0.70710677
  %v1033 = vmul.f32 %v1001, 0.70710677
  %v1034 = vmul.f32 %v1002, 0.70710677
  %v1035 = vmul.f32 %v1003, 0.70710677
  %v1036 = vmul.f32 %v1004, 0.70710677
  %v1037 = vmul.f32 %v1005, 0.70710677
  %v1038 = vmul.f32 %v1006, 0.70710677
  %v1039 = vmul.f32 %v1007, 0.70710677
  %v1040 = vmul.f32 %v1008, 0.70710677
  %v1041 = vmul.f32 %v1009, 0.70710677
  %v1042 = verf.f32.pop %v1026
  %v1043 = verf.f32.pop %v1027
  %v1044 = verf.f32.pop %v1028
  %v1045 = verf.f32.pop %v1029
  %v1046 = verf.f32.pop %v1030
  %v1047 = verf.f32.pop %v1031
  %v1048 = verf.f32.pop %v1032
  %v1049 = verf.f32.pop %v1033
  %v1050 = verf.f32.pop %v1034
  %v1051 = verf.f32.pop %v1035
  %v1052 = verf.f32.pop %v1036
  %v1053 = verf.f32.pop %v1037
  %v1054 = verf.f32.pop %v1038
  %v1055 = verf.f32.pop %v1039
  %v1056 = verf.f32.pop %v1040
  %v1057 = verf.f32.pop %v1041
  %v1058 = vadd.f32 %v1042, 1.0
  %v1059 = vadd.f32 %v1043, 1.0
  %v1060 = vadd.f32 %v1044, 1.0
  %v1061 = vadd.f32 %v1045, 1.0
  %v1062 = vadd.f32 %v1046, 1.0
  %v1063 = vadd.f32 %v1047, 1.0
  %v1064 = vadd.f32 %v1048, 1.0
  %v1065 = vadd.f32 %v1049, 1.0
  %v1066 = vadd.f32 %v1050, 1.0
  %v1067 = vadd.f32 %v1051, 1.0
  %v1068 = vadd.f32 %v1052, 1.0
  %v1069 = vadd.f32 %v1053, 1.0
  %v1070 = vadd.f32 %v1054, 1.0
  %v1071 = vadd.f32 %v1055, 1.0
  %v1072 = vadd.f32 %v1056, 1.0
  %v1073 = vadd.f32 %v1057, 1.0
  %v1074 = vmul.f32 %v1010, %v1058
  %v1075 = vmul.f32 %v1011, %v1059
  %v1076 = vmul.f32 %v1012, %v1060
  %v1077 = vmul.f32 %v1013, %v1061
  %v1078 = vmul.f32 %v1014, %v1062
  %v1079 = vmul.f32 %v1015, %v1063
  %v1080 = vmul.f32 %v1016, %v1064
  %v1081 = vmul.f32 %v1017, %v1065
  %v1082 = vmul.f32 %v1018, %v1066
  %v1083 = vmul.f32 %v1019, %v1067
  %v1084 = vmul.f32 %v1020, %v1068
  %v1085 = vmul.f32 %v1021, %v1069
  %v1086 = vmul.f32 %v1022, %v1070
  %v1087 = vmul.f32 %v1023, %v1071
  %v1088 = vmul.f32 %v1024, %v1072
  %v1089 = vmul.f32 %v1025, %v1073
  %v1090 = vld [vmem:[%s4] sm:$0xff]
  %v1091 = vld [vmem:[%s4 + $0x8] sm:$0xff]
  %v1092 = vld [vmem:[%s4 + $0x10] sm:$0xff]
  %v1093 = vld [vmem:[%s4 + $0x18] sm:$0xff]
  %1094 = vmatprep.subr.mxu0 0.0
  %1095 = vmatpush1.msra.mxu0 %v1074
  %1096 = vmatprep.subr.mxu0 0.0
  %1097 = vmatpush1.msra.mxu0 %v1075
  %1098 = vmatprep.subr.mxu0 0.0
  %1099 = vmatpush1.msra.mxu0 %v1076
  %1100 = vmatprep.subr.mxu0 0.0
  %1101 = vmatpush1.msra.mxu0 %v1077
  %1102 = vmatprep.subr.mxu0 0.0
  %1103 = vmatpush1.msra.mxu0 %v1078
  %1104 = vmatprep.subr.mxu0 0.0
  %1105 = vmatpush1.msra.mxu0 %v1079
  %1106 = vmatprep.subr.mxu0 0.0
  %1107 = vmatpush1.msra.mxu0 %v1080
  %1108 = vmatprep.subr.mxu0 0.0
  %1109 = vmatpush1.msra.mxu0 %v1081
  %1110 = vmatprep.subr.mxu0 0.0
  %1111 = vmatpush1.msra.mxu0 %v1082
  %1112 = vmatprep.subr.mxu0 0.0
  %1113 = vmatpush1.msra.mxu0 %v1083
  %1114 = vmatprep.subr.mxu0 0.0
  %1115 = vmatpush1.msra.mxu0 %v1084
  %1116 = vmatprep.subr.mxu0 0.0
  %1117 = vmatpush1.msra.mxu0 %v1085
  %1118 = vmatprep.subr.mxu0 0.0
  %1119 = vmatpush1.msra.mxu0 %v1086
  %1120 = vmatprep.subr.mxu0 0.0
  %1121 = vmatpush1.msra.mxu0 %v1087
  %1122 = vmatprep.subr.mxu0 0.0
  %1123 = vmatpush1.msra.mxu0 %v1088
  %1124 = vmatprep.subr.mxu0 0.0
  %1125 = vmatpush1.msra.mxu0 %v1089
  %1126 = vmatprep.subr.mxu0 0.0
  %1127 = vmatpush1.msra.mxu0 0.0
  %1128 = vmatprep.subr.mxu0 0.0
  %1129 = vmatpush1.msra.mxu0 0.0
  %1130 = vmatprep.subr.mxu0 0.0
  %1131 = vmatpush1.msra.mxu0 0.0
  %1132 = vmatprep.subr.mxu0 0.0
  %1133 = vmatpush1.msra.mxu0 0.0
  %1134 = vmatprep.subr.mxu0 0.0
  %1135 = vmatpush1.msra.mxu0 0.0
  %1136 = vmatprep.subr.mxu0 0.0
  %1137 = vmatpush1.msra.mxu0 0.0
  %1138 = vmatprep.subr.mxu0 0.0
  %1139 = vmatpush1.msra.mxu0 0.0
  %1140 = vmatprep.subr.mxu0 0.0
  %1141 = vmatpush1.msra.mxu0 0.0
  %1142 = vmatprep.subr.mxu0 0.0
  %1143 = vmatpush1.msra.mxu0 0.0
  %1144 = vmatprep.subr.mxu0 0.0
  %1145 = vmatpush1.msra.mxu0 0.0
  %1146 = vmatprep.subr.mxu0 0.0
  %1147 = vmatpush1.msra.mxu0 0.0
  %1148 = vmatprep.subr.mxu0 0.0
  %1149 = vmatpush1.msra.mxu0 0.0
  %1150 = vmatprep.subr.mxu0 0.0
  %1151 = vmatpush1.msra.mxu0 0.0
  %1152 = vmatprep.subr.mxu0 0.0
  %1153 = vmatpush1.msra.mxu0 0.0
  %1154 = vmatprep.subr.mxu0 0.0
  %1155 = vmatpush1.msra.mxu0 0.0
  %1156 = vmatprep.subr.mxu0 0.0
  %1157 = vmatpush1.msra.mxu0 0.0
  %1158 = vmatprep.mubr.f32.mxu0 0.0
  %1159 = vmatmul.mubr.f32.gmra.mrb[0].mxu0 %v1090
  %v1160 = vpop.f32.mrb[0].mxu0
  %v1161 = vadd.f32 0.0, %v1160
  %v1162 = vpop.f32.mrb[0].mxu0
  %1163 = vmatprep.mubr.f32.mxu0 0.0
  %1164 = vmatmul.mubr.f32.gmra.mrb[0].mxu0 %v1091
  %v1165 = vpop.f32.mrb[0].mxu0
  %v1166 = vadd.f32 0.0, %v1165
  %v1167 = vpop.f32.mrb[0].mxu0
  %1168 = vmatprep.mubr.f32.mxu0 0.0
  %1169 = vmatmul.mubr.f32.gmra.mrb[0].mxu0 %v1092
  %v1170 = vpop.f32.mrb[0].mxu0
  %v1171 = vadd.f32 0.0, %v1170
  %v1172 = vpop.f32.mrb[0].mxu0
  %1173 = vmatprep.mubr.f32.mxu0 0.0
  %1174 = vmatmul.mubr.f32.gmra.mrb[0].mxu0 %v1093
  %v1175 = vpop.f32.mrb[0].mxu0
  %v1176 = vadd.f32 0.0, %v1175
  %v1177 = vpop.f32.mrb[0].mxu0
  %1178 = vdwg.mxu0
  %v1179 = vpack.c.bf16 %v1166, %v1161
  %v1180 = vpack.c.bf16 %v1176, %v1171
  %v1183 = vunpack.c.l.b16 %v1179
  %v1184 = vunpack.c.h.b16 %v1179
  %v1185 = vunpack.c.l.b16 %v1180
  %v1186 = vunpack.c.h.b16 %v1180
  %v1187 = vpack.c.b16 %v1183, %v1183
  %v1188 = vpack.c.b16 %v1184, %v1184
  %v1189 = vpack.c.b16 %v1185, %v1185
  %v1190 = vpack.c.b16 %v1186, %v1186
  %vm1195 = vcmask 519168
  %1196 = vst.msk [vmem:[%s5] sm:$0xf] %vm1195, %v1187
  %1197 = vst.msk [vmem:[%s5 + $0x4] sm:$0xf] %vm1195, %v1188
  %1198 = vst.msk [vmem:[%s5 + $0x8] sm:$0xf] %vm1195, %v1189
  %1199 = vst.msk [vmem:[%s5 + $0xc] sm:$0xf] %vm1195, %v1190
  // Predicated region
  $region22: #{msfaet_forward.3} parent=0 // pred_check
    _
  $region23: #{msfaet_forward.3} parent=0 // pred_check_branch
    %1201 = sbr.rel (0) target = $region25
  $region24: #{msfaet_forward.3} parent=0 // pred_region
    _
  $region25: #{msfaet_forward.3} parent=0 // pred_fallthru
    _
  // Predicated region
  $region26: #{msfaet_forward.3} parent=0 // pred_check
    _
  $region27: #{msfaet_forward.3} parent=0 // pred_check_branch
    %1203 = sbr.rel (0) target = $region29
  $region28: #{msfaet_forward.3} parent=0 // pred_region
    _
  $region29: #{msfaet_forward.3} parent=0 // pred_fallthru
    _

// kernel: msfaet_forward.5
$region0: #{msfaet_forward.5}
  #allocation0 [shape = 'u32[]', space=smem, size = 0x4, offset = 0x4, fixed_abs, tag = 'smem constant byte address 0x4 - core index']
  #allocation1 [shape = 'u32[144,128]{1,0:T(1,128)}', space=vmem, size = 0x12000, scoped, tag = 'internal scratch']
  %s0 = inlined_call_operand.vmem [shape: bf16[32,64], index: 0, kind: input, shape index: {}]
  %s1 = inlined_call_operand.vmem [shape: f32[1,64], index: 1, kind: input, shape index: {}]
  %s2 = inlined_call_operand.vmem [shape: f32[1,64], index: 2, kind: input, shape index: {}]
  %s3 = inlined_call_operand.vmem [shape: f32[1,64], index: 3, kind: input, shape index: {}]
  %s4 = inlined_call_operand.vmem [shape: bf16[64,192], index: 4, kind: input, shape index: {}]
  %s5 = inlined_call_operand.vmem [shape: f32[1,192], index: 5, kind: input, shape index: {}]
  %s6 = inlined_call_operand.vmem [shape: bf16[64,128], index: 6, kind: input, shape index: {}]
  %s7 = inlined_call_operand.vmem [shape: f32[1,128], index: 7, kind: input, shape index: {}]
  %s8 = inlined_call_operand.vmem [shape: f32[64,4], index: 8, kind: input, shape index: {}]
  %s9 = inlined_call_operand.vmem [shape: f32[4,64], index: 9, kind: input, shape index: {}]
  %s10 = inlined_call_operand.vmem [shape: bf16[64,64], index: 10, kind: input, shape index: {}]
  %s11 = inlined_call_operand.vmem [shape: f32[1,64], index: 11, kind: input, shape index: {}]
  %s12 = inlined_call_operand.vmem [shape: bf16[64,32], index: 12, kind: input, shape index: {}]
  %s13 = inlined_call_operand.vmem [shape: f32[1,32], index: 13, kind: input, shape index: {}]
  %s14 = inlined_call_operand.vmem [shape: bf16[32,2], index: 14, kind: input, shape index: {}]
  %s15 = inlined_call_operand.vmem [shape: f32[1,2], index: 15, kind: input, shape index: {}]
  %s16 = inlined_call_operand.hbm [shape: f32[2,2], index: 16, kind: output, shape index: {}]
  %s17 = sld [smem:[#allocation0]]
  $region74: #{msfaet_forward.5} parent=0
    _
  %s19 = ssub.s32 1, %s17
  %s20 = scalar_select 0, %s19, %s17
  $region1: #{msfaet_forward.5} parent=0
    #allocation2 [shape = 'u8[1024]{0}', space=vmem, size = 0x400, scoped, tag = 'output window, operand 0, single buffered']
    #allocation3 [shape = 's32[1]{0}', space=sflag, size = 0x4, scoped, tag = 'scoped memory for msfaet_forward.5']
    %21 = vsyncpa [#allocation3], 0
    // Predicated region
    $region2: #{msfaet_forward.5} parent=1 // pred_check
      _
    $region3: #{msfaet_forward.5} parent=1 // pred_check_branch
      %23 = sbr.rel (0) target = $region5
    $region4: #{msfaet_forward.5} parent=1 // pred_region
      _
    $region5: #{msfaet_forward.5} parent=1 // pred_fallthru
      _
    // Predicated region
    $region6: #{msfaet_forward.5} parent=1 // pred_check
      _
    $region7: #{msfaet_forward.5} parent=1 // pred_check_branch
      %25 = sbr.rel (0) target = $region9
    $region8: #{msfaet_forward.5} parent=1 // pred_region
      _
    $region9: #{msfaet_forward.5} parent=1 // pred_fallthru
      _
    // Predicated region
    $region10: #{msfaet_forward.5} parent=1 // pred_check
      _
    $region11: #{msfaet_forward.5} parent=1 // pred_check_branch
      %27 = sbr.rel (0) target = $region13
    $region12: #{msfaet_forward.5} parent=1 // pred_region
      _
    $region13: #{msfaet_forward.5} parent=1 // pred_fallthru
      _
    // Predicated region
    $region14: #{msfaet_forward.5} parent=1 // pred_check
      _
    $region15: #{msfaet_forward.5} parent=1 // pred_check_branch
      %29 = sbr.rel (0) target = $region17
    $region16: #{msfaet_forward.5} parent=1 // pred_region
      _
    $region17: #{msfaet_forward.5} parent=1 // pred_fallthru
      _
    // Predicated region
    $region18: #{msfaet_forward.5} parent=1 // pred_check
      _
    $region19: #{msfaet_forward.5} parent=1 // pred_check_branch
      %31 = sbr.rel (0) target = $region21
    $region20: #{msfaet_forward.5} parent=1 // pred_region
      _
    $region21: #{msfaet_forward.5} parent=1 // pred_fallthru
      _
    // Predicated region
    $region22: #{msfaet_forward.5} parent=1 // pred_check
      _
    $region23: #{msfaet_forward.5} parent=1 // pred_check_branch
      %33 = sbr.rel (0) target = $region25
    $region24: #{msfaet_forward.5} parent=1 // pred_region
      _
    $region25: #{msfaet_forward.5} parent=1 // pred_fallthru
      _
    // Predicated region
    $region26: #{msfaet_forward.5} parent=1 // pred_check
      _
    $region27: #{msfaet_forward.5} parent=1 // pred_check_branch
      %35 = sbr.rel (0) target = $region29
    $region28: #{msfaet_forward.5} parent=1 // pred_region
      _
    $region29: #{msfaet_forward.5} parent=1 // pred_fallthru
      _
    // Predicated region
    $region30: #{msfaet_forward.5} parent=1 // pred_check
      _
    $region31: #{msfaet_forward.5} parent=1 // pred_check_branch
      %37 = sbr.rel (0) target = $region33
    $region32: #{msfaet_forward.5} parent=1 // pred_region
      _
    $region33: #{msfaet_forward.5} parent=1 // pred_fallthru
      _
    // Predicated region
    $region34: #{msfaet_forward.5} parent=1 // pred_check
      _
    $region35: #{msfaet_forward.5} parent=1 // pred_check_branch
      %39 = sbr.rel (0) target = $region37
    $region36: #{msfaet_forward.5} parent=1 // pred_region
      _
    $region37: #{msfaet_forward.5} parent=1 // pred_fallthru
      _
    // Predicated region
    $region38: #{msfaet_forward.5} parent=1 // pred_check
      _
    $region39: #{msfaet_forward.5} parent=1 // pred_check_branch
      %41 = sbr.rel (0) target = $region41
    $region40: #{msfaet_forward.5} parent=1 // pred_region
      _
    $region41: #{msfaet_forward.5} parent=1 // pred_fallthru
      _
    // Predicated region
    $region42: #{msfaet_forward.5} parent=1 // pred_check
      _
    $region43: #{msfaet_forward.5} parent=1 // pred_check_branch
      %43 = sbr.rel (0) target = $region45
    $region44: #{msfaet_forward.5} parent=1 // pred_region
      _
    $region45: #{msfaet_forward.5} parent=1 // pred_fallthru
      _
    // Predicated region
    $region46: #{msfaet_forward.5} parent=1 // pred_check
      _
    $region47: #{msfaet_forward.5} parent=1 // pred_check_branch
      %45 = sbr.rel (0) target = $region49
    $region48: #{msfaet_forward.5} parent=1 // pred_region
      _
    $region49: #{msfaet_forward.5} parent=1 // pred_fallthru
      _
    // Predicated region
    $region50: #{msfaet_forward.5} parent=1 // pred_check
      _
    $region51: #{msfaet_forward.5} parent=1 // pred_check_branch
      %47 = sbr.rel (0) target = $region53
    $region52: #{msfaet_forward.5} parent=1 // pred_region
      _
    $region53: #{msfaet_forward.5} parent=1 // pred_fallthru
      _
    // Predicated region
    $region54: #{msfaet_forward.5} parent=1 // pred_check
      _
    $region55: #{msfaet_forward.5} parent=1 // pred_check_branch
      %49 = sbr.rel (0) target = $region57
    $region56: #{msfaet_forward.5} parent=1 // pred_region
      _
    $region57: #{msfaet_forward.5} parent=1 // pred_fallthru
      _
    // Predicated region
    $region58: #{msfaet_forward.5} parent=1 // pred_check
      _
    $region59: #{msfaet_forward.5} parent=1 // pred_check_branch
      %51 = sbr.rel (0) target = $region61
    $region60: #{msfaet_forward.5} parent=1 // pred_region
      _
    $region61: #{msfaet_forward.5} parent=1 // pred_fallthru
      _
    // Predicated region
    $region62: #{msfaet_forward.5} parent=1 // pred_check
      _
    $region63: #{msfaet_forward.5} parent=1 // pred_check_branch
      %53 = sbr.rel (0) target = $region65
    $region64: #{msfaet_forward.5} parent=1 // pred_region
      _
    $region65: #{msfaet_forward.5} parent=1 // pred_fallthru
      _
    %v55 = vld [vmem:[%s0] sm:$0xf]
    %v56 = vld [vmem:[%s0 + $0x4] sm:$0xf]
    %v57 = vld [vmem:[%s0 + $0x8] sm:$0xf]
    %v58 = vld [vmem:[%s0 + $0xc] sm:$0xf]
    %v59 = vunpack.c.l.bf16 %v55
    %v60 = vunpack.c.l.bf16 %v56
    %v61 = vunpack.c.l.bf16 %v57
    %v62 = vunpack.c.l.bf16 %v58
    %v63 = vld [vmem:[%s1] sm:$0x1]
    %v64 = vld [vmem:[%s2] sm:$0x1]
    %vm65 = vcmask 523264
    %v66 = vsel %vm65, %v59, 0.0
    %67 = vadd.xlane.f32.xlu0 %v66
    %v68 = vpop.xlane.xlu0 %67
    %v69 = vsel %vm65, %v60, 0.0
    %70 = vadd.xlane.f32.xlu0 %v69
    %v71 = vpop.xlane.xlu0 %70
    %v72 = vsel %vm65, %v61, 0.0
    %73 = vadd.xlane.f32.xlu0 %v72
    %v74 = vpop.xlane.xlu0 %73
    %v75 = vsel %vm65, %v62, 0.0
    %76 = vadd.xlane.f32.xlu0 %v75
    %v77 = vpop.xlane.xlu0 %76
    %v78 = vrcp.pop 64.0
    %v79 = vmul.f32 %v68, %v78
    %v80 = vmul.f32 %v71, %v78
    %v81 = vmul.f32 %v74, %v78
    %v82 = vmul.f32 %v77, %v78
    %v83 = vsub.f32 %v59, %v79
    %v84 = vsub.f32 %v60, %v80
    %v85 = vsub.f32 %v61, %v81
    %v86 = vsub.f32 %v62, %v82
    %v87 = vmul.f32 %v83, %v83
    %v88 = vmul.f32 %v84, %v84
    %v89 = vmul.f32 %v85, %v85
    %v90 = vmul.f32 %v86, %v86
    %v91 = vsel %vm65, %v87, 0.0
    %92 = vadd.xlane.f32.xlu0 %v91
    %v93 = vpop.xlane.xlu0 %92
    %v94 = vsel %vm65, %v88, 0.0
    %95 = vadd.xlane.f32.xlu0 %v94
    %v96 = vpop.xlane.xlu0 %95
    %v97 = vsel %vm65, %v89, 0.0
    %98 = vadd.xlane.f32.xlu0 %v97
    %v99 = vpop.xlane.xlu0 %98
    %v100 = vsel %vm65, %v90, 0.0
    %101 = vadd.xlane.f32.xlu0 %v100
    %v102 = vpop.xlane.xlu0 %101
    %v103 = vmul.f32 %v93, %v78
    %v104 = vmul.f32 %v96, %v78
    %v105 = vmul.f32 %v99, %v78
    %v106 = vmul.f32 %v102, %v78
    %v107 = vadd.f32 %v103, 1e-05
    %v108 = vadd.f32 %v104, 1e-05
    %v109 = vadd.f32 %v105, 1e-05
    %v110 = vadd.f32 %v106, 1e-05
    %v111 = vrsqrt.pop %v107
    %v112 = vrsqrt.pop %v108
    %v113 = vrsqrt.pop %v109
    %v114 = vrsqrt.pop %v110
    %v115 = vmul.f32 %v83, %v111
    %v116 = vmul.f32 %v84, %v112
    %v117 = vmul.f32 %v85, %v113
    %v118 = vmul.f32 %v86, %v114
    %v120 = vlaneseq
    %v121 = vshrl.u32 %v120, 7
    %v122 = vsub.s32 0, %v121
    %v123 = vrot.slane %v63, %v122
    %v125 = vmul.f32 %v115, %v123
    %v126 = vmul.f32 %v116, %v123
    %v127 = vmul.f32 %v117, %v123
    %v128 = vmul.f32 %v118, %v123
    %v130 = vlaneseq
    %v131 = vshrl.u32 %v130, 7
    %v132 = vsub.s32 0, %v131
    %v133 = vrot.slane %v64, %v132
    %v135 = vadd.f32 %v125, %v133
    %v136 = vadd.f32 %v126, %v133
    %v137 = vadd.f32 %v127, %v133
    %v138 = vadd.f32 %v128, %v133
    %v139 = vpack.c.bf16 %v136, %v135
    %v140 = vpack.c.bf16 %v138, %v137
    %v141 = vld [vmem:[%s3] sm:$0x1]
    %v142 = vpack.c.bf16 %v141, %v141
    %v143 = vld [vmem:[%s4] sm:$0xff]
    %v144 = vld [vmem:[%s4 + $0x8] sm:$0xff]
    %v145 = vld [vmem:[%s4 + $0x10] sm:$0xff]
    %v146 = vld [vmem:[%s4 + $0x18] sm:$0xff]
    %v147 = vld [vmem:[%s4 + $0x20] sm:$0xff]
    %v148 = vld [vmem:[%s4 + $0x28] sm:$0xff]
    %v149 = vld [vmem:[%s4 + $0x30] sm:$0xff]
    %v150 = vld [vmem:[%s4 + $0x38] sm:$0xff]
    %v151 = vld [vmem:[%s5] sm:$0x3]
    %v160 = vunpack.c.l.b16 %v143
    %v161 = vunpack.c.h.b16 %v143
    %v162 = vunpack.c.l.b16 %v144
    %v163 = vunpack.c.h.b16 %v144
    %v164 = vunpack.c.l.b16 %v145
    %v165 = vunpack.c.h.b16 %v145
    %v166 = vunpack.c.l.b16 %v146
    %v167 = vunpack.c.h.b16 %v146
    %v168 = vunpack.c.l.b16 %v147
    %v169 = vunpack.c.h.b16 %v147
    %v170 = vunpack.c.l.b16 %v148
    %v171 = vunpack.c.h.b16 %v148
    %v172 = vunpack.c.l.b16 %v149
    %v173 = vunpack.c.h.b16 %v149
    %v174 = vunpack.c.l.b16 %v150
    %v175 = vunpack.c.h.b16 %v150
    %v176 = vpack.c.b16 %v162, %v160
    %v177 = vpack.c.b16 %v163, %v161
    %v178 = vpack.c.b16 %v166, %v164
    %v179 = vpack.c.b16 %v167, %v165
    %v180 = vpack.c.b16 %v170, %v168
    %v181 = vpack.c.b16 %v171, %v169
    %v182 = vpack.c.b16 %v174, %v172
    %v183 = vpack.c.b16 %v175, %v173
    %v193 = vlaneseq
    %v194 = vshrl.u32 %v193, 7
    %v195 = vsub.s32 0, %v194
    %v196 = vrot.slane %v151, %v195
    %v197 = vlaneseq
    %v198 = vshrl.u32 %v197, 7
    %v199 = vsub.s32 1, %v198
    %v200 = vrot.slane %v151, %v199
    %v204 = vsel %vm65, %v142, 0
    %206 = vmatprep.subr.bf16.mxu0 %v177
    %207 = vmatpush1.bf16.msra.mxu0 %v176
    %208 = vmatprep.subr.bf16.mxu0 %v179
    %209 = vmatpush1.bf16.msra.mxu0 %v178
    %210 = vmatprep.subr.bf16.mxu0 %v181
    %211 = vmatpush1.bf16.msra.mxu0 %v180
    %212 = vmatprep.subr.bf16.mxu0 %v183
    %213 = vmatpush1.bf16.msra.mxu0 %v182
    %214 = vmatprep.subr.bf16.mxu0 0
    %215 = vmatpush1.bf16.msra.mxu0 0
    %216 = vmatprep.subr.bf16.mxu0 0
    %217 = vmatpush1.bf16.msra.mxu0 0
    %218 = vmatprep.subr.bf16.mxu0 0
    %219 = vmatpush1.bf16.msra.mxu0 0
    %220 = vmatprep.subr.bf16.mxu0 0
    %221 = vmatpush1.bf16.msra.mxu0 0
    %222 = vmatprep.subr.bf16.mxu0 0
    %223 = vmatpush1.bf16.msra.mxu0 0
    %224 = vmatprep.subr.bf16.mxu0 0
    %225 = vmatpush1.bf16.msra.mxu0 0
    %226 = vmatprep.subr.bf16.mxu0 0
    %227 = vmatpush1.bf16.msra.mxu0 0
    %228 = vmatprep.subr.bf16.mxu0 0
    %229 = vmatpush1.bf16.msra.mxu0 0
    %230 = vmatprep.subr.bf16.mxu0 0
    %231 = vmatpush1.bf16.msra.mxu0 0
    %232 = vmatprep.subr.bf16.mxu0 0
    %233 = vmatpush1.bf16.msra.mxu0 0
    %234 = vmatprep.subr.bf16.mxu0 0
    %235 = vmatpush1.bf16.msra.mxu0 0
    %236 = vmatprep.subr.bf16.mxu0 0
    %237 = vmatpush1.bf16.msra.mxu0 0
    %238 = vmatprep.mubr.bf16.mxu0 0
    %239 = vmatmul.mubr.bf16.gmra.mrb[0].mxu0 %v204
    %v240 = vpop.f32.mrb[0].mxu0
    %v241 = vadd.f32 %v196, %v240
    %v242 = vpop.f32.mrb[0].mxu0
    %v243 = vadd.f32 %v200, %v242
    %v244 = vpop.f32.mrb[0].mxu0
    %v245 = vpop.f32.mrb[0].mxu0
    %246 = vdwg.mxu0
    %v247 = vld [vmem:[%s6] sm:$0xf]
    %v248 = vld [vmem:[%s6 + $0x4] sm:$0xf]
    %v249 = vld [vmem:[%s6 + $0x8] sm:$0xf]
    %v250 = vld [vmem:[%s6 + $0xc] sm:$0xf]
    %v251 = vld [vmem:[%s6 + $0x10] sm:$0xf]
    %v252 = vld [vmem:[%s6 + $0x14] sm:$0xf]
    %v253 = vld [vmem:[%s6 + $0x18] sm:$0xf]
    %v254 = vld [vmem:[%s6 + $0x1c] sm:$0xf]
    %v255 = vld [vmem:[%s7] sm:$0x1]
    %v257 = vlaneseq
    %v258 = vshrl.u32 %v257, 7
    %v259 = vsub.s32 0, %v258
    %v260 = vrot.slane %v255, %v259
    %v270 = vunpack.c.l.b16 %v247
    %v271 = vunpack.c.l.b16 %v248
    %v272 = vunpack.c.l.b16 %v249
    %v273 = vunpack.c.l.b16 %v250
    %v274 = vunpack.c.l.b16 %v251
    %v275 = vunpack.c.l.b16 %v252
    %v276 = vunpack.c.l.b16 %v253
    %v277 = vunpack.c.l.b16 %v254
    %v278 = vpack.c.b16 %v271, %v270
    %v279 = vpack.c.b16 %v273, %v272
    %v280 = vpack.c.b16 %v275, %v274
    %v281 = vpack.c.b16 %v277, %v276
    %v287 = vsel %vm65, %v139, 0
    %v290 = vsel %vm65, %v140, 0
    %292 = vmatprep.subr.bf16.mxu0 0
    %293 = vmatpush1.bf16.msra.mxu0 %v278
    %294 = vmatprep.subr.bf16.mxu0 0
    %295 = vmatpush1.bf16.msra.mxu0 %v279
    %296 = vmatprep.subr.bf16.mxu0 0
    %297 = vmatpush1.bf16.msra.mxu0 %v280
    %298 = vmatprep.subr.bf16.mxu0 0
    %299 = vmatpush1.bf16.msra.mxu0 %v281
    %300 = vmatprep.subr.bf16.mxu0 0
    %301 = vmatpush1.bf16.msra.mxu0 0
    %302 = vmatprep.subr.bf16.mxu0 0
    %303 = vmatpush1.bf16.msra.mxu0 0
    %304 = vmatprep.subr.bf16.mxu0 0
    %305 = vmatpush1.bf16.msra.mxu0 0
    %306 = vmatprep.subr.bf16.mxu0 0
    %307 = vmatpush1.bf16.msra.mxu0 0
    %308 = vmatprep.subr.bf16.mxu0 0
    %309 = vmatpush1.bf16.msra.mxu0 0
    %310 = vmatprep.subr.bf16.mxu0 0
    %311 = vmatpush1.bf16.msra.mxu0 0
    %312 = vmatprep.subr.bf16.mxu0 0
    %313 = vmatpush1.bf16.msra.mxu0 0
    %314 = vmatprep.subr.bf16.mxu0 0
    %315 = vmatpush1.bf16.msra.mxu0 0
    %316 = vmatprep.subr.bf16.mxu0 0
    %317 = vmatpush1.bf16.msra.mxu0 0
    %318 = vmatprep.subr.bf16.mxu0 0
    %319 = vmatpush1.bf16.msra.mxu0 0
    %320 = vmatprep.subr.bf16.mxu0 0
    %321 = vmatpush1.bf16.msra.mxu0 0
    %322 = vmatprep.subr.bf16.mxu0 0
    %323 = vmatpush1.bf16.msra.mxu0 0
    %324 = vmatprep.mubr.bf16.mxu0 0
    %325 = vmatmul.mubr.bf16.gmra.mrb[0].mxu0 %v287
    %v326 = vpop.f32.mrb[0].mxu0
    %v327 = vadd.f32 %v260, %v326
    %v328 = vpop.f32.mrb[0].mxu0
    %v329 = vpop.f32.mrb[0].mxu0
    %v330 = vadd.f32 %v260, %v329
    %v331 = vpop.f32.mrb[0].mxu0
    %332 = vmatprep.mubr.bf16.mxu0 0
    %333 = vmatmul.mubr.bf16.gmra.mrb[0].mxu0 %v290
    %v334 = vpop.f32.mrb[0].mxu0
    %v335 = vadd.f32 %v260, %v334
    %v336 = vpop.f32.mrb[0].mxu0
    %v337 = vpop.f32.mrb[0].mxu0
    %v338 = vadd.f32 %v260, %v337
    %v339 = vpop.f32.mrb[0].mxu0
    %340 = vdwg.mxu0
    %v341 = vld [vmem:[%s8] sm:$0xff]
    %v342 = vld [vmem:[%s8 + $0x8] sm:$0xff]
    %v343 = vld [vmem:[%s8 + $0x10] sm:$0xff]
    %v344 = vld [vmem:[%s8 + $0x18] sm:$0xff]
    %v345 = vld [vmem:[%s8 + $0x20] sm:$0xff]
    %v346 = vld [vmem:[%s8 + $0x28] sm:$0xff]
    %v347 = vld [vmem:[%s8 + $0x30] sm:$0xff]
    %v348 = vld [vmem:[%s8 + $0x38] sm:$0xff]
    %v349 = vld [vmem:[%s9] sm:$0xf]
    %v350 = vlaneseq
    %v351 = vshrl.u32 %v350, 7
    %v352 = vsub.s32 0, %v351
    %v353 = vrot.slane %v241, %v352
    %v354 = vmul.f32 %v327, %v353
    %v355 = vmul.f32 %v330, %v353
    %v356 = vmul.f32 %v335, %v353
    %v357 = vmul.f32 %v338, %v353
    %v359 = vsel %vm65, %v354, 0
    %v362 = vsel %vm65, %v355, 0
    %v365 = vsel %vm65, %v356, 0
    %v368 = vsel %vm65, %v357, 0
    %370 = vmatprep.subr.mxu0 0.0
    %371 = vmatpush1.msra.mxu0 %v341
    %372 = vmatprep.subr.mxu0 0.0
    %373 = vmatpush1.msra.mxu0 %v342
    %374 = vmatprep.subr.mxu0 0.0
    %375 = vmatpush1.msra.mxu0 %v343
    %376 = vmatprep.subr.mxu0 0.0
    %377 = vmatpush1.msra.mxu0 %v344
    %378 = vmatprep.subr.mxu0 0.0
    %379 = vmatpush1.msra.mxu0 %v345
    %380 = vmatprep.subr.mxu0 0.0
    %381 = vmatpush1.msra.mxu0 %v346
    %382 = vmatprep.subr.mxu0 0.0
    %383 = vmatpush1.msra.mxu0 %v347
    %384 = vmatprep.subr.mxu0 0.0
    %385 = vmatpush1.msra.mxu0 %v348
    %386 = vmatprep.subr.mxu0 0.0
    %387 = vmatpush1.msra.mxu0 0.0
    %388 = vmatprep.subr.mxu0 0.0
    %389 = vmatpush1.msra.mxu0 0.0
    %390 = vmatprep.subr.mxu0 0.0
    %391 = vmatpush1.msra.mxu0 0.0
    %392 = vmatprep.subr.mxu0 0.0
    %393 = vmatpush1.msra.mxu0 0.0
    %394 = vmatprep.subr.mxu0 0.0
    %395 = vmatpush1.msra.mxu0 0.0
    %396 = vmatprep.subr.mxu0 0.0
    %397 = vmatpush1.msra.mxu0 0.0
    %398 = vmatprep.subr.mxu0 0.0
    %399 = vmatpush1.msra.mxu0 0.0
    %400 = vmatprep.subr.mxu0 0.0
    %401 = vmatpush1.msra.mxu0 0.0
    %402 = vmatprep.subr.mxu0 0.0
    %403 = vmatpush1.msra.mxu0 0.0
    %404 = vmatprep.subr.mxu0 0.0
    %405 = vmatpush1.msra.mxu0 0.0
    %406 = vmatprep.subr.mxu0 0.0
    %407 = vmatpush1.msra.mxu0 0.0
    %408 = vmatprep.subr.mxu0 0.0
    %409 = vmatpush1.msra.mxu0 0.0
    %410 = vmatprep.subr.mxu0 0.0
    %411 = vmatpush1.msra.mxu0 0.0
    %412 = vmatprep.subr.mxu0 0.0
    %413 = vmatpush1.msra.mxu0 0.0
    %414 = vmatprep.subr.mxu0 0.0
    %415 = vmatpush1.msra.mxu0 0.0
    %416 = vmatprep.subr.mxu0 0.0
    %417 = vmatpush1.msra.mxu0 0.0
    %418 = vmatprep.subr.mxu0 0.0
    %419 = vmatpush1.msra.mxu0 0.0
    %420 = vmatprep.subr.mxu0 0.0
    %421 = vmatpush1.msra.mxu0 0.0
    %422 = vmatprep.subr.mxu0 0.0
    %423 = vmatpush1.msra.mxu0 0.0
    %424 = vmatprep.subr.mxu0 0.0
    %425 = vmatpush1.msra.mxu0 0.0
    %426 = vmatprep.subr.mxu0 0.0
    %427 = vmatpush1.msra.mxu0 0.0
    %428 = vmatprep.subr.mxu0 0.0
    %429 = vmatpush1.msra.mxu0 0.0
    %430 = vmatprep.subr.mxu0 0.0
    %431 = vmatpush1.msra.mxu0 0.0
    %432 = vmatprep.subr.mxu0 0.0
    %433 = vmatpush1.msra.mxu0 0.0
    %434 = vmatprep.mubr.f32.mxu0 0.0
    %435 = vmatmul.mubr.f32.gmra.mrb[0].mxu0 %v359
    %v436 = vpop.f32.mrb[0].mxu0
    %v437 = vadd.f32 0.0, %v436
    %v438 = vpop.f32.mrb[0].mxu0
    %439 = vmatprep.mubr.f32.mxu0 0.0
    %440 = vmatmul.mubr.f32.gmra.mrb[0].mxu0 %v362
    %v441 = vpop.f32.mrb[0].mxu0
    %v442 = vadd.f32 0.0, %v441
    %v443 = vpop.f32.mrb[0].mxu0
    %444 = vmatprep.mubr.f32.mxu0 0.0
    %445 = vmatmul.mubr.f32.gmra.mrb[0].mxu0 %v365
    %v446 = vpop.f32.mrb[0].mxu0
    %v447 = vadd.f32 0.0, %v446
    %v448 = vpop.f32.mrb[0].mxu0
    %449 = vmatprep.mubr.f32.mxu0 0.0
    %450 = vmatmul.mubr.f32.gmra.mrb[0].mxu0 %v368
    %v451 = vpop.f32.mrb[0].mxu0
    %v452 = vadd.f32 0.0, %v451
    %v453 = vpop.f32.mrb[0].mxu0
    %454 = vdwg.mxu0
    %v455 = vmul.f32 %v437, 0.25
    %v456 = vmul.f32 %v442, 0.25
    %v457 = vmul.f32 %v447, 0.25
    %v458 = vmul.f32 %v452, 0.25
    %460 = vrot.lane.b32.xlu0 %v241, 64
    %v461 = vpop.permute.xlu0 %460
    %v463 = vmul.f32 %v241, %v461
    %465 = vrot.lane.b32.xlu0 %v463, 64
    %v466 = vpop.permute.xlu0 %465
    %v467 = vsel %vm65, %v466, 0
    %469 = vmatprep.subr.mxu0 0.0
    %470 = vmatpush1.msra.mxu0 %v341
    %471 = vmatprep.subr.mxu0 0.0
    %472 = vmatpush1.msra.mxu0 %v342
    %473 = vmatprep.subr.mxu0 0.0
    %474 = vmatpush1.msra.mxu0 %v343
    %475 = vmatprep.subr.mxu0 0.0
    %476 = vmatpush1.msra.mxu0 %v344
    %477 = vmatprep.subr.mxu0 0.0
    %478 = vmatpush1.msra.mxu0 %v345
    %479 = vmatprep.subr.mxu0 0.0
    %480 = vmatpush1.msra.mxu0 %v346
    %481 = vmatprep.subr.mxu0 0.0
    %482 = vmatpush1.msra.mxu0 %v347
    %483 = vmatprep.subr.mxu0 0.0
    %484 = vmatpush1.msra.mxu0 %v348
    %485 = vmatprep.subr.mxu0 0.0
    %486 = vmatpush1.msra.mxu0 0.0
    %487 = vmatprep.subr.mxu0 0.0
    %488 = vmatpush1.msra.mxu0 0.0
    %489 = vmatprep.subr.mxu0 0.0
    %490 = vmatpush1.msra.mxu0 0.0
    %491 = vmatprep.subr.mxu0 0.0
    %492 = vmatpush1.msra.mxu0 0.0
    %493 = vmatprep.subr.mxu0 0.0
    %494 = vmatpush1.msra.mxu0 0.0
    %495 = vmatprep.subr.mxu0 0.0
    %496 = vmatpush1.msra.mxu0 0.0
    %497 = vmatprep.subr.mxu0 0.0
    %498 = vmatpush1.msra.mxu0 0.0
    %499 = vmatprep.subr.mxu0 0.0
    %500 = vmatpush1.msra.mxu0 0.0
    %501 = vmatprep.subr.mxu0 0.0
    %502 = vmatpush1.msra.mxu0 0.0
    %503 = vmatprep.subr.mxu0 0.0
    %504 = vmatpush1.msra.mxu0 0.0
    %505 = vmatprep.subr.mxu0 0.0
    %506 = vmatpush1.msra.mxu0 0.0
    %507 = vmatprep.subr.mxu0 0.0
    %508 = vmatpush1.msra.mxu0 0.0
    %509 = vmatprep.subr.mxu0 0.0
    %510 = vmatpush1.msra.mxu0 0.0
    %511 = vmatprep.subr.mxu0 0.0
    %512 = vmatpush1.msra.mxu0 0.0
    %513 = vmatprep.subr.mxu0 0.0
    %514 = vmatpush1.msra.mxu0 0.0
    %515 = vmatprep.subr.mxu0 0.0
    %516 = vmatpush1.msra.mxu0 0.0
    %517 = vmatprep.subr.mxu0 0.0
    %518 = vmatpush1.msra.mxu0 0.0
    %519 = vmatprep.subr.mxu0 0.0
    %520 = vmatpush1.msra.mxu0 0.0
    %521 = vmatprep.subr.mxu0 0.0
    %522 = vmatpush1.msra.mxu0 0.0
    %523 = vmatprep.subr.mxu0 0.0
    %524 = vmatpush1.msra.mxu0 0.0
    %525 = vmatprep.subr.mxu0 0.0
    %526 = vmatpush1.msra.mxu0 0.0
    %527 = vmatprep.subr.mxu0 0.0
    %528 = vmatpush1.msra.mxu0 0.0
    %529 = vmatprep.subr.mxu0 0.0
    %530 = vmatpush1.msra.mxu0 0.0
    %531 = vmatprep.subr.mxu0 0.0
    %532 = vmatpush1.msra.mxu0 0.0
    %533 = vmatprep.mubr.f32.mxu0 0.0
    %534 = vmatmul.mubr.f32.gmra.mrb[0].mxu0 %v467
    %v535 = vpop.f32.mrb[0].mxu0
    %v536 = vadd.f32 0.0, %v535
    %v537 = vpop.f32.mrb[0].mxu0
    %538 = vdwg.mxu0
    %v539 = vmul.f32 %v536, 0.25
    %vm540 = vcmask 31744
    %v541 = vsel %vm540, %v455, -inf
    %v542 = vsel %vm540, %v456, -inf
    %v543 = vmax.f32 %v541, %v542
    %v544 = vrot.slane %v543, 4
    %v545 = vmax.f32 %v543, %v544
    %v546 = vrot.slane %v545, 2
    %v547 = vmax.f32 %v545, %v546
    %v548 = vrot.slane %v547, 1
    %v549 = vmax.f32 %v547, %v548
    %v550 = vsel %vm540, %v457, -inf
    %v551 = vsel %vm540, %v458, -inf
    %v552 = vmax.f32 %v550, %v551
    %v553 = vrot.slane %v552, 4
    %v554 = vmax.f32 %v552, %v553
    %v555 = vrot.slane %v554, 2
    %v556 = vmax.f32 %v554, %v555
    %v557 = vrot.slane %v556, 1
    %v558 = vmax.f32 %v556, %v557
    %v559 = vmax.f32 %v549, %v539
    %v560 = vmax.f32 %v558, %v539
    %v561 = vlaneseq
    %v562 = vshrl.u32 %v561, 7
    %v563 = vsub.s32 0, %v562
    %v564 = vrot.slane %v559, %v563
    %v565 = vlaneseq
    %v566 = vshrl.u32 %v565, 7
    %v567 = vsub.s32 0, %v566
    %v568 = vrot.slane %v560, %v567
    %v569 = vsub.f32 %v455, %v564
    %v570 = vsub.f32 %v456, %v564
    %v571 = vsub.f32 %v457, %v568
    %v572 = vsub.f32 %v458, %v568
    %v573 = vmul.f32 %v569, 1.442695
    %v574 = vpow.pop %v573
    %v575 = vmul.f32 %v570, 1.442695
    %v576 = vpow.pop %v575
    %v577 = vmul.f32 %v571, 1.442695
    %v578 = vpow.pop %v577
    %v579 = vmul.f32 %v572, 1.442695
    %v580 = vpow.pop %v579
    %v581 = vsub.f32 %v539, %v559
    %v582 = vsub.f32 %v539, %v560
    %v583 = vmul.f32 %v581, 1.442695
    %v584 = vpow.pop %v583
    %v585 = vmul.f32 %v582, 1.442695
    %v586 = vpow.pop %v585
    %v587 = vsel %vm540, %v574, 0.0
    %v588 = vsel %vm540, %v576, 0.0
    %v589 = vadd.f32 %v587, %v588
    %v590 = vrot.slane %v589, 4
    %v591 = vadd.f32 %v589, %v590
    %v592 = vrot.slane %v591, 2
    %v593 = vadd.f32 %v591, %v592
    %v594 = vrot.slane %v593, 1
    %v595 = vadd.f32 %v593, %v594
    %v596 = vsel %vm540, %v578, 0.0
    %v597 = vsel %vm540, %v580, 0.0
    %v598 = vadd.f32 %v596, %v597
    %v599 = vrot.slane %v598, 4
    %v600 = vadd.f32 %v598, %v599
    %v601 = vrot.slane %v600, 2
    %v602 = vadd.f32 %v600, %v601
    %v603 = vrot.slane %v602, 1
    %v604 = vadd.f32 %v602, %v603
    %v605 = vadd.f32 %v584, %v595
    %v606 = vadd.f32 %v586, %v604
    %v607 = vrcp.pop %v605
    %v608 = vrcp.pop %v606
    %v609 = vlaneseq
    %v610 = vshrl.u32 %v609, 7
    %v611 = vsub.s32 0, %v610
    %v612 = vrot.slane %v607, %v611
    %v613 = vlaneseq
    %v614 = vshrl.u32 %v613, 7
    %v615 = vsub.s32 0, %v614
    %v616 = vrot.slane %v608, %v615
    %v617 = vmul.f32 %v574, %v612
    %v618 = vmul.f32 %v576, %v612
    %v619 = vmul.f32 %v578, %v616
    %v620 = vmul.f32 %v580, %v616
    %v621 = vmul.f32 %v584, %v607
    %v622 = vmul.f32 %v586, %v608
    %v624 = vsel %vm540, %v617, 0
    %v627 = vsel %vm540, %v618, 0
    %v630 = vsel %vm540, %v619, 0
    %v633 = vsel %vm540, %v620, 0
    %vm635 = vcmask 1043456
    %v637 = vsel %vm635, %v349, 0
    %639 = vmatprep.subr.mxu0 0.0
    %640 = vmatpush1.msra.mxu0 %v637
    %641 = vmatprep.subr.mxu0 0.0
    %642 = vmatpush1.msra.mxu0 0.0
    %643 = vmatprep.subr.mxu0 0.0
    %644 = vmatpush1.msra.mxu0 0.0
    %645 = vmatprep.subr.mxu0 0.0
    %646 = vmatpush1.msra.mxu0 0.0
    %647 = vmatprep.subr.mxu0 0.0
    %648 = vmatpush1.msra.mxu0 0.0
    %649 = vmatprep.subr.mxu0 0.0
    %650 = vmatpush1.msra.mxu0 0.0
    %651 = vmatprep.subr.mxu0 0.0
    %652 = vmatpush1.msra.mxu0 0.0
    %653 = vmatprep.subr.mxu0 0.0
    %654 = vmatpush1.msra.mxu0 0.0
    %655 = vmatprep.subr.mxu0 0.0
    %656 = vmatpush1.msra.mxu0 0.0
    %657 = vmatprep.subr.mxu0 0.0
    %658 = vmatpush1.msra.mxu0 0.0
    %659 = vmatprep.subr.mxu0 0.0
    %660 = vmatpush1.msra.mxu0 0.0
    %661 = vmatprep.subr.mxu0 0.0
    %662 = vmatpush1.msra.mxu0 0.0
    %663 = vmatprep.subr.mxu0 0.0
    %664 = vmatpush1.msra.mxu0 0.0
    %665 = vmatprep.subr.mxu0 0.0
    %666 = vmatpush1.msra.mxu0 0.0
    %667 = vmatprep.subr.mxu0 0.0
    %668 = vmatpush1.msra.mxu0 0.0
    %669 = vmatprep.subr.mxu0 0.0
    %670 = vmatpush1.msra.mxu0 0.0
    %671 = vmatprep.subr.mxu0 0.0
    %672 = vmatpush1.msra.mxu0 0.0
    %673 = vmatprep.subr.mxu0 0.0
    %674 = vmatpush1.msra.mxu0 0.0
    %675 = vmatprep.subr.mxu0 0.0
    %676 = vmatpush1.msra.mxu0 0.0
    %677 = vmatprep.subr.mxu0 0.0
    %678 = vmatpush1.msra.mxu0 0.0
    %679 = vmatprep.subr.mxu0 0.0
    %680 = vmatpush1.msra.mxu0 0.0
    %681 = vmatprep.subr.mxu0 0.0
    %682 = vmatpush1.msra.mxu0 0.0
    %683 = vmatprep.subr.mxu0 0.0
    %684 = vmatpush1.msra.mxu0 0.0
    %685 = vmatprep.subr.mxu0 0.0
    %686 = vmatpush1.msra.mxu0 0.0
    %687 = vmatprep.subr.mxu0 0.0
    %688 = vmatpush1.msra.mxu0 0.0
    %689 = vmatprep.subr.mxu0 0.0
    %690 = vmatpush1.msra.mxu0 0.0
    %691 = vmatprep.subr.mxu0 0.0
    %692 = vmatpush1.msra.mxu0 0.0
    %693 = vmatprep.subr.mxu0 0.0
    %694 = vmatpush1.msra.mxu0 0.0
    %695 = vmatprep.subr.mxu0 0.0
    %696 = vmatpush1.msra.mxu0 0.0
    %697 = vmatprep.subr.mxu0 0.0
    %698 = vmatpush1.msra.mxu0 0.0
    %699 = vmatprep.subr.mxu0 0.0
    %700 = vmatpush1.msra.mxu0 0.0
    %701 = vmatprep.subr.mxu0 0.0
    %702 = vmatpush1.msra.mxu0 0.0
    %703 = vmatprep.mubr.f32.mxu0 0.0
    %704 = vmatmul.mubr.f32.gmra.mrb[0].mxu0 %v624
    %v705 = vpop.f32.mrb[0].mxu0
    %v706 = vadd.f32 0.0, %v705
    %v707 = vpop.f32.mrb[0].mxu0
    %708 = vmatprep.mubr.f32.mxu0 0.0
    %709 = vmatmul.mubr.f32.gmra.mrb[0].mxu0 %v627
    %v710 = vpop.f32.mrb[0].mxu0
    %v711 = vadd.f32 0.0, %v710
    %v712 = vpop.f32.mrb[0].mxu0
    %713 = vmatprep.mubr.f32.mxu0 0.0
    %714 = vmatmul.mubr.f32.gmra.mrb[0].mxu0 %v630
    %v715 = vpop.f32.mrb[0].mxu0
    %v716 = vadd.f32 0.0, %v715
    %v717 = vpop.f32.mrb[0].mxu0
    %718 = vmatprep.mubr.f32.mxu0 0.0
    %719 = vmatmul.mubr.f32.gmra.mrb[0].mxu0 %v633
    %v720 = vpop.f32.mrb[0].mxu0
    %v721 = vadd.f32 0.0, %v720
    %v722 = vpop.f32.mrb[0].mxu0
    %723 = vdwg.mxu0
    %728 = vrot.lane.b32.xlu0 %v327, 64
    %v729 = vpop.permute.xlu0 %728
    %730 = vrot.lane.b32.xlu0 %v330, 64
    %v731 = vpop.permute.xlu0 %730
    %732 = vrot.lane.b32.xlu0 %v335, 64
    %v733 = vpop.permute.xlu0 %732
    %734 = vrot.lane.b32.xlu0 %v338, 64
    %v735 = vpop.permute.xlu0 %734
    %v740 = vmul.f32 %v706, %v729
    %v741 = vmul.f32 %v711, %v731
    %v742 = vmul.f32 %v716, %v733
    %v743 = vmul.f32 %v721, %v735
    %v744 = vsel %vm65, %v740, 0.0
    %v745 = vsel %vm65, %v741, 0.0
    %v746 = vadd.f32 %v744, %v745
    %v747 = vrot.slane %v746, 4
    %v748 = vadd.f32 %v746, %v747
    %v749 = vrot.slane %v748, 2
    %v750 = vadd.f32 %v748, %v749
    %v751 = vrot.slane %v750, 1
    %v752 = vadd.f32 %v750, %v751
    %v753 = vsel %vm65, %v742, 0.0
    %v754 = vsel %vm65, %v743, 0.0
    %v755 = vadd.f32 %v753, %v754
    %v756 = vrot.slane %v755, 4
    %v757 = vadd.f32 %v755, %v756
    %v758 = vrot.slane %v757, 2
    %v759 = vadd.f32 %v757, %v758
    %v760 = vrot.slane %v759, 1
    %v761 = vadd.f32 %v759, %v760
    %v764 = vrot.slane %v622, 7
    %vm765 = vcmask 1041409
    %v766 = vsel %vm765, %v764, %v621
    %v767 = vsel %vm540, %v766, 0
    %769 = vmatprep.subr.mxu0 0.0
    %770 = vmatpush1.msra.mxu0 %v637
    %771 = vmatprep.subr.mxu0 0.0
    %772 = vmatpush1.msra.mxu0 0.0
    %773 = vmatprep.subr.mxu0 0.0
    %774 = vmatpush1.msra.mxu0 0.0
    %775 = vmatprep.subr.mxu0 0.0
    %776 = vmatpush1.msra.mxu0 0.0
    %777 = vmatprep.subr.mxu0 0.0
    %778 = vmatpush1.msra.mxu0 0.0
    %779 = vmatprep.subr.mxu0 0.0
    %780 = vmatpush1.msra.mxu0 0.0
    %781 = vmatprep.subr.mxu0 0.0
    %782 = vmatpush1.msra.mxu0 0.0
    %783 = vmatprep.subr.mxu0 0.0
    %784 = vmatpush1.msra.mxu0 0.0
    %785 = vmatprep.subr.mxu0 0.0
    %786 = vmatpush1.msra.mxu0 0.0
    %787 = vmatprep.subr.mxu0 0.0
    %788 = vmatpush1.msra.mxu0 0.0
    %789 = vmatprep.subr.mxu0 0.0
    %790 = vmatpush1.msra.mxu0 0.0
    %791 = vmatprep.subr.mxu0 0.0
    %792 = vmatpush1.msra.mxu0 0.0
    %793 = vmatprep.subr.mxu0 0.0
    %794 = vmatpush1.msra.mxu0 0.0
    %795 = vmatprep.subr.mxu0 0.0
    %796 = vmatpush1.msra.mxu0 0.0
    %797 = vmatprep.subr.mxu0 0.0
    %798 = vmatpush1.msra.mxu0 0.0
    %799 = vmatprep.subr.mxu0 0.0
    %800 = vmatpush1.msra.mxu0 0.0
    %801 = vmatprep.subr.mxu0 0.0
    %802 = vmatpush1.msra.mxu0 0.0
    %803 = vmatprep.subr.mxu0 0.0
    %804 = vmatpush1.msra.mxu0 0.0
    %805 = vmatprep.subr.mxu0 0.0
    %806 = vmatpush1.msra.mxu0 0.0
    %807 = vmatprep.subr.mxu0 0.0
    %808 = vmatpush1.msra.mxu0 0.0
    %809 = vmatprep.subr.mxu0 0.0
    %810 = vmatpush1.msra.mxu0 0.0
    %811 = vmatprep.subr.mxu0 0.0
    %812 = vmatpush1.msra.mxu0 0.0
    %813 = vmatprep.subr.mxu0 0.0
    %814 = vmatpush1.msra.mxu0 0.0
    %815 = vmatprep.subr.mxu0 0.0
    %816 = vmatpush1.msra.mxu0 0.0
    %817 = vmatprep.subr.mxu0 0.0
    %818 = vmatpush1.msra.mxu0 0.0
    %819 = vmatprep.subr.mxu0 0.0
    %820 = vmatpush1.msra.mxu0 0.0
    %821 = vmatprep.subr.mxu0 0.0
    %822 = vmatpush1.msra.mxu0 0.0
    %823 = vmatprep.subr.mxu0 0.0
    %824 = vmatpush1.msra.mxu0 0.0
    %825 = vmatprep.subr.mxu0 0.0
    %826 = vmatpush1.msra.mxu0 0.0
    %827 = vmatprep.subr.mxu0 0.0
    %828 = vmatpush1.msra.mxu0 0.0
    %829 = vmatprep.subr.mxu0 0.0
    %830 = vmatpush1.msra.mxu0 0.0
    %831 = vmatprep.subr.mxu0 0.0
    %832 = vmatpush1.msra.mxu0 0.0
    %833 = vmatprep.mubr.f32.mxu0 0.0
    %834 = vmatmul.mubr.f32.gmra.mrb[0].mxu0 %v767
    %v835 = vpop.f32.mrb[0].mxu0
    %v836 = vadd.f32 0.0, %v835
    %v837 = vpop.f32.mrb[0].mxu0
    %838 = vdwg.mxu0
    %v839 = vlaneseq
    %v840 = vshrl.u32 %v839, 7
    %v841 = vsub.s32 0, %v840
    %v842 = vrot.slane %v243, %v841
    %v843 = vmul.f32 %v836, %v842
    %v845 = vrot.slane %v843, 1
    %v848 = vadd.f32 %v752, %v843
    %v849 = vadd.f32 %v761, %v845
    %v850 = vpack.c.bf16 %v848, %v848
    %v851 = vpack.c.bf16 %v849, %v849
    %v852 = vld [vmem:[%s10] sm:$0xf]
    %v853 = vld [vmem:[%s10 + $0x4] sm:$0xf]
    %v854 = vld [vmem:[%s10 + $0x8] sm:$0xf]
    %v855 = vld [vmem:[%s10 + $0xc] sm:$0xf]
    %v856 = vld [vmem:[%s10 + $0x10] sm:$0xf]
    %v857 = vld [vmem:[%s10 + $0x14] sm:$0xf]
    %v858 = vld [vmem:[%s10 + $0x18] sm:$0xf]
    %v859 = vld [vmem:[%s10 + $0x1c] sm:$0xf]
    %v860 = vld [vmem:[%s11] sm:$0x1]
    %v862 = vlaneseq
    %v863 = vshrl.u32 %v862, 7
    %v864 = vsub.s32 0, %v863
    %v865 = vrot.slane %v860, %v864
    %v869 = vunpack.c.l.b16 %v850
    %v870 = vunpack.c.l.b16 %v851
    %v871 = vrot.slane %v870, 7
    %v872 = vsel %vm765, %v871, %v869
    %v873 = vpack.c.b16 %v872, %v872
    %v882 = vunpack.c.l.b16 %v852
    %v883 = vunpack.c.l.b16 %v853
    %v884 = vunpack.c.l.b16 %v854
    %v885 = vunpack.c.l.b16 %v855
    %v886 = vunpack.c.l.b16 %v856
    %v887 = vunpack.c.l.b16 %v857
    %v888 = vunpack.c.l.b16 %v858
    %v889 = vunpack.c.l.b16 %v859
    %v890 = vpack.c.b16 %v883, %v882
    %v891 = vpack.c.b16 %v885, %v884
    %v892 = vpack.c.b16 %v887, %v886
    %v893 = vpack.c.b16 %v889, %v888
    %v899 = vsel %vm65, %v873, 0
    %901 = vmatprep.subr.bf16.mxu0 0
    %902 = vmatpush1.bf16.msra.mxu0 %v890
    %903 = vmatprep.subr.bf16.mxu0 0
    %904 = vmatpush1.bf16.msra.mxu0 %v891
    %905 = vmatprep.subr.bf16.mxu0 0
    %906 = vmatpush1.bf16.msra.mxu0 %v892
    %907 = vmatprep.subr.bf16.mxu0 0
    %908 = vmatpush1.bf16.msra.mxu0 %v893
    %909 = vmatprep.subr.bf16.mxu0 0
    %910 = vmatpush1.bf16.msra.mxu0 0
    %911 = vmatprep.subr.bf16.mxu0 0
    %912 = vmatpush1.bf16.msra.mxu0 0
    %913 = vmatprep.subr.bf16.mxu0 0
    %914 = vmatpush1.bf16.msra.mxu0 0
    %915 = vmatprep.subr.bf16.mxu0 0
    %916 = vmatpush1.bf16.msra.mxu0 0
    %917 = vmatprep.subr.bf16.mxu0 0
    %918 = vmatpush1.bf16.msra.mxu0 0
    %919 = vmatprep.subr.bf16.mxu0 0
    %920 = vmatpush1.bf16.msra.mxu0 0
    %921 = vmatprep.subr.bf16.mxu0 0
    %922 = vmatpush1.bf16.msra.mxu0 0
    %923 = vmatprep.subr.bf16.mxu0 0
    %924 = vmatpush1.bf16.msra.mxu0 0
    %925 = vmatprep.subr.bf16.mxu0 0
    %926 = vmatpush1.bf16.msra.mxu0 0
    %927 = vmatprep.subr.bf16.mxu0 0
    %928 = vmatpush1.bf16.msra.mxu0 0
    %929 = vmatprep.subr.bf16.mxu0 0
    %930 = vmatpush1.bf16.msra.mxu0 0
    %931 = vmatprep.subr.bf16.mxu0 0
    %932 = vmatpush1.bf16.msra.mxu0 0
    %933 = vmatprep.mubr.bf16.mxu0 0
    %934 = vmatmul.mubr.bf16.gmra.mrb[0].mxu0 %v899
    %v935 = vpop.f32.mrb[0].mxu0
    %v936 = vadd.f32 %v865, %v935
    %v937 = vpop.f32.mrb[0].mxu0
    %v938 = vpop.f32.mrb[0].mxu0
    %v939 = vpop.f32.mrb[0].mxu0
    %940 = vdwg.mxu0
    %v941 = vpack.c.bf16 %v936, %v936
    %v942 = vld [vmem:[%s12] sm:$0xf]
    %v943 = vld [vmem:[%s12 + $0x4] sm:$0xf]
    %v944 = vld [vmem:[%s12 + $0x8] sm:$0xf]
    %v945 = vld [vmem:[%s12 + $0xc] sm:$0xf]
    %v946 = vld [vmem:[%s12 + $0x10] sm:$0xf]
    %v947 = vld [vmem:[%s12 + $0x14] sm:$0xf]
    %v948 = vld [vmem:[%s12 + $0x18] sm:$0xf]
    %v949 = vld [vmem:[%s12 + $0x1c] sm:$0xf]
    %v950 = vld [vmem:[%s13] sm:$0x1]
    %v952 = vlaneseq
    %v953 = vshrl.u32 %v952, 7
    %v954 = vsub.s32 0, %v953
    %v955 = vrot.slane %v950, %v954
    %v965 = vunpack.c.l.b16 %v942
    %v966 = vunpack.c.l.b16 %v943
    %v967 = vunpack.c.l.b16 %v944
    %v968 = vunpack.c.l.b16 %v945
    %v969 = vunpack.c.l.b16 %v946
    %v970 = vunpack.c.l.b16 %v947
    %v971 = vunpack.c.l.b16 %v948
    %v972 = vunpack.c.l.b16 %v949
    %v973 = vpack.c.b16 %v966, %v965
    %v974 = vpack.c.b16 %v968, %v967
    %v975 = vpack.c.b16 %v970, %v969
    %v976 = vpack.c.b16 %v972, %v971
    %v982 = vsel %vm65, %v941, 0
    %984 = vmatprep.subr.bf16.mxu0 0
    %985 = vmatpush1.bf16.msra.mxu0 %v973
    %986 = vmatprep.subr.bf16.mxu0 0
    %987 = vmatpush1.bf16.msra.mxu0 %v974
    %988 = vmatprep.subr.bf16.mxu0 0
    %989 = vmatpush1.bf16.msra.mxu0 %v975
    %990 = vmatprep.subr.bf16.mxu0 0
    %991 = vmatpush1.bf16.msra.mxu0 %v976
    %992 = vmatprep.subr.bf16.mxu0 0
    %993 = vmatpush1.bf16.msra.mxu0 0
    %994 = vmatprep.subr.bf16.mxu0 0
    %995 = vmatpush1.bf16.msra.mxu0 0
    %996 = vmatprep.subr.bf16.mxu0 0
    %997 = vmatpush1.bf16.msra.mxu0 0
    %998 = vmatprep.subr.bf16.mxu0 0
    %999 = vmatpush1.bf16.msra.mxu0 0
    %1000 = vmatprep.subr.bf16.mxu0 0
    %1001 = vmatpush1.bf16.msra.mxu0 0
    %1002 = vmatprep.subr.bf16.mxu0 0
    %1003 = vmatpush1.bf16.msra.mxu0 0
    %1004 = vmatprep.subr.bf16.mxu0 0
    %1005 = vmatpush1.bf16.msra.mxu0 0
    %1006 = vmatprep.subr.bf16.mxu0 0
    %1007 = vmatpush1.bf16.msra.mxu0 0
    %1008 = vmatprep.subr.bf16.mxu0 0
    %1009 = vmatpush1.bf16.msra.mxu0 0
    %1010 = vmatprep.subr.bf16.mxu0 0
    %1011 = vmatpush1.bf16.msra.mxu0 0
    %1012 = vmatprep.subr.bf16.mxu0 0
    %1013 = vmatpush1.bf16.msra.mxu0 0
    %1014 = vmatprep.subr.bf16.mxu0 0
    %1015 = vmatpush1.bf16.msra.mxu0 0
    %1016 = vmatprep.mubr.bf16.mxu0 0
    %1017 = vmatmul.mubr.bf16.gmra.mrb[0].mxu0 %v982
    %v1018 = vpop.f32.mrb[0].mxu0
    %v1019 = vadd.f32 %v955, %v1018
    %v1020 = vpop.f32.mrb[0].mxu0
    %v1021 = vpop.f32.mrb[0].mxu0
    %v1022 = vpop.f32.mrb[0].mxu0
    %1023 = vdwg.mxu0
    %v1024 = vmul.f32 %v1019, 0.5
    %v1025 = vmul.f32 %v1019, 0.70710677
    %v1026 = verf.f32.pop %v1025
    %v1027 = vadd.f32 %v1026, 1.0
    %v1028 = vmul.f32 %v1024, %v1027
    %v1029 = vpack.c.bf16 %v1028, %v1028
    %v1030 = vld [vmem:[%s14] sm:$0xf]
    %v1031 = vld [vmem:[%s14 + $0x4] sm:$0xf]
    %v1032 = vld [vmem:[%s14 + $0x8] sm:$0xf]
    %v1033 = vld [vmem:[%s14 + $0xc] sm:$0xf]
    %v1034 = vld [vmem:[%s15] sm:$0x1]
    %v1036 = vlaneseq
    %v1037 = vshrl.u32 %v1036, 7
    %v1038 = vsub.s32 0, %v1037
    %v1039 = vrot.slane %v1034, %v1038
    %v1045 = vunpack.c.l.b16 %v1030
    %v1046 = vunpack.c.l.b16 %v1031
    %v1047 = vunpack.c.l.b16 %v1032
    %v1048 = vunpack.c.l.b16 %v1033
    %v1049 = vpack.c.b16 %v1046, %v1045
    %v1050 = vpack.c.b16 %v1048, %v1047
    %vm1053 = vcmask 261120
    %v1055 = vsel %vm1053, %v1029, 0
    %1057 = vmatprep.subr.bf16.mxu0 0
    %1058 = vmatpush1.bf16.msra.mxu0 %v1049
    %1059 = vmatprep.subr.bf16.mxu0 0
    %1060 = vmatpush1.bf16.msra.mxu0 %v1050
    %1061 = vmatprep.subr.bf16.mxu0 0
    %1062 = vmatpush1.bf16.msra.mxu0 0
    %1063 = vmatprep.subr.bf16.mxu0 0
    %1064 = vmatpush1.bf16.msra.mxu0 0
    %1065 = vmatprep.subr.bf16.mxu0 0
    %1066 = vmatpush1.bf16.msra.mxu0 0
    %1067 = vmatprep.subr.bf16.mxu0 0
    %1068 = vmatpush1.bf16.msra.mxu0 0
    %1069 = vmatprep.subr.bf16.mxu0 0
    %1070 = vmatpush1.bf16.msra.mxu0 0
    %1071 = vmatprep.subr.bf16.mxu0 0
    %1072 = vmatpush1.bf16.msra.mxu0 0
    %1073 = vmatprep.subr.bf16.mxu0 0
    %1074 = vmatpush1.bf16.msra.mxu0 0
    %1075 = vmatprep.subr.bf16.mxu0 0
    %1076 = vmatpush1.bf16.msra.mxu0 0
    %1077 = vmatprep.subr.bf16.mxu0 0
    %1078 = vmatpush1.bf16.msra.mxu0 0
    %1079 = vmatprep.subr.bf16.mxu0 0
    %1080 = vmatpush1.bf16.msra.mxu0 0
    %1081 = vmatprep.subr.bf16.mxu0 0
    %1082 = vmatpush1.bf16.msra.mxu0 0
    %1083 = vmatprep.subr.bf16.mxu0 0
    %1084 = vmatpush1.bf16.msra.mxu0 0
    %1085 = vmatprep.subr.bf16.mxu0 0
    %1086 = vmatpush1.bf16.msra.mxu0 0
    %1087 = vmatprep.subr.bf16.mxu0 0
    %1088 = vmatpush1.bf16.msra.mxu0 0
    %1089 = vmatprep.mubr.bf16.mxu0 0
    %1090 = vmatmul.mubr.bf16.gmra.mrb[0].mxu0 %v1055
    %v1091 = vpop.f32.mrb[0].mxu0
    %v1092 = vadd.f32 %v1039, %v1091
    %v1093 = vpop.f32.mrb[0].mxu0
    %v1094 = vpop.f32.mrb[0].mxu0
    %v1095 = vpop.f32.mrb[0].mxu0
    %1096 = vdwg.mxu0
    %vm1097 = vcmask 9216
    %1098 = vst.msk [vmem:[#allocation2] sm:$0x3] %vm1097, %v1092
    // Predicated region
    $region66: #{msfaet_forward.5} parent=1 // pred_check
      _
    $region67: #{msfaet_forward.5} parent=1 // pred_check_branch
      %1100 = sbr.rel (0) target = $region69
    $region68: #{msfaet_forward.5} parent=1 // pred_region
      %s1102 = ssub.s32 32, 32
      %1103 = vsyncadd [#allocation3], %s1102
      %s1105 = sshll.u32 [#allocation2], 4
      %s1106 = int_to_ptr.vmem [resolvable:$true] %s1105
      %1108 = dma.vmem_to_hbm [thread:$0]  %s1106, 32, %s16, [#allocation3]
    $region69: #{msfaet_forward.5} parent=1 // pred_fallthru
      _
    // Predicated region
    $region70: #{msfaet_forward.5} parent=1 // pred_check
      _
    $region71: #{msfaet_forward.5} parent=1 // pred_check_branch
      %1110 = sbr.rel (0) target = $region73
    $region72: #{msfaet_forward.5} parent=1 // pred_region
      %1111 = dma.done [#allocation3], 32
    $region73: #{msfaet_forward.5} parent=1 // pred_fallthru
      _
    %1112 = vsyncpa [#allocation3], 1

// kernel: msfaet_forward.4
$region0: #{msfaet_forward.4}
  #allocation0 [shape = 'u32[]', space=smem, size = 0x4, offset = 0x4, fixed_abs, tag = 'smem constant byte address 0x4 - core index']
  #allocation1 [shape = 'u32[144,128]{1,0:T(1,128)}', space=vmem, size = 0x12000, scoped, tag = 'internal scratch']
  #allocation2 [shape = 'f32[32,64]{1,0:T(8,128)}', space=vmem, size = 0x4000, scoped, tag = 'scratch operand']
  %s0 = inlined_call_operand.vmem [shape: bf16[32,64], index: 0, kind: input, shape index: {}]
  %s1 = inlined_call_operand.vmem [shape: f32[32,32], index: 1, kind: input, shape index: {}]
  %s2 = inlined_call_operand.vmem [shape: f32[32,32], index: 2, kind: input, shape index: {}]
  %s3 = inlined_call_operand.vmem [shape: f32[256,64], index: 3, kind: input, shape index: {}]
  %s4 = inlined_call_operand.vmem [shape: f32[2,1,64], index: 4, kind: input, shape index: {}]
  %s5 = inlined_call_operand.vmem [shape: f32[2,1,64], index: 5, kind: input, shape index: {}]
  %s6 = inlined_call_operand.vmem [shape: bf16[2,64,192], index: 6, kind: input, shape index: {}]
  %s7 = inlined_call_operand.vmem [shape: f32[2,1,192], index: 7, kind: input, shape index: {}]
  %s8 = inlined_call_operand.vmem [shape: bf16[2,64,256], index: 8, kind: input, shape index: {}]
  %s9 = inlined_call_operand.vmem [shape: bf16[2,64,64], index: 9, kind: input, shape index: {}]
  %s10 = inlined_call_operand.vmem [shape: f32[2,1,64], index: 10, kind: input, shape index: {}]
  %s11 = inlined_call_operand.vmem [shape: f32[2,3,64], index: 11, kind: input, shape index: {}]
  %s12 = inlined_call_operand.vmem [shape: f32[2,1,64], index: 12, kind: input, shape index: {}]
  %s13 = inlined_call_operand.vmem [shape: f32[2,1,64], index: 13, kind: input, shape index: {}]
  %s14 = inlined_call_operand.vmem [shape: f32[2,1,64], index: 14, kind: input, shape index: {}]
  %s15 = inlined_call_operand.vmem [shape: bf16[2,64,512], index: 15, kind: input, shape index: {}]
  %s16 = inlined_call_operand.vmem [shape: f32[2,1,512], index: 16, kind: input, shape index: {}]
  %s17 = inlined_call_operand.vmem [shape: bf16[2,256,64], index: 17, kind: input, shape index: {}]
  %s18 = inlined_call_operand.vmem [shape: f32[2,1,64], index: 18, kind: input, shape index: {}]
  %s19 = inlined_call_operand.vmem [shape: bf16[32,64], index: 19, kind: output, shape index: {}]
  %s20 = sld [smem:[#allocation0]]
  $region113: #{msfaet_forward.4} parent=0
    _
  %s22 = ssub.s32 1, %s20
  %s23 = scalar_select 0, %s22, %s20
  loop: start=0, step=1, limit=4
  $region2: #{msfaet_forward.4} parent=0 // loop_pre_header
    _
  $region3: #{msfaet_forward.4} parent=0 // loop_header
    %s25 = sphi 0, %s29
    %p26 = scmp.ge.s32.totalorder %s25, 4
    %s33 = sphi 0, %s33
    %s35 = sphi 0, %s33
    %s36 = sphi 0, %s35
    %s50 = sphi 0, %s36
    %s54 = sphi 0, %s54
    %s56 = sphi 0, %s54
    %s57 = sphi 0, %s56
    %s71 = sphi 0, %s57
    %s75 = sphi 0, %s75
    %s77 = sphi 0, %s75
    %s78 = sphi 0, %s77
    %s92 = sphi 0, %s78
    %s96 = sphi 0, %s96
    %s98 = sphi 0, %s96
    %s99 = sphi 0, %s98
    %s113 = sphi 0, %s99
    %s119 = sphi 0, %s121
    %s122 = sphi 0, %s119
    %s123 = sphi 0, %s122
    %s139 = sphi 0, %s123
    %s145 = sphi 0, %s147
    %s148 = sphi 0, %s145
    %s149 = sphi 0, %s148
    %s165 = sphi 0, %s149
    %s171 = sphi 0, %s173
    %s174 = sphi 0, %s171
    %s175 = sphi 0, %s174
    %s191 = sphi 0, %s175
    %s197 = sphi 0, %s199
    %s200 = sphi 0, %s197
    %s201 = sphi 0, %s200
    %s217 = sphi 0, %s201
    %s223 = sphi 0, %s225
    %s226 = sphi 0, %s223
    %s227 = sphi 0, %s226
    %s243 = sphi 0, %s227
    %s249 = sphi 0, %s251
    %s252 = sphi 0, %s249
    %s253 = sphi 0, %s252
    %s269 = sphi 0, %s253
    %s275 = sphi 0, %s277
    %s278 = sphi 0, %s275
    %s279 = sphi 0, %s278
    %s295 = sphi 0, %s279
    %s301 = sphi 0, %s303
    %s304 = sphi 0, %s301
    %s305 = sphi 0, %s304
    %s321 = sphi 0, %s305
    %s327 = sphi 0, %s329
    %s330 = sphi 0, %s327
    %s331 = sphi 0, %s330
    %s347 = sphi 0, %s331
    %s353 = sphi 0, %s355
    %s356 = sphi 0, %s353
    %s357 = sphi 0, %s356
    %s373 = sphi 0, %s357
    %s379 = sphi 0, %s381
    %s382 = sphi 0, %s379
    %s383 = sphi 0, %s382
    %s399 = sphi 0, %s383
    %s405 = sphi 0, %s407
    %s408 = sphi 0, %s405
    %s409 = sphi 0, %s408
    %s425 = sphi 0, %s409
    %s431 = sphi 0, %s433
    %s434 = sphi 0, %s431
    %s435 = sphi 0, %s434
    %s451 = sphi 0, %s435
    %s457 = sphi 0, %s459
    %s460 = sphi 0, %s457
    %s461 = sphi 0, %s460
    %s477 = sphi 0, %s461
    %s483 = sphi 0, %s485
    %s486 = sphi 0, %s483
    %s487 = sphi 0, %s486
    %s503 = sphi 0, %s487
    %s507 = sphi 0, %s507
    %s509 = sphi 0, %s507
    %s510 = sphi 0, %s509
    %s524 = sphi 0, %s510
  $region4: #{msfaet_forward.4} parent=0 // loop_header_branch
    %28 = sbr.rel (%p26) target = $region8
  $region5: #{msfaet_forward.4} parent=0 // loop_body
    %s30 = ssub.s32 %s25, 1
    %s31 = ssub.s32 %s25, 2
    %s32 = sadd.s32 %s25, 1
    %s34 = sadd.s32 %s33, 1
    %p37 = scmp.eq.s32.totalorder %s25, 1
    %p38 = scmp.ne.s32.totalorder %s33, %s35
    %p39 = scmp.eq.s32.totalorder %s25, 0
    %p40 = por %p38, %p39
    %p41 = scmp.ne.s32.totalorder %s33, %s35
    %p42 = scmp.eq.s32.totalorder %s30, 1
    %p43 = por %p41, %p42
    %p44 = scmp.ne.s32.totalorder %s35, %s36
    %p45 = scmp.eq.s32.totalorder %s30, 0
    %p46 = por %p44, %p45
    %p47 = scmp.ne.s32.totalorder %s35, %s36
    %p48 = scmp.eq.s32.totalorder %s31, 1
    %p49 = por %p47, %p48
    %p51 = scmp.ne.s32.totalorder %s36, %s50
    %p52 = scmp.eq.s32.totalorder %s31, 0
    %p53 = por %p51, %p52
    %s55 = sadd.s32 %s54, 1
    %p58 = scmp.eq.s32.totalorder %s25, 1
    %p59 = scmp.ne.s32.totalorder %s54, %s56
    %p60 = scmp.eq.s32.totalorder %s25, 0
    %p61 = por %p59, %p60
    %p62 = scmp.ne.s32.totalorder %s54, %s56
    %p63 = scmp.eq.s32.totalorder %s30, 1
    %p64 = por %p62, %p63
    %p65 = scmp.ne.s32.totalorder %s56, %s57
    %p66 = scmp.eq.s32.totalorder %s30, 0
    %p67 = por %p65, %p66
    %p68 = scmp.ne.s32.totalorder %s56, %s57
    %p69 = scmp.eq.s32.totalorder %s31, 1
    %p70 = por %p68, %p69
    %p72 = scmp.ne.s32.totalorder %s57, %s71
    %p73 = scmp.eq.s32.totalorder %s31, 0
    %p74 = por %p72, %p73
    %s76 = sadd.s32 %s75, 1
    %p79 = scmp.eq.s32.totalorder %s25, 1
    %p80 = scmp.ne.s32.totalorder %s75, %s77
    %p81 = scmp.eq.s32.totalorder %s25, 0
    %p82 = por %p80, %p81
    %p83 = scmp.ne.s32.totalorder %s75, %s77
    %p84 = scmp.eq.s32.totalorder %s30, 1
    %p85 = por %p83, %p84
    %p86 = scmp.ne.s32.totalorder %s77, %s78
    %p87 = scmp.eq.s32.totalorder %s30, 0
    %p88 = por %p86, %p87
    %p89 = scmp.ne.s32.totalorder %s77, %s78
    %p90 = scmp.eq.s32.totalorder %s31, 1
    %p91 = por %p89, %p90
    %p93 = scmp.ne.s32.totalorder %s78, %s92
    %p94 = scmp.eq.s32.totalorder %s31, 0
    %p95 = por %p93, %p94
    %s97 = sadd.s32 %s96, 1
    %p100 = scmp.eq.s32.totalorder %s25, 1
    %p101 = scmp.ne.s32.totalorder %s96, %s98
    %p102 = scmp.eq.s32.totalorder %s25, 0
    %p103 = por %p101, %p102
    %p104 = scmp.ne.s32.totalorder %s96, %s98
    %p105 = scmp.eq.s32.totalorder %s30, 1
    %p106 = por %p104, %p105
    %p107 = scmp.ne.s32.totalorder %s98, %s99
    %p108 = scmp.eq.s32.totalorder %s30, 0
    %p109 = por %p107, %p108
    %p110 = scmp.ne.s32.totalorder %s98, %s99
    %p111 = scmp.eq.s32.totalorder %s31, 1
    %p112 = por %p110, %p111
    %p114 = scmp.ne.s32.totalorder %s99, %s113
    %p115 = scmp.eq.s32.totalorder %s31, 0
    %p116 = por %p114, %p115
    %s117 = ssub.s32 %s25, %s32
    %p118 = scmp.eq.s32.totalorder %s117, 0
    %s120 = sadd.s32 %s119, 1
    %s121 = scalar_select %p118, %s119, %s120
    %p124 = pneg %p118
    %p125 = scmp.eq.s32.totalorder %s25, 1
    %p126 = por %p124, %p125
    %p127 = scmp.ne.s32.totalorder %s119, %s122
    %p128 = scmp.eq.s32.totalorder %s25, 0
    %p129 = por %p127, %p128
    %p130 = scmp.ne.s32.totalorder %s119, %s122
    %p131 = scmp.eq.s32.totalorder %s30, 1
    %p132 = por %p130, %p131
    %p133 = scmp.ne.s32.totalorder %s122, %s123
    %p134 = scmp.eq.s32.totalorder %s30, 0
    %p135 = por %p133, %p134
    %p136 = scmp.ne.s32.totalorder %s122, %s123
    %p137 = scmp.eq.s32.totalorder %s31, 1
    %p138 = por %p136, %p137
    %p140 = scmp.ne.s32.totalorder %s123, %s139
    %p141 = scmp.eq.s32.totalorder %s31, 0
    %p142 = por %p140, %p141
    %s143 = ssub.s32 %s25, %s32
    %p144 = scmp.eq.s32.totalorder %s143, 0
    %s146 = sadd.s32 %s145, 1
    %s147 = scalar_select %p144, %s145, %s146
    %p150 = pneg %p144
    %p151 = scmp.eq.s32.totalorder %s25, 1
    %p152 = por %p150, %p151
    %p153 = scmp.ne.s32.totalorder %s145, %s148
    %p154 = scmp.eq.s32.totalorder %s25, 0
    %p155 = por %p153, %p154
    %p156 = scmp.ne.s32.totalorder %s145, %s148
    %p157 = scmp.eq.s32.totalorder %s30, 1
    %p158 = por %p156, %p157
    %p159 = scmp.ne.s32.totalorder %s148, %s149
    %p160 = scmp.eq.s32.totalorder %s30, 0
    %p161 = por %p159, %p160
    %p162 = scmp.ne.s32.totalorder %s148, %s149
    %p163 = scmp.eq.s32.totalorder %s31, 1
    %p164 = por %p162, %p163
    %p166 = scmp.ne.s32.totalorder %s149, %s165
    %p167 = scmp.eq.s32.totalorder %s31, 0
    %p168 = por %p166, %p167
    %s169 = ssub.s32 %s25, %s32
    %p170 = scmp.eq.s32.totalorder %s169, 0
    %s172 = sadd.s32 %s171, 1
    %s173 = scalar_select %p170, %s171, %s172
    %p176 = pneg %p170
    %p177 = scmp.eq.s32.totalorder %s25, 1
    %p178 = por %p176, %p177
    %p179 = scmp.ne.s32.totalorder %s171, %s174
    %p180 = scmp.eq.s32.totalorder %s25, 0
    %p181 = por %p179, %p180
    %p182 = scmp.ne.s32.totalorder %s171, %s174
    %p183 = scmp.eq.s32.totalorder %s30, 1
    %p184 = por %p182, %p183
    %p185 = scmp.ne.s32.totalorder %s174, %s175
    %p186 = scmp.eq.s32.totalorder %s30, 0
    %p187 = por %p185, %p186
    %p188 = scmp.ne.s32.totalorder %s174, %s175
    %p189 = scmp.eq.s32.totalorder %s31, 1
    %p190 = por %p188, %p189
    %p192 = scmp.ne.s32.totalorder %s175, %s191
    %p193 = scmp.eq.s32.totalorder %s31, 0
    %p194 = por %p192, %p193
    %s195 = ssub.s32 %s25, %s32
    %p196 = scmp.eq.s32.totalorder %s195, 0
    %s198 = sadd.s32 %s197, 1
    %s199 = scalar_select %p196, %s197, %s198
    %p202 = pneg %p196
    %p203 = scmp.eq.s32.totalorder %s25, 1
    %p204 = por %p202, %p203
    %p205 = scmp.ne.s32.totalorder %s197, %s200
    %p206 = scmp.eq.s32.totalorder %s25, 0
    %p207 = por %p205, %p206
    %p208 = scmp.ne.s32.totalorder %s197, %s200
    %p209 = scmp.eq.s32.totalorder %s30, 1
    %p210 = por %p208, %p209
    %p211 = scmp.ne.s32.totalorder %s200, %s201
    %p212 = scmp.eq.s32.totalorder %s30, 0
    %p213 = por %p211, %p212
    %p214 = scmp.ne.s32.totalorder %s200, %s201
    %p215 = scmp.eq.s32.totalorder %s31, 1
    %p216 = por %p214, %p215
    %p218 = scmp.ne.s32.totalorder %s201, %s217
    %p219 = scmp.eq.s32.totalorder %s31, 0
    %p220 = por %p218, %p219
    %s221 = ssub.s32 %s25, %s32
    %p222 = scmp.eq.s32.totalorder %s221, 0
    %s224 = sadd.s32 %s223, 1
    %s225 = scalar_select %p222, %s223, %s224
    %p228 = pneg %p222
    %p229 = scmp.eq.s32.totalorder %s25, 1
    %p230 = por %p228, %p229
    %p231 = scmp.ne.s32.totalorder %s223, %s226
    %p232 = scmp.eq.s32.totalorder %s25, 0
    %p233 = por %p231, %p232
    %p234 = scmp.ne.s32.totalorder %s223, %s226
    %p235 = scmp.eq.s32.totalorder %s30, 1
    %p236 = por %p234, %p235
    %p237 = scmp.ne.s32.totalorder %s226, %s227
    %p238 = scmp.eq.s32.totalorder %s30, 0
    %p239 = por %p237, %p238
    %p240 = scmp.ne.s32.totalorder %s226, %s227
    %p241 = scmp.eq.s32.totalorder %s31, 1
    %p242 = por %p240, %p241
    %p244 = scmp.ne.s32.totalorder %s227, %s243
    %p245 = scmp.eq.s32.totalorder %s31, 0
    %p246 = por %p244, %p245
    %s247 = ssub.s32 %s25, %s32
    %p248 = scmp.eq.s32.totalorder %s247, 0
    %s250 = sadd.s32 %s249, 1
    %s251 = scalar_select %p248, %s249, %s250
    %p254 = pneg %p248
    %p255 = scmp.eq.s32.totalorder %s25, 1
    %p256 = por %p254, %p255
    %p257 = scmp.ne.s32.totalorder %s249, %s252
    %p258 = scmp.eq.s32.totalorder %s25, 0
    %p259 = por %p257, %p258
    %p260 = scmp.ne.s32.totalorder %s249, %s252
    %p261 = scmp.eq.s32.totalorder %s30, 1
    %p262 = por %p260, %p261
    %p263 = scmp.ne.s32.totalorder %s252, %s253
    %p264 = scmp.eq.s32.totalorder %s30, 0
    %p265 = por %p263, %p264
    %p266 = scmp.ne.s32.totalorder %s252, %s253
    %p267 = scmp.eq.s32.totalorder %s31, 1
    %p268 = por %p266, %p267
    %p270 = scmp.ne.s32.totalorder %s253, %s269
    %p271 = scmp.eq.s32.totalorder %s31, 0
    %p272 = por %p270, %p271
    %s273 = ssub.s32 %s25, %s32
    %p274 = scmp.eq.s32.totalorder %s273, 0
    %s276 = sadd.s32 %s275, 1
    %s277 = scalar_select %p274, %s275, %s276
    %p280 = pneg %p274
    %p281 = scmp.eq.s32.totalorder %s25, 1
    %p282 = por %p280, %p281
    %p283 = scmp.ne.s32.totalorder %s275, %s278
    %p284 = scmp.eq.s32.totalorder %s25, 0
    %p285 = por %p283, %p284
    %p286 = scmp.ne.s32.totalorder %s275, %s278
    %p287 = scmp.eq.s32.totalorder %s30, 1
    %p288 = por %p286, %p287
    %p289 = scmp.ne.s32.totalorder %s278, %s279
    %p290 = scmp.eq.s32.totalorder %s30, 0
    %p291 = por %p289, %p290
    %p292 = scmp.ne.s32.totalorder %s278, %s279
    %p293 = scmp.eq.s32.totalorder %s31, 1
    %p294 = por %p292, %p293
    %p296 = scmp.ne.s32.totalorder %s279, %s295
    %p297 = scmp.eq.s32.totalorder %s31, 0
    %p298 = por %p296, %p297
    %s299 = ssub.s32 %s25, %s32
    %p300 = scmp.eq.s32.totalorder %s299, 0
    %s302 = sadd.s32 %s301, 1
    %s303 = scalar_select %p300, %s301, %s302
    %p306 = pneg %p300
    %p307 = scmp.eq.s32.totalorder %s25, 1
    %p308 = por %p306, %p307
    %p309 = scmp.ne.s32.totalorder %s301, %s304
    %p310 = scmp.eq.s32.totalorder %s25, 0
    %p311 = por %p309, %p310
    %p312 = scmp.ne.s32.totalorder %s301, %s304
    %p313 = scmp.eq.s32.totalorder %s30, 1
    %p314 = por %p312, %p313
    %p315 = scmp.ne.s32.totalorder %s304, %s305
    %p316 = scmp.eq.s32.totalorder %s30, 0
    %p317 = por %p315, %p316
    %p318 = scmp.ne.s32.totalorder %s304, %s305
    %p319 = scmp.eq.s32.totalorder %s31, 1
    %p320 = por %p318, %p319
    %p322 = scmp.ne.s32.totalorder %s305, %s321
    %p323 = scmp.eq.s32.totalorder %s31, 0
    %p324 = por %p322, %p323
    %s325 = ssub.s32 %s25, %s32
    %p326 = scmp.eq.s32.totalorder %s325, 0
    %s328 = sadd.s32 %s327, 1
    %s329 = scalar_select %p326, %s327, %s328
    %p332 = pneg %p326
    %p333 = scmp.eq.s32.totalorder %s25, 1
    %p334 = por %p332, %p333
    %p335 = scmp.ne.s32.totalorder %s327, %s330
    %p336 = scmp.eq.s32.totalorder %s25, 0
    %p337 = por %p335, %p336
    %p338 = scmp.ne.s32.totalorder %s327, %s330
    %p339 = scmp.eq.s32.totalorder %s30, 1
    %p340 = por %p338, %p339
    %p341 = scmp.ne.s32.totalorder %s330, %s331
    %p342 = scmp.eq.s32.totalorder %s30, 0
    %p343 = por %p341, %p342
    %p344 = scmp.ne.s32.totalorder %s330, %s331
    %p345 = scmp.eq.s32.totalorder %s31, 1
    %p346 = por %p344, %p345
    %p348 = scmp.ne.s32.totalorder %s331, %s347
    %p349 = scmp.eq.s32.totalorder %s31, 0
    %p350 = por %p348, %p349
    %s351 = ssub.s32 %s25, %s32
    %p352 = scmp.eq.s32.totalorder %s351, 0
    %s354 = sadd.s32 %s353, 1
    %s355 = scalar_select %p352, %s353, %s354
    %p358 = pneg %p352
    %p359 = scmp.eq.s32.totalorder %s25, 1
    %p360 = por %p358, %p359
    %p361 = scmp.ne.s32.totalorder %s353, %s356
    %p362 = scmp.eq.s32.totalorder %s25, 0
    %p363 = por %p361, %p362
    %p364 = scmp.ne.s32.totalorder %s353, %s356
    %p365 = scmp.eq.s32.totalorder %s30, 1
    %p366 = por %p364, %p365
    %p367 = scmp.ne.s32.totalorder %s356, %s357
    %p368 = scmp.eq.s32.totalorder %s30, 0
    %p369 = por %p367, %p368
    %p370 = scmp.ne.s32.totalorder %s356, %s357
    %p371 = scmp.eq.s32.totalorder %s31, 1
    %p372 = por %p370, %p371
    %p374 = scmp.ne.s32.totalorder %s357, %s373
    %p375 = scmp.eq.s32.totalorder %s31, 0
    %p376 = por %p374, %p375
    %s377 = ssub.s32 %s25, %s32
    %p378 = scmp.eq.s32.totalorder %s377, 0
    %s380 = sadd.s32 %s379, 1
    %s381 = scalar_select %p378, %s379, %s380
    %p384 = pneg %p378
    %p385 = scmp.eq.s32.totalorder %s25, 1
    %p386 = por %p384, %p385
    %p387 = scmp.ne.s32.totalorder %s379, %s382
    %p388 = scmp.eq.s32.totalorder %s25, 0
    %p389 = por %p387, %p388
    %p390 = scmp.ne.s32.totalorder %s379, %s382
    %p391 = scmp.eq.s32.totalorder %s30, 1
    %p392 = por %p390, %p391
    %p393 = scmp.ne.s32.totalorder %s382, %s383
    %p394 = scmp.eq.s32.totalorder %s30, 0
    %p395 = por %p393, %p394
    %p396 = scmp.ne.s32.totalorder %s382, %s383
    %p397 = scmp.eq.s32.totalorder %s31, 1
    %p398 = por %p396, %p397
    %p400 = scmp.ne.s32.totalorder %s383, %s399
    %p401 = scmp.eq.s32.totalorder %s31, 0
    %p402 = por %p400, %p401
    %s403 = ssub.s32 %s25, %s32
    %p404 = scmp.eq.s32.totalorder %s403, 0
    %s406 = sadd.s32 %s405, 1
    %s407 = scalar_select %p404, %s405, %s406
    %p410 = pneg %p404
    %p411 = scmp.eq.s32.totalorder %s25, 1
    %p412 = por %p410, %p411
    %p413 = scmp.ne.s32.totalorder %s405, %s408
    %p414 = scmp.eq.s32.totalorder %s25, 0
    %p415 = por %p413, %p414
    %p416 = scmp.ne.s32.totalorder %s405, %s408
    %p417 = scmp.eq.s32.totalorder %s30, 1
    %p418 = por %p416, %p417
    %p419 = scmp.ne.s32.totalorder %s408, %s409
    %p420 = scmp.eq.s32.totalorder %s30, 0
    %p421 = por %p419, %p420
    %p422 = scmp.ne.s32.totalorder %s408, %s409
    %p423 = scmp.eq.s32.totalorder %s31, 1
    %p424 = por %p422, %p423
    %p426 = scmp.ne.s32.totalorder %s409, %s425
    %p427 = scmp.eq.s32.totalorder %s31, 0
    %p428 = por %p426, %p427
    %s429 = ssub.s32 %s25, %s32
    %p430 = scmp.eq.s32.totalorder %s429, 0
    %s432 = sadd.s32 %s431, 1
    %s433 = scalar_select %p430, %s431, %s432
    %p436 = pneg %p430
    %p437 = scmp.eq.s32.totalorder %s25, 1
    %p438 = por %p436, %p437
    %p439 = scmp.ne.s32.totalorder %s431, %s434
    %p440 = scmp.eq.s32.totalorder %s25, 0
    %p441 = por %p439, %p440
    %p442 = scmp.ne.s32.totalorder %s431, %s434
    %p443 = scmp.eq.s32.totalorder %s30, 1
    %p444 = por %p442, %p443
    %p445 = scmp.ne.s32.totalorder %s434, %s435
    %p446 = scmp.eq.s32.totalorder %s30, 0
    %p447 = por %p445, %p446
    %p448 = scmp.ne.s32.totalorder %s434, %s435
    %p449 = scmp.eq.s32.totalorder %s31, 1
    %p450 = por %p448, %p449
    %p452 = scmp.ne.s32.totalorder %s435, %s451
    %p453 = scmp.eq.s32.totalorder %s31, 0
    %p454 = por %p452, %p453
    %s455 = ssub.s32 %s25, %s32
    %p456 = scmp.eq.s32.totalorder %s455, 0
    %s458 = sadd.s32 %s457, 1
    %s459 = scalar_select %p456, %s457, %s458
    %p462 = pneg %p456
    %p463 = scmp.eq.s32.totalorder %s25, 1
    %p464 = por %p462, %p463
    %p465 = scmp.ne.s32.totalorder %s457, %s460
    %p466 = scmp.eq.s32.totalorder %s25, 0
    %p467 = por %p465, %p466
    %p468 = scmp.ne.s32.totalorder %s457, %s460
    %p469 = scmp.eq.s32.totalorder %s30, 1
    %p470 = por %p468, %p469
    %p471 = scmp.ne.s32.totalorder %s460, %s461
    %p472 = scmp.eq.s32.totalorder %s30, 0
    %p473 = por %p471, %p472
    %p474 = scmp.ne.s32.totalorder %s460, %s461
    %p475 = scmp.eq.s32.totalorder %s31, 1
    %p476 = por %p474, %p475
    %p478 = scmp.ne.s32.totalorder %s461, %s477
    %p479 = scmp.eq.s32.totalorder %s31, 0
    %p480 = por %p478, %p479
    %s481 = ssub.s32 %s25, %s32
    %p482 = scmp.eq.s32.totalorder %s481, 0
    %s484 = sadd.s32 %s483, 1
    %s485 = scalar_select %p482, %s483, %s484
    %p488 = pneg %p482
    %p489 = scmp.eq.s32.totalorder %s25, 1
    %p490 = por %p488, %p489
    %p491 = scmp.ne.s32.totalorder %s483, %s486
    %p492 = scmp.eq.s32.totalorder %s25, 0
    %p493 = por %p491, %p492
    %p494 = scmp.ne.s32.totalorder %s483, %s486
    %p495 = scmp.eq.s32.totalorder %s30, 1
    %p496 = por %p494, %p495
    %p497 = scmp.ne.s32.totalorder %s486, %s487
    %p498 = scmp.eq.s32.totalorder %s30, 0
    %p499 = por %p497, %p498
    %p500 = scmp.ne.s32.totalorder %s486, %s487
    %p501 = scmp.eq.s32.totalorder %s31, 1
    %p502 = por %p500, %p501
    %p504 = scmp.ne.s32.totalorder %s487, %s503
    %p505 = scmp.eq.s32.totalorder %s31, 0
    %p506 = por %p504, %p505
    %s508 = sadd.s32 %s507, 1
    %p511 = scmp.eq.s32.totalorder %s25, 1
    %p512 = scmp.ne.s32.totalorder %s507, %s509
    %p513 = scmp.eq.s32.totalorder %s25, 0
    %p514 = por %p512, %p513
    %p515 = scmp.ne.s32.totalorder %s507, %s509
    %p516 = scmp.eq.s32.totalorder %s30, 1
    %p517 = por %p515, %p516
    %p518 = scmp.ne.s32.totalorder %s509, %s510
    %p519 = scmp.eq.s32.totalorder %s30, 0
    %p520 = por %p518, %p519
    %p521 = scmp.ne.s32.totalorder %s509, %s510
    %p522 = scmp.eq.s32.totalorder %s31, 1
    %p523 = por %p521, %p522
    %p525 = scmp.ne.s32.totalorder %s510, %s524
    %p526 = scmp.eq.s32.totalorder %s31, 0
    %p527 = por %p525, %p526
    %p528 = scmp.le.s32.totalorder 1, %s25
    %p529 = scmp.lt.s32.totalorder %s25, 3
    %p530 = pnand %p528, %p529
    %p531 = pneg %p530
    // Predicated region
    $region9: #{msfaet_forward.4} parent=5 // pred_check
      _
    $region10: #{msfaet_forward.4} parent=5 // pred_check_branch
      %533 = sbr.rel (%p530) target = $region12
    $region11: #{msfaet_forward.4} parent=5 // pred_region
      %s534 = ssub.s32 %s25, 1
      // Predicated region
      $region13: #{msfaet_forward.4} parent=11 // pred_check
        %p535 = pneg %p46
      $region14: #{msfaet_forward.4} parent=11 // pred_check_branch
        %537 = sbr.rel (%p535) target = $region16
      $region15: #{msfaet_forward.4} parent=11 // pred_region
        _
      $region16: #{msfaet_forward.4} parent=11 // pred_fallthru
        _
      // Predicated region
      $region17: #{msfaet_forward.4} parent=11 // pred_check
        %p538 = pneg %p67
      $region18: #{msfaet_forward.4} parent=11 // pred_check_branch
        %540 = sbr.rel (%p538) target = $region20
      $region19: #{msfaet_forward.4} parent=11 // pred_region
        _
      $region20: #{msfaet_forward.4} parent=11 // pred_fallthru
        _
      // Predicated region
      $region21: #{msfaet_forward.4} parent=11 // pred_check
        %p541 = pneg %p88
      $region22: #{msfaet_forward.4} parent=11 // pred_check_branch
        %543 = sbr.rel (%p541) target = $region24
      $region23: #{msfaet_forward.4} parent=11 // pred_region
        _
      $region24: #{msfaet_forward.4} parent=11 // pred_fallthru
        _
      // Predicated region
      $region25: #{msfaet_forward.4} parent=11 // pred_check
        %p544 = pneg %p109
      $region26: #{msfaet_forward.4} parent=11 // pred_check_branch
        %546 = sbr.rel (%p544) target = $region28
      $region27: #{msfaet_forward.4} parent=11 // pred_region
        _
      $region28: #{msfaet_forward.4} parent=11 // pred_fallthru
        _
    $region12: #{msfaet_forward.4} parent=5 // pred_fallthru
      _
    %p547 = scmp.lt.s32.totalorder %s25, 2
    // Predicated region
    $region29: #{msfaet_forward.4} parent=5 // pred_check
      %p548 = pneg %p547
    $region30: #{msfaet_forward.4} parent=5 // pred_check_branch
      %550 = sbr.rel (%p548) target = $region32
    $region31: #{msfaet_forward.4} parent=5 // pred_region
      // Predicated region
      $region33: #{msfaet_forward.4} parent=31 // pred_check
        %p551 = pneg %p129
      $region34: #{msfaet_forward.4} parent=31 // pred_check_branch
        %553 = sbr.rel (%p551) target = $region36
      $region35: #{msfaet_forward.4} parent=31 // pred_region
        %p554 = scmp.lt.s32.totalorder %s25, 1
        %s555 = scalar_select %p554, %s25, 1
        %s556 = scalar_lea.vmem %s4, %s555
      $region36: #{msfaet_forward.4} parent=31 // pred_fallthru
        _
      // Predicated region
      $region37: #{msfaet_forward.4} parent=31 // pred_check
        %p557 = pneg %p155
      $region38: #{msfaet_forward.4} parent=31 // pred_check_branch
        %559 = sbr.rel (%p557) target = $region40
      $region39: #{msfaet_forward.4} parent=31 // pred_region
        %p560 = scmp.lt.s32.totalorder %s25, 1
        %s561 = scalar_select %p560, %s25, 1
        %s562 = scalar_lea.vmem %s5, %s561
      $region40: #{msfaet_forward.4} parent=31 // pred_fallthru
        _
      // Predicated region
      $region41: #{msfaet_forward.4} parent=31 // pred_check
        %p563 = pneg %p181
      $region42: #{msfaet_forward.4} parent=31 // pred_check_branch
        %565 = sbr.rel (%p563) target = $region44
      $region43: #{msfaet_forward.4} parent=31 // pred_region
        %p566 = scmp.lt.s32.totalorder %s25, 1
        %s567 = scalar_select %p566, %s25, 1
        %s568 = smul.addr %s567, 16
        %s569 = smul.addr %s568, 4
        %s570 = scalar_lea.vmem %s6, %s569
      $region44: #{msfaet_forward.4} parent=31 // pred_fallthru
        _
      // Predicated region
      $region45: #{msfaet_forward.4} parent=31 // pred_check
        %p571 = pneg %p207
      $region46: #{msfaet_forward.4} parent=31 // pred_check_branch
        %573 = sbr.rel (%p571) target = $region48
      $region47: #{msfaet_forward.4} parent=31 // pred_region
        %p574 = scmp.lt.s32.totalorder %s25, 1
        %s575 = scalar_select %p574, %s25, 1
        %s576 = smul.addr %s575, 2
        %s577 = scalar_lea.vmem %s7, %s576
      $region48: #{msfaet_forward.4} parent=31 // pred_fallthru
        _
      // Predicated region
      $region49: #{msfaet_forward.4} parent=31 // pred_check
        %p578 = pneg %p233
      $region50: #{msfaet_forward.4} parent=31 // pred_check_branch
        %580 = sbr.rel (%p578) target = $region52
      $region51: #{msfaet_forward.4} parent=31 // pred_region
        %p581 = scmp.lt.s32.totalorder %s25, 1
        %s582 = scalar_select %p581, %s25, 1
        %s583 = smul.addr %s582, 16
        %s584 = smul.addr %s583, 4
        %s585 = scalar_lea.vmem %s8, %s584
      $region52: #{msfaet_forward.4} parent=31 // pred_fallthru
        _
      // Predicated region
      $region53: #{msfaet_forward.4} parent=31 // pred_check
        %p586 = pneg %p259
      $region54: #{msfaet_forward.4} parent=31 // pred_check_branch
        %588 = sbr.rel (%p586) target = $region56
      $region55: #{msfaet_forward.4} parent=31 // pred_region
        %p589 = scmp.lt.s32.totalorder %s25, 1
        %s590 = scalar_select %p589, %s25, 1
        %s591 = smul.addr %s590, 8
        %s592 = smul.addr %s591, 4
        %s593 = scalar_lea.vmem %s9, %s592
      $region56: #{msfaet_forward.4} parent=31 // pred_fallthru
        _
      // Predicated region
      $region57: #{msfaet_forward.4} parent=31 // pred_check
        %p594 = pneg %p285
      $region58: #{msfaet_forward.4} parent=31 // pred_check_branch
        %596 = sbr.rel (%p594) target = $region60
      $region59: #{msfaet_forward.4} parent=31 // pred_region
        %p597 = scmp.lt.s32.totalorder %s25, 1
        %s598 = scalar_select %p597, %s25, 1
        %s599 = scalar_lea.vmem %s10, %s598
      $region60: #{msfaet_forward.4} parent=31 // pred_fallthru
        _
      // Predicated region
      $region61: #{msfaet_forward.4} parent=31 // pred_check
        %p600 = pneg %p311
      $region62: #{msfaet_forward.4} parent=31 // pred_check_branch
        %602 = sbr.rel (%p600) target = $region64
      $region63: #{msfaet_forward.4} parent=31 // pred_region
        %p603 = scmp.lt.s32.totalorder %s25, 1
        %s604 = scalar_select %p603, %s25, 1
        %s605 = smul.addr %s604, 4
        %s606 = scalar_lea.vmem %s11, %s605
      $region64: #{msfaet_forward.4} parent=31 // pred_fallthru
        _
      // Predicated region
      $region65: #{msfaet_forward.4} parent=31 // pred_check
        %p607 = pneg %p337
      $region66: #{msfaet_forward.4} parent=31 // pred_check_branch
        %609 = sbr.rel (%p607) target = $region68
      $region67: #{msfaet_forward.4} parent=31 // pred_region
        %p610 = scmp.lt.s32.totalorder %s25, 1
        %s611 = scalar_select %p610, %s25, 1
        %s612 = scalar_lea.vmem %s12, %s611
      $region68: #{msfaet_forward.4} parent=31 // pred_fallthru
        _
      // Predicated region
      $region69: #{msfaet_forward.4} parent=31 // pred_check
        %p613 = pneg %p363
      $region70: #{msfaet_forward.4} parent=31 // pred_check_branch
        %615 = sbr.rel (%p613) target = $region72
      $region71: #{msfaet_forward.4} parent=31 // pred_region
        %p616 = scmp.lt.s32.totalorder %s25, 1
        %s617 = scalar_select %p616, %s25, 1
        %s618 = scalar_lea.vmem %s13, %s617
      $region72: #{msfaet_forward.4} parent=31 // pred_fallthru
        _
      // Predicated region
      $region73: #{msfaet_forward.4} parent=31 // pred_check
        %p619 = pneg %p389
      $region74: #{msfaet_forward.4} parent=31 // pred_check_branch
        %621 = sbr.rel (%p619) target = $region76
      $region75: #{msfaet_forward.4} parent=31 // pred_region
        %p622 = scmp.lt.s32.totalorder %s25, 1
        %s623 = scalar_select %p622, %s25, 1
        %s624 = scalar_lea.vmem %s14, %s623
      $region76: #{msfaet_forward.4} parent=31 // pred_fallthru
        _
      // Predicated region
      $region77: #{msfaet_forward.4} parent=31 // pred_check
        %p625 = pneg %p415
      $region78: #{msfaet_forward.4} parent=31 // pred_check_branch
        %627 = sbr.rel (%p625) target = $region80
      $region79: #{msfaet_forward.4} parent=31 // pred_region
        %p628 = scmp.lt.s32.totalorder %s25, 1
        %s629 = scalar_select %p628, %s25, 1
        %s630 = smul.addr %s629, 32
        %s631 = smul.addr %s630, 4
        %s632 = scalar_lea.vmem %s15, %s631
      $region80: #{msfaet_forward.4} parent=31 // pred_fallthru
        _
      // Predicated region
      $region81: #{msfaet_forward.4} parent=31 // pred_check
        %p633 = pneg %p441
      $region82: #{msfaet_forward.4} parent=31 // pred_check_branch
        %635 = sbr.rel (%p633) target = $region84
      $region83: #{msfaet_forward.4} parent=31 // pred_region
        %p636 = scmp.lt.s32.totalorder %s25, 1
        %s637 = scalar_select %p636, %s25, 1
        %s638 = smul.addr %s637, 4
        %s639 = scalar_lea.vmem %s16, %s638
      $region84: #{msfaet_forward.4} parent=31 // pred_fallthru
        _
      // Predicated region
      $region85: #{msfaet_forward.4} parent=31 // pred_check
        %p640 = pneg %p467
      $region86: #{msfaet_forward.4} parent=31 // pred_check_branch
        %642 = sbr.rel (%p640) target = $region88
      $region87: #{msfaet_forward.4} parent=31 // pred_region
        %p643 = scmp.lt.s32.totalorder %s25, 1
        %s644 = scalar_select %p643, %s25, 1
        %s645 = smul.addr %s644, 32
        %s646 = smul.addr %s645, 4
        %s647 = scalar_lea.vmem %s17, %s646
      $region88: #{msfaet_forward.4} parent=31 // pred_fallthru
        _
      // Predicated region
      $region89: #{msfaet_forward.4} parent=31 // pred_check
        %p648 = pneg %p493
      $region90: #{msfaet_forward.4} parent=31 // pred_check_branch
        %650 = sbr.rel (%p648) target = $region92
      $region91: #{msfaet_forward.4} parent=31 // pred_region
        %p651 = scmp.lt.s32.totalorder %s25, 1
        %s652 = scalar_select %p651, %s25, 1
        %s653 = scalar_lea.vmem %s18, %s652
      $region92: #{msfaet_forward.4} parent=31 // pred_fallthru
        _
    $region32: #{msfaet_forward.4} parent=5 // pred_fallthru
      _
    %p654 = scmp.le.s32.totalorder 1, %s25
    %p655 = scmp.lt.s32.totalorder %s25, 3
    %p656 = pnand %p654, %p655
    %p657 = pneg %p656
    // Predicated region
    $region93: #{msfaet_forward.4} parent=5 // pred_check
      _
    $region94: #{msfaet_forward.4} parent=5 // pred_check_branch
      %659 = sbr.rel (%p656) target = $region96
    $region95: #{msfaet_forward.4} parent=5 // pred_region
      %s660 = ssub.s32 %s25, 1
      %p661 = pneg %p46
      %p662 = pneg %p43
      %p663 = pneg %p67
      %p664 = pneg %p64
      %p665 = pneg %p88
      %p666 = pneg %p85
      %p667 = pneg %p109
      %p668 = pneg %p106
      %p669 = scmp.lt.s32.totalorder %s30, 1
      %s670 = scalar_select %p669, %s30, 1
      %s671 = scalar_lea.vmem %s4, %s670
      %p672 = pneg %p135
      %p673 = pneg %p132
      %p674 = scmp.lt.s32.totalorder %s30, 1
      %s675 = scalar_select %p674, %s30, 1
      %s676 = scalar_lea.vmem %s5, %s675
      %p677 = pneg %p161
      %p678 = pneg %p158
      %p679 = scmp.lt.s32.totalorder %s30, 1
      %s680 = scalar_select %p679, %s30, 1
      %s681 = smul.addr %s680, 16
      %s682 = smul.addr %s681, 4
      %s683 = scalar_lea.vmem %s6, %s682
      %p684 = pneg %p187
      %p685 = pneg %p184
      %p686 = scmp.lt.s32.totalorder %s30, 1
      %s687 = scalar_select %p686, %s30, 1
      %s688 = smul.addr %s687, 2
      %s689 = scalar_lea.vmem %s7, %s688
      %p690 = pneg %p213
      %p691 = pneg %p210
      %p692 = scmp.lt.s32.totalorder %s30, 1
      %s693 = scalar_select %p692, %s30, 1
      %s694 = smul.addr %s693, 16
      %s695 = smul.addr %s694, 4
      %s696 = scalar_lea.vmem %s8, %s695
      %p697 = pneg %p239
      %p698 = pneg %p236
      %p699 = scmp.lt.s32.totalorder %s30, 1
      %s700 = scalar_select %p699, %s30, 1
      %s701 = smul.addr %s700, 8
      %s702 = smul.addr %s701, 4
      %s703 = scalar_lea.vmem %s9, %s702
      %p704 = pneg %p265
      %p705 = pneg %p262
      %p706 = scmp.lt.s32.totalorder %s30, 1
      %s707 = scalar_select %p706, %s30, 1
      %s708 = scalar_lea.vmem %s10, %s707
      %p709 = pneg %p291
      %p710 = pneg %p288
      %p711 = scmp.lt.s32.totalorder %s30, 1
      %s712 = scalar_select %p711, %s30, 1
      %s713 = smul.addr %s712, 4
      %s714 = scalar_lea.vmem %s11, %s713
      %p715 = pneg %p317
      %p716 = pneg %p314
      %p717 = scmp.lt.s32.totalorder %s30, 1
      %s718 = scalar_select %p717, %s30, 1
      %s719 = scalar_lea.vmem %s12, %s718
      %p720 = pneg %p343
      %p721 = pneg %p340
      %p722 = scmp.lt.s32.totalorder %s30, 1
      %s723 = scalar_select %p722, %s30, 1
      %s724 = scalar_lea.vmem %s13, %s723
      %p725 = pneg %p369
      %p726 = pneg %p366
      %p727 = scmp.lt.s32.totalorder %s30, 1
      %s728 = scalar_select %p727, %s30, 1
      %s729 = scalar_lea.vmem %s14, %s728
      %p730 = pneg %p395
      %p731 = pneg %p392
      %p732 = scmp.lt.s32.totalorder %s30, 1
      %s733 = scalar_select %p732, %s30, 1
      %s734 = smul.addr %s733, 32
      %s735 = smul.addr %s734, 4
      %s736 = scalar_lea.vmem %s15, %s735
      %p737 = pneg %p421
      %p738 = pneg %p418
      %p739 = scmp.lt.s32.totalorder %s30, 1
      %s740 = scalar_select %p739, %s30, 1
      %s741 = smul.addr %s740, 4
      %s742 = scalar_lea.vmem %s16, %s741
      %p743 = pneg %p447
      %p744 = pneg %p444
      %p745 = scmp.lt.s32.totalorder %s30, 1
      %s746 = scalar_select %p745, %s30, 1
      %s747 = smul.addr %s746, 32
      %s748 = smul.addr %s747, 4
      %s749 = scalar_lea.vmem %s17, %s748
      %p750 = pneg %p473
      %p751 = pneg %p470
      %p752 = scmp.lt.s32.totalorder %s30, 1
      %s753 = scalar_select %p752, %s30, 1
      %s754 = scalar_lea.vmem %s18, %s753
      %p755 = pneg %p499
      %p756 = pneg %p496
      %p757 = pneg %p520
      %p758 = pneg %p517
      %p759 = scmp.lt.s32.totalorder %s30, 1
      %s760 = scalar_select %p759, %s30, 1
      %s761 = scalar_lea.vmem %s4, %s760
      %p762 = scmp.lt.s32.totalorder %s30, 1
      %s763 = scalar_select %p762, %s30, 1
      %s764 = scalar_lea.vmem %s5, %s763
      %p765 = scmp.lt.s32.totalorder %s30, 1
      %s766 = scalar_select %p765, %s30, 1
      %s767 = smul.addr %s766, 16
      %s768 = smul.addr %s767, 4
      %s769 = scalar_lea.vmem %s6, %s768
      %p770 = scmp.lt.s32.totalorder %s30, 1
      %s771 = scalar_select %p770, %s30, 1
      %s772 = smul.addr %s771, 2
      %s773 = scalar_lea.vmem %s7, %s772
      %p774 = scmp.lt.s32.totalorder %s30, 1
      %s775 = scalar_select %p774, %s30, 1
      %s776 = smul.addr %s775, 16
      %s777 = smul.addr %s776, 4
      %s778 = scalar_lea.vmem %s8, %s777
      %p779 = scmp.lt.s32.totalorder %s30, 1
      %s780 = scalar_select %p779, %s30, 1
      %s781 = smul.addr %s780, 8
      %s782 = smul.addr %s781, 4
      %s783 = scalar_lea.vmem %s9, %s782
      %p784 = scmp.lt.s32.totalorder %s30, 1
      %s785 = scalar_select %p784, %s30, 1
      %s786 = scalar_lea.vmem %s10, %s785
      %p787 = scmp.lt.s32.totalorder %s30, 1
      %s788 = scalar_select %p787, %s30, 1
      %s789 = smul.addr %s788, 4
      %s790 = scalar_lea.vmem %s11, %s789
      %p791 = scmp.lt.s32.totalorder %s30, 1
      %s792 = scalar_select %p791, %s30, 1
      %s793 = scalar_lea.vmem %s12, %s792
      %p794 = scmp.lt.s32.totalorder %s30, 1
      %s795 = scalar_select %p794, %s30, 1
      %s796 = scalar_lea.vmem %s13, %s795
      %p797 = scmp.lt.s32.totalorder %s30, 1
      %s798 = scalar_select %p797, %s30, 1
      %s799 = scalar_lea.vmem %s14, %s798
      %p800 = scmp.lt.s32.totalorder %s30, 1
      %s801 = scalar_select %p800, %s30, 1
      %s802 = smul.addr %s801, 32
      %s803 = smul.addr %s802, 4
      %s804 = scalar_lea.vmem %s15, %s803
      %p805 = scmp.lt.s32.totalorder %s30, 1
      %s806 = scalar_select %p805, %s30, 1
      %s807 = smul.addr %s806, 4
      %s808 = scalar_lea.vmem %s16, %s807
      %p809 = scmp.lt.s32.totalorder %s30, 1
      %s810 = scalar_select %p809, %s30, 1
      %s811 = smul.addr %s810, 32
      %s812 = smul.addr %s811, 4
      %s813 = scalar_lea.vmem %s17, %s812
      %p814 = scmp.lt.s32.totalorder %s30, 1
      %s815 = scalar_select %p814, %s30, 1
      %s816 = scalar_lea.vmem %s18, %s815
      %p818 = scmp.eq.s32.totalorder %s30, 0
      // Predicated region
      $region97: #{msfaet_forward.4} parent=95 // pred_check
        %p819 = pneg %p818
      $region98: #{msfaet_forward.4} parent=95 // pred_check_branch
        %821 = sbr.rel (%p819) target = $region100
      $region99: #{msfaet_forward.4} parent=95 // pred_region
        %v822 = vld [vmem:[%s0] sm:$0xf]
        %v823 = vld [vmem:[%s0 + $0x4] sm:$0xf]
        %v824 = vld [vmem:[%s0 + $0x8] sm:$0xf]
        %v825 = vld [vmem:[%s0 + $0xc] sm:$0xf]
        %v826 = vunpack.c.l.bf16 %v822
        %v827 = vunpack.c.l.bf16 %v823
        %v828 = vunpack.c.l.bf16 %v824
        %v829 = vunpack.c.l.bf16 %v825
        %vm830 = vcmask 523264
        %831 = vst.msk [vmem:[#allocation2] sm:$0xff] %vm830, %v826
        %832 = vst.msk [vmem:[#allocation2 + $0x8] sm:$0xff] %vm830, %v827
        %833 = vst.msk [vmem:[#allocation2 + $0x10] sm:$0xff] %vm830, %v828
        %834 = vst.msk [vmem:[#allocation2 + $0x18] sm:$0xff] %vm830, %v829
      $region100: #{msfaet_forward.4} parent=95 // pred_fallthru
        _
      %v835 = vld [vmem:[#allocation2] sm:$0xff]
      %v836 = vld [vmem:[#allocation2 + $0x8] sm:$0xff]
      %v837 = vld [vmem:[#allocation2 + $0x10] sm:$0xff]
      %v838 = vld [vmem:[#allocation2 + $0x18] sm:$0xff]
      %v839 = vld [vmem:[%s761] sm:$0x1]
      %v840 = vld [vmem:[%s764] sm:$0x1]
      %vm841 = vcmask 523264
      %v842 = vsel %vm841, %v835, 0.0
      %843 = vadd.xlane.f32.xlu0 %v842
      %v844 = vpop.xlane.xlu0 %843
      %v845 = vsel %vm841, %v836, 0.0
      %846 = vadd.xlane.f32.xlu0 %v845
      %v847 = vpop.xlane.xlu0 %846
      %v848 = vsel %vm841, %v837, 0.0
      %849 = vadd.xlane.f32.xlu0 %v848
      %v850 = vpop.xlane.xlu0 %849
      %v851 = vsel %vm841, %v838, 0.0
      %852 = vadd.xlane.f32.xlu0 %v851
      %v853 = vpop.xlane.xlu0 %852
      %v854 = vrcp.pop 64.0
      %v855 = vmul.f32 %v844, %v854
      %v856 = vmul.f32 %v847, %v854
      %v857 = vmul.f32 %v850, %v854
      %v858 = vmul.f32 %v853, %v854
      %v859 = vsub.f32 %v835, %v855
      %v860 = vsub.f32 %v836, %v856
      %v861 = vsub.f32 %v837, %v857
      %v862 = vsub.f32 %v838, %v858
      %v863 = vmul.f32 %v859, %v859
      %v864 = vmul.f32 %v860, %v860
      %v865 = vmul.f32 %v861, %v861
      %v866 = vmul.f32 %v862, %v862
      %v867 = vsel %vm841, %v863, 0.0
      %868 = vadd.xlane.f32.xlu0 %v867
      %v869 = vpop.xlane.xlu0 %868
      %v870 = vsel %vm841, %v864, 0.0
      %871 = vadd.xlane.f32.xlu0 %v870
      %v872 = vpop.xlane.xlu0 %871
      %v873 = vsel %vm841, %v865, 0.0
      %874 = vadd.xlane.f32.xlu0 %v873
      %v875 = vpop.xlane.xlu0 %874
      %v876 = vsel %vm841, %v866, 0.0
      %877 = vadd.xlane.f32.xlu0 %v876
      %v878 = vpop.xlane.xlu0 %877
      %v879 = vmul.f32 %v869, %v854
      %v880 = vmul.f32 %v872, %v854
      %v881 = vmul.f32 %v875, %v854
      %v882 = vmul.f32 %v878, %v854
      %v883 = vadd.f32 %v879, 1e-05
      %v884 = vadd.f32 %v880, 1e-05
      %v885 = vadd.f32 %v881, 1e-05
      %v886 = vadd.f32 %v882, 1e-05
      %v887 = vrsqrt.pop %v883
      %v888 = vrsqrt.pop %v884
      %v889 = vrsqrt.pop %v885
      %v890 = vrsqrt.pop %v886
      %v891 = vmul.f32 %v859, %v887
      %v892 = vmul.f32 %v860, %v888
      %v893 = vmul.f32 %v861, %v889
      %v894 = vmul.f32 %v862, %v890
      %v896 = vlaneseq
      %v897 = vshrl.u32 %v896, 7
      %v898 = vsub.s32 0, %v897
      %v899 = vrot.slane %v839, %v898
      %v901 = vmul.f32 %v891, %v899
      %v902 = vmul.f32 %v892, %v899
      %v903 = vmul.f32 %v893, %v899
      %v904 = vmul.f32 %v894, %v899
      %v906 = vlaneseq
      %v907 = vshrl.u32 %v906, 7
      %v908 = vsub.s32 0, %v907
      %v909 = vrot.slane %v840, %v908
      %v911 = vadd.f32 %v901, %v909
      %v912 = vadd.f32 %v902, %v909
      %v913 = vadd.f32 %v903, %v909
      %v914 = vadd.f32 %v904, %v909
      %v915 = vpack.c.bf16 %v912, %v911
      %v916 = vpack.c.bf16 %v914, %v913
      %v917 = vld [vmem:[%s769] sm:$0xff]
      %v918 = vld [vmem:[%s769 + $0x8] sm:$0xff]
      %v919 = vld [vmem:[%s769 + $0x10] sm:$0xff]
      %v920 = vld [vmem:[%s769 + $0x18] sm:$0xff]
      %v921 = vld [vmem:[%s769 + $0x20] sm:$0xff]
      %v922 = vld [vmem:[%s769 + $0x28] sm:$0xff]
      %v923 = vld [vmem:[%s769 + $0x30] sm:$0xff]
      %v924 = vld [vmem:[%s769 + $0x38] sm:$0xff]
      %v925 = vld [vmem:[%s773] sm:$0x3]
      %v927 = vlaneseq
      %v928 = vshrl.u32 %v927, 7
      %v929 = vsub.s32 0, %v928
      %v930 = vrot.slane %v925, %v929
      %v931 = vlaneseq
      %v932 = vshrl.u32 %v931, 7
      %v933 = vsub.s32 1, %v932
      %v934 = vrot.slane %v925, %v933
      %v945 = vunpack.c.l.b16 %v917
      %v946 = vunpack.c.h.b16 %v917
      %v947 = vunpack.c.l.b16 %v918
      %v948 = vunpack.c.h.b16 %v918
      %v949 = vunpack.c.l.b16 %v919
      %v950 = vunpack.c.h.b16 %v919
      %v951 = vunpack.c.l.b16 %v920
      %v952 = vunpack.c.h.b16 %v920
      %v953 = vunpack.c.l.b16 %v921
      %v954 = vunpack.c.h.b16 %v921
      %v955 = vunpack.c.l.b16 %v922
      %v956 = vunpack.c.h.b16 %v922
      %v957 = vunpack.c.l.b16 %v923
      %v958 = vunpack.c.h.b16 %v923
      %v959 = vunpack.c.l.b16 %v924
      %v960 = vunpack.c.h.b16 %v924
      %v961 = vpack.c.b16 %v947, %v945
      %v962 = vpack.c.b16 %v948, %v946
      %v963 = vpack.c.b16 %v951, %v949
      %v964 = vpack.c.b16 %v952, %v950
      %v965 = vpack.c.b16 %v955, %v953
      %v966 = vpack.c.b16 %v956, %v954
      %v967 = vpack.c.b16 %v959, %v957
      %v968 = vpack.c.b16 %v960, %v958
      %v978 = vsel %vm841, %v915, 0
      %v981 = vsel %vm841, %v916, 0
      %983 = vmatprep.subr.bf16.mxu0 %v962
      %984 = vmatpush1.bf16.msra.mxu0 %v961
      %985 = vmatprep.subr.bf16.mxu0 %v964
      %986 = vmatpush1.bf16.msra.mxu0 %v963
      %987 = vmatprep.subr.bf16.mxu0 %v966
      %988 = vmatpush1.bf16.msra.mxu0 %v965
      %989 = vmatprep.subr.bf16.mxu0 %v968
      %990 = vmatpush1.bf16.msra.mxu0 %v967
      %991 = vmatprep.subr.bf16.mxu0 0
      %992 = vmatpush1.bf16.msra.mxu0 0
      %993 = vmatprep.subr.bf16.mxu0 0
      %994 = vmatpush1.bf16.msra.mxu0 0
      %995 = vmatprep.subr.bf16.mxu0 0
      %996 = vmatpush1.bf16.msra.mxu0 0
      %997 = vmatprep.subr.bf16.mxu0 0
      %998 = vmatpush1.bf16.msra.mxu0 0
      %999 = vmatprep.subr.bf16.mxu0 0
      %1000 = vmatpush1.bf16.msra.mxu0 0
      %1001 = vmatprep.subr.bf16.mxu0 0
      %1002 = vmatpush1.bf16.msra.mxu0 0
      %1003 = vmatprep.subr.bf16.mxu0 0
      %1004 = vmatpush1.bf16.msra.mxu0 0
      %1005 = vmatprep.subr.bf16.mxu0 0
      %1006 = vmatpush1.bf16.msra.mxu0 0
      %1007 = vmatprep.subr.bf16.mxu0 0
      %1008 = vmatpush1.bf16.msra.mxu0 0
      %1009 = vmatprep.subr.bf16.mxu0 0
      %1010 = vmatpush1.bf16.msra.mxu0 0
      %1011 = vmatprep.subr.bf16.mxu0 0
      %1012 = vmatpush1.bf16.msra.mxu0 0
      %1013 = vmatprep.subr.bf16.mxu0 0
      %1014 = vmatpush1.bf16.msra.mxu0 0
      %1015 = vmatprep.mubr.bf16.mxu0 0
      %1016 = vmatmul.mubr.bf16.gmra.mrb[0].mxu0 %v978
      %v1017 = vpop.f32.mrb[0].mxu0
      %v1018 = vadd.f32 %v930, %v1017
      %v1019 = vpop.f32.mrb[0].mxu0
      %v1020 = vadd.f32 %v934, %v1019
      %v1021 = vpop.f32.mrb[0].mxu0
      %v1022 = vadd.f32 %v930, %v1021
      %v1023 = vpop.f32.mrb[0].mxu0
      %v1024 = vadd.f32 %v934, %v1023
      %1025 = vmatprep.mubr.bf16.mxu0 0
      %1026 = vmatmul.mubr.bf16.gmra.mrb[0].mxu0 %v981
      %v1027 = vpop.f32.mrb[0].mxu0
      %v1028 = vadd.f32 %v930, %v1027
      %v1029 = vpop.f32.mrb[0].mxu0
      %v1030 = vadd.f32 %v934, %v1029
      %v1031 = vpop.f32.mrb[0].mxu0
      %v1032 = vadd.f32 %v930, %v1031
      %v1033 = vpop.f32.mrb[0].mxu0
      %v1034 = vadd.f32 %v934, %v1033
      %1035 = vdwg.mxu0
      %v1036 = vld [vmem:[%s778] sm:$0xff]
      %v1037 = vld [vmem:[%s778 + $0x8] sm:$0xff]
      %v1038 = vld [vmem:[%s778 + $0x10] sm:$0xff]
      %v1039 = vld [vmem:[%s778 + $0x18] sm:$0xff]
      %v1040 = vld [vmem:[%s778 + $0x20] sm:$0xff]
      %v1041 = vld [vmem:[%s778 + $0x28] sm:$0xff]
      %v1042 = vld [vmem:[%s778 + $0x30] sm:$0xff]
      %v1043 = vld [vmem:[%s778 + $0x38] sm:$0xff]
      %v1044 = vpack.c.bf16 %v1022, %v1018
      %v1045 = vpack.c.bf16 %v1032, %v1028
      %v1054 = vunpack.c.l.b16 %v1036
      %v1055 = vunpack.c.h.b16 %v1036
      %v1056 = vunpack.c.l.b16 %v1037
      %v1057 = vunpack.c.h.b16 %v1037
      %v1058 = vunpack.c.l.b16 %v1038
      %v1059 = vunpack.c.h.b16 %v1038
      %v1060 = vunpack.c.l.b16 %v1039
      %v1061 = vunpack.c.h.b16 %v1039
      %v1062 = vunpack.c.l.b16 %v1040
      %v1063 = vunpack.c.h.b16 %v1040
      %v1064 = vunpack.c.l.b16 %v1041
      %v1065 = vunpack.c.h.b16 %v1041
      %v1066 = vunpack.c.l.b16 %v1042
      %v1067 = vunpack.c.h.b16 %v1042
      %v1068 = vunpack.c.l.b16 %v1043
      %v1069 = vunpack.c.h.b16 %v1043
      %v1070 = vpack.c.b16 %v1056, %v1054
      %v1071 = vpack.c.b16 %v1057, %v1055
      %v1072 = vpack.c.b16 %v1060, %v1058
      %v1073 = vpack.c.b16 %v1061, %v1059
      %v1074 = vpack.c.b16 %v1064, %v1062
      %v1075 = vpack.c.b16 %v1065, %v1063
      %v1076 = vpack.c.b16 %v1068, %v1066
      %v1077 = vpack.c.b16 %v1069, %v1067
      %v1087 = vsel %vm841, %v1044, 0
      %v1090 = vsel %vm841, %v1045, 0
      %1092 = vmatprep.subr.bf16.mxu0 %v1071
      %1093 = vmatpush1.bf16.msra.mxu0 %v1070
      %1094 = vmatprep.subr.bf16.mxu0 %v1073
      %1095 = vmatpush1.bf16.msra.mxu0 %v1072
      %1096 = vmatprep.subr.bf16.mxu0 %v1075
      %1097 = vmatpush1.bf16.msra.mxu0 %v1074
      %1098 = vmatprep.subr.bf16.mxu0 %v1077
      %1099 = vmatpush1.bf16.msra.mxu0 %v1076
      %1100 = vmatprep.subr.bf16.mxu0 0
      %1101 = vmatpush1.bf16.msra.mxu0 0
      %1102 = vmatprep.subr.bf16.mxu0 0
      %1103 = vmatpush1.bf16.msra.mxu0 0
      %1104 = vmatprep.subr.bf16.mxu0 0
      %1105 = vmatpush1.bf16.msra.mxu0 0
      %1106 = vmatprep.subr.bf16.mxu0 0
      %1107 = vmatpush1.bf16.msra.mxu0 0
      %1108 = vmatprep.subr.bf16.mxu0 0
      %1109 = vmatpush1.bf16.msra.mxu0 0
      %1110 = vmatprep.subr.bf16.mxu0 0
      %1111 = vmatpush1.bf16.msra.mxu0 0
      %1112 = vmatprep.subr.bf16.mxu0 0
      %1113 = vmatpush1.bf16.msra.mxu0 0
      %1114 = vmatprep.subr.bf16.mxu0 0
      %1115 = vmatpush1.bf16.msra.mxu0 0
      %1116 = vmatprep.subr.bf16.mxu0 0
      %1117 = vmatpush1.bf16.msra.mxu0 0
      %1118 = vmatprep.subr.bf16.mxu0 0
      %1119 = vmatpush1.bf16.msra.mxu0 0
      %1120 = vmatprep.subr.bf16.mxu0 0
      %1121 = vmatpush1.bf16.msra.mxu0 0
      %1122 = vmatprep.subr.bf16.mxu0 0
      %1123 = vmatpush1.bf16.msra.mxu0 0
      %1124 = vmatprep.mubr.bf16.mxu0 0
      %1125 = vmatmul.mubr.bf16.gmra.mrb[0].mxu0 %v1087
      %v1126 = vpop.f32.mrb[0].mxu0
      %v1127 = vadd.f32 0.0, %v1126
      %v1128 = vpop.f32.mrb[0].mxu0
      %v1129 = vadd.f32 0.0, %v1128
      %v1130 = vpop.f32.mrb[0].mxu0
      %v1131 = vadd.f32 0.0, %v1130
      %v1132 = vpop.f32.mrb[0].mxu0
      %v1133 = vadd.f32 0.0, %v1132
      %1134 = vmatprep.mubr.bf16.mxu0 0
      %1135 = vmatmul.mubr.bf16.gmra.mrb[0].mxu0 %v1090
      %v1136 = vpop.f32.mrb[0].mxu0
      %v1137 = vadd.f32 0.0, %v1136
      %v1138 = vpop.f32.mrb[0].mxu0
      %v1139 = vadd.f32 0.0, %v1138
      %v1140 = vpop.f32.mrb[0].mxu0
      %v1141 = vadd.f32 0.0, %v1140
      %v1142 = vpop.f32.mrb[0].mxu0
      %v1143 = vadd.f32 0.0, %v1142
      %1144 = vdwg.mxu0
      %v1145 = vmax.f32 %v1127, 0.0
      %v1146 = vmax.f32 %v1129, 0.0
      %v1147 = vmax.f32 %v1131, 0.0
      %v1148 = vmax.f32 %v1133, 0.0
      %v1149 = vmax.f32 %v1137, 0.0
      %v1150 = vmax.f32 %v1139, 0.0
      %v1151 = vmax.f32 %v1141, 0.0
      %v1152 = vmax.f32 %v1143, 0.0
      %1155 = vrot.lane.b32.xlu0 %v1044, 64
      %v1156 = vpop.permute.xlu0 %1155
      %1157 = vrot.lane.b32.xlu0 %v1045, 64
      %v1158 = vpop.permute.xlu0 %1157
      %v1160 = vsel %vm841, %v1156, 0
      %v1163 = vsel %vm841, %v1158, 0
      %1165 = vmatprep.subr.bf16.mxu0 %v1071
      %1166 = vmatpush1.bf16.msra.mxu0 %v1070
      %1167 = vmatprep.subr.bf16.mxu0 %v1073
      %1168 = vmatpush1.bf16.msra.mxu0 %v1072
      %1169 = vmatprep.subr.bf16.mxu0 %v1075
      %1170 = vmatpush1.bf16.msra.mxu0 %v1074
      %1171 = vmatprep.subr.bf16.mxu0 %v1077
      %1172 = vmatpush1.bf16.msra.mxu0 %v1076
      %1173 = vmatprep.subr.bf16.mxu0 0
      %1174 = vmatpush1.bf16.msra.mxu0 0
      %1175 = vmatprep.subr.bf16.mxu0 0
      %1176 = vmatpush1.bf16.msra.mxu0 0
      %1177 = vmatprep.subr.bf16.mxu0 0
      %1178 = vmatpush1.bf16.msra.mxu0 0
      %1179 = vmatprep.subr.bf16.mxu0 0
      %1180 = vmatpush1.bf16.msra.mxu0 0
      %1181 = vmatprep.subr.bf16.mxu0 0
      %1182 = vmatpush1.bf16.msra.mxu0 0
      %1183 = vmatprep.subr.bf16.mxu0 0
      %1184 = vmatpush1.bf16.msra.mxu0 0
      %1185 = vmatprep.subr.bf16.mxu0 0
      %1186 = vmatpush1.bf16.msra.mxu0 0
      %1187 = vmatprep.subr.bf16.mxu0 0
      %1188 = vmatpush1.bf16.msra.mxu0 0
      %1189 = vmatprep.subr.bf16.mxu0 0
      %1190 = vmatpush1.bf16.msra.mxu0 0
      %1191 = vmatprep.subr.bf16.mxu0 0
      %1192 = vmatpush1.bf16.msra.mxu0 0
      %1193 = vmatprep.subr.bf16.mxu0 0
      %1194 = vmatpush1.bf16.msra.mxu0 0
      %1195 = vmatprep.subr.bf16.mxu0 0
      %1196 = vmatpush1.bf16.msra.mxu0 0
      %1197 = vmatprep.mubr.bf16.mxu0 0
      %1198 = vmatmul.mubr.bf16.gmra.mrb[0].mxu0 %v1160
      %v1199 = vpop.f32.mrb[0].mxu0
      %v1200 = vadd.f32 0.0, %v1199
      %v1201 = vpop.f32.mrb[0].mxu0
      %v1202 = vadd.f32 0.0, %v1201
      %v1203 = vpop.f32.mrb[0].mxu0
      %v1204 = vadd.f32 0.0, %v1203
      %v1205 = vpop.f32.mrb[0].mxu0
      %v1206 = vadd.f32 0.0, %v1205
      %1207 = vmatprep.mubr.bf16.mxu0 0
      %1208 = vmatmul.mubr.bf16.gmra.mrb[0].mxu0 %v1163
      %v1209 = vpop.f32.mrb[0].mxu0
      %v1210 = vadd.f32 0.0, %v1209
      %v1211 = vpop.f32.mrb[0].mxu0
      %v1212 = vadd.f32 0.0, %v1211
      %v1213 = vpop.f32.mrb[0].mxu0
      %v1214 = vadd.f32 0.0, %v1213
      %v1215 = vpop.f32.mrb[0].mxu0
      %v1216 = vadd.f32 0.0, %v1215
      %1217 = vdwg.mxu0
      %v1218 = vmax.f32 %v1200, 0.0
      %v1219 = vmax.f32 %v1202, 0.0
      %v1220 = vmax.f32 %v1204, 0.0
      %v1221 = vmax.f32 %v1206, 0.0
      %v1222 = vmax.f32 %v1210, 0.0
      %v1223 = vmax.f32 %v1212, 0.0
      %v1224 = vmax.f32 %v1214, 0.0
      %v1225 = vmax.f32 %v1216, 0.0
      %v1226 = vld [vmem:[%s3] sm:$0xff]
      %v1227 = vld [vmem:[%s3 + $0x8] sm:$0xff]
      %v1228 = vld [vmem:[%s3 + $0x10] sm:$0xff]
      %v1229 = vld [vmem:[%s3 + $0x18] sm:$0xff]
      %v1230 = vld [vmem:[%s3 + $0x20] sm:$0xff]
      %v1231 = vld [vmem:[%s3 + $0x28] sm:$0xff]
      %v1232 = vld [vmem:[%s3 + $0x30] sm:$0xff]
      %v1233 = vld [vmem:[%s3 + $0x38] sm:$0xff]
      %v1234 = vld [vmem:[%s3 + $0x40] sm:$0xff]
      %v1235 = vld [vmem:[%s3 + $0x48] sm:$0xff]
      %v1236 = vld [vmem:[%s3 + $0x50] sm:$0xff]
      %v1237 = vld [vmem:[%s3 + $0x58] sm:$0xff]
      %v1238 = vld [vmem:[%s3 + $0x60] sm:$0xff]
      %v1239 = vld [vmem:[%s3 + $0x68] sm:$0xff]
      %v1240 = vld [vmem:[%s3 + $0x70] sm:$0xff]
      %v1241 = vld [vmem:[%s3 + $0x78] sm:$0xff]
      %v1242 = vld [vmem:[%s3 + $0x80] sm:$0xff]
      %v1243 = vld [vmem:[%s3 + $0x88] sm:$0xff]
      %v1244 = vld [vmem:[%s3 + $0x90] sm:$0xff]
      %v1245 = vld [vmem:[%s3 + $0x98] sm:$0xff]
      %v1246 = vld [vmem:[%s3 + $0xa0] sm:$0xff]
      %v1247 = vld [vmem:[%s3 + $0xa8] sm:$0xff]
      %v1248 = vld [vmem:[%s3 + $0xb0] sm:$0xff]
      %v1249 = vld [vmem:[%s3 + $0xb8] sm:$0xff]
      %v1250 = vld [vmem:[%s3 + $0xc0] sm:$0xff]
      %v1251 = vld [vmem:[%s3 + $0xc8] sm:$0xff]
      %v1252 = vld [vmem:[%s3 + $0xd0] sm:$0xff]
      %v1253 = vld [vmem:[%s3 + $0xd8] sm:$0xff]
      %v1254 = vld [vmem:[%s3 + $0xe0] sm:$0xff]
      %v1255 = vld [vmem:[%s3 + $0xe8] sm:$0xff]
      %v1256 = vld [vmem:[%s3 + $0xf0] sm:$0xff]
      %v1257 = vld [vmem:[%s3 + $0xf8] sm:$0xff]
      %1258 = vxpose.xlu0.b32.start [1/16] %v1218, 128
      %1259 = vxpose.xlu0.b32.cont [2/16] %v1220, 128
      %1260 = vxpose.xlu0.b32.cont [3/16] 0.0, 128
      %1261 = vxpose.xlu0.b32.cont [4/16] 0.0, 128
      %1262 = vxpose.xlu0.b32.cont [5/16] 0.0, 128
      %1263 = vxpose.xlu0.b32.cont [6/16] 0.0, 128
      %1264 = vxpose.xlu0.b32.cont [7/16] 0.0, 128
      %1265 = vxpose.xlu0.b32.cont [8/16] 0.0, 128
      %1266 = vxpose.xlu0.b32.cont [9/16] 0.0, 128
      %1267 = vxpose.xlu0.b32.cont [10/16] 0.0, 128
      %1268 = vxpose.xlu0.b32.cont [11/16] 0.0, 128
      %1269 = vxpose.xlu0.b32.cont [12/16] 0.0, 128
      %1270 = vxpose.xlu0.b32.cont [13/16] 0.0, 128
      %1271 = vxpose.xlu0.b32.cont [14/16] 0.0, 128
      %1272 = vxpose.xlu0.b32.cont [15/16] 0.0, 128
      %1273 = vxpose.xlu0.b32.end [16/16] 0.0, 128
      %v1274 = vpop.trf.xlu0
      %v1275 = vpop.trf.xlu0
      %v1276 = vpop.trf.xlu0
      %v1277 = vpop.trf.xlu0
      %v1278 = vpop.trf.xlu0
      %v1279 = vpop.trf.xlu0
      %v1280 = vpop.trf.xlu0
      %v1281 = vpop.trf.xlu0
      %v1282 = vpop.trf.xlu0
      %v1283 = vpop.trf.xlu0
      %v1284 = vpop.trf.xlu0
      %v1285 = vpop.trf.xlu0
      %v1286 = vpop.trf.xlu0
      %v1287 = vpop.trf.xlu0
      %v1288 = vpop.trf.xlu0
      %v1289 = vpop.trf.xlu0
      %1290 = vxpose.xlu0.b32.start [1/16] %v1219, 128
      %1291 = vxpose.xlu0.b32.cont [2/16] %v1221, 128
      %1292 = vxpose.xlu0.b32.cont [3/16] 0.0, 128
      %1293 = vxpose.xlu0.b32.cont [4/16] 0.0, 128
      %1294 = vxpose.xlu0.b32.cont [5/16] 0.0, 128
      %1295 = vxpose.xlu0.b32.cont [6/16] 0.0, 128
      %1296 = vxpose.xlu0.b32.cont [7/16] 0.0, 128
      %1297 = vxpose.xlu0.b32.cont [8/16] 0.0, 128
      %1298 = vxpose.xlu0.b32.cont [9/16] 0.0, 128
      %1299 = vxpose.xlu0.b32.cont [10/16] 0.0, 128
      %1300 = vxpose.xlu0.b32.cont [11/16] 0.0, 128
      %1301 = vxpose.xlu0.b32.cont [12/16] 0.0, 128
      %1302 = vxpose.xlu0.b32.cont [13/16] 0.0, 128
      %1303 = vxpose.xlu0.b32.cont [14/16] 0.0, 128
      %1304 = vxpose.xlu0.b32.cont [15/16] 0.0, 128
      %1305 = vxpose.xlu0.b32.end [16/16] 0.0, 128
      %v1306 = vpop.trf.xlu0
      %v1307 = vpop.trf.xlu0
      %v1308 = vpop.trf.xlu0
      %v1309 = vpop.trf.xlu0
      %v1310 = vpop.trf.xlu0
      %v1311 = vpop.trf.xlu0
      %v1312 = vpop.trf.xlu0
      %v1313 = vpop.trf.xlu0
      %v1314 = vpop.trf.xlu0
      %v1315 = vpop.trf.xlu0
      %v1316 = vpop.trf.xlu0
      %v1317 = vpop.trf.xlu0
      %v1318 = vpop.trf.xlu0
      %v1319 = vpop.trf.xlu0
      %v1320 = vpop.trf.xlu0
      %v1321 = vpop.trf.xlu0
      %vm1322 = vcmask 130048
      %v1324 = vsel %vm1322, %v1274, 0
      %v1327 = vsel %vm1322, %v1275, 0
      %v1330 = vsel %vm1322, %v1276, 0
      %v1333 = vsel %vm1322, %v1277, 0
      %v1336 = vsel %vm1322, %v1278, 0
      %v1339 = vsel %vm1322, %v1279, 0
      %v1342 = vsel %vm1322, %v1280, 0
      %v1345 = vsel %vm1322, %v1281, 0
      %v1348 = vsel %vm1322, %v1282, 0
      %v1351 = vsel %vm1322, %v1283, 0
      %v1354 = vsel %vm1322, %v1284, 0
      %v1357 = vsel %vm1322, %v1285, 0
      %v1360 = vsel %vm1322, %v1286, 0
      %v1363 = vsel %vm1322, %v1287, 0
      %v1366 = vsel %vm1322, %v1288, 0
      %v1369 = vsel %vm1322, %v1289, 0
      %v1372 = vsel %vm1322, %v1306, 0
      %v1375 = vsel %vm1322, %v1307, 0
      %v1378 = vsel %vm1322, %v1308, 0
      %v1381 = vsel %vm1322, %v1309, 0
      %v1384 = vsel %vm1322, %v1310, 0
      %v1387 = vsel %vm1322, %v1311, 0
      %v1390 = vsel %vm1322, %v1312, 0
      %v1393 = vsel %vm1322, %v1313, 0
      %v1396 = vsel %vm1322, %v1314, 0
      %v1399 = vsel %vm1322, %v1315, 0
      %v1402 = vsel %vm1322, %v1316, 0
      %v1405 = vsel %vm1322, %v1317, 0
      %v1408 = vsel %vm1322, %v1318, 0
      %v1411 = vsel %vm1322, %v1319, 0
      %v1414 = vsel %vm1322, %v1320, 0
      %v1417 = vsel %vm1322, %v1321, 0
      %1419 = vmatprep.subr.mxu0 0.0
      %1420 = vmatpush1.msra.mxu0 %v1020
      %1421 = vmatprep.subr.mxu0 0.0
      %1422 = vmatpush1.msra.mxu0 %v1024
      %1423 = vmatprep.subr.mxu0 0.0
      %1424 = vmatpush1.msra.mxu0 0.0
      %1425 = vmatprep.subr.mxu0 0.0
      %1426 = vmatpush1.msra.mxu0 0.0
      %1427 = vmatprep.subr.mxu0 0.0
      %1428 = vmatpush1.msra.mxu0 0.0
      %1429 = vmatprep.subr.mxu0 0.0
      %1430 = vmatpush1.msra.mxu0 0.0
      %1431 = vmatprep.subr.mxu0 0.0
      %1432 = vmatpush1.msra.mxu0 0.0
      %1433 = vmatprep.subr.mxu0 0.0
      %1434 = vmatpush1.msra.mxu0 0.0
      %1435 = vmatprep.subr.mxu0 0.0
      %1436 = vmatpush1.msra.mxu0 0.0
      %1437 = vmatprep.subr.mxu0 0.0
      %1438 = vmatpush1.msra.mxu0 0.0
      %1439 = vmatprep.subr.mxu0 0.0
      %1440 = vmatpush1.msra.mxu0 0.0
      %1441 = vmatprep.subr.mxu0 0.0
      %1442 = vmatpush1.msra.mxu0 0.0
      %1443 = vmatprep.subr.mxu0 0.0
      %1444 = vmatpush1.msra.mxu0 0.0
      %1445 = vmatprep.subr.mxu0 0.0
      %1446 = vmatpush1.msra.mxu0 0.0
      %1447 = vmatprep.subr.mxu0 0.0
      %1448 = vmatpush1.msra.mxu0 0.0
      %1449 = vmatprep.subr.mxu0 0.0
      %1450 = vmatpush1.msra.mxu0 0.0
      %1451 = vmatprep.subr.mxu0 0.0
      %1452 = vmatpush1.msra.mxu0 0.0
      %1453 = vmatprep.subr.mxu0 0.0
      %1454 = vmatpush1.msra.mxu0 0.0
      %1455 = vmatprep.subr.mxu0 0.0
      %1456 = vmatpush1.msra.mxu0 0.0
      %1457 = vmatprep.subr.mxu0 0.0
      %1458 = vmatpush1.msra.mxu0 0.0
      %1459 = vmatprep.subr.mxu0 0.0
      %1460 = vmatpush1.msra.mxu0 0.0
      %1461 = vmatprep.subr.mxu0 0.0
      %1462 = vmatpush1.msra.mxu0 0.0
      %1463 = vmatprep.subr.mxu0 0.0
      %1464 = vmatpush1.msra.mxu0 0.0
      %1465 = vmatprep.subr.mxu0 0.0
      %1466 = vmatpush1.msra.mxu0 0.0
      %1467 = vmatprep.subr.mxu0 0.0
      %1468 = vmatpush1.msra.mxu0 0.0
      %1469 = vmatprep.subr.mxu0 0.0
      %1470 = vmatpush1.msra.mxu0 0.0
      %1471 = vmatprep.subr.mxu0 0.0
      %1472 = vmatpush1.msra.mxu0 0.0
      %1473 = vmatprep.subr.mxu0 0.0
      %1474 = vmatpush1.msra.mxu0 0.0
      %1475 = vmatprep.subr.mxu0 0.0
      %1476 = vmatpush1.msra.mxu0 0.0
      %1477 = vmatprep.subr.mxu0 0.0
      %1478 = vmatpush1.msra.mxu0 0.0
      %1479 = vmatprep.subr.mxu0 0.0
      %1480 = vmatpush1.msra.mxu0 0.0
      %1481 = vmatprep.subr.mxu0 0.0
      %1482 = vmatpush1.msra.mxu0 0.0
      %1483 = vmatprep.mubr.f32.mxu0 0.0
      %1484 = vmatmul.mubr.f32.gmra.mrb[0].mxu0 %v1324
      %v1485 = vpop.f32.mrb[0].mxu0
      %v1486 = vadd.f32 0.0, %v1485
      %v1487 = vpop.f32.mrb[0].mxu0
      %1488 = vmatprep.mubr.f32.mxu0 0.0
      %1489 = vmatmul.mubr.f32.gmra.mrb[0].mxu0 %v1327
      %v1490 = vpop.f32.mrb[0].mxu0
      %v1491 = vadd.f32 0.0, %v1490
      %v1492 = vpop.f32.mrb[0].mxu0
      %1493 = vmatprep.mubr.f32.mxu0 0.0
      %1494 = vmatmul.mubr.f32.gmra.mrb[0].mxu0 %v1330
      %v1495 = vpop.f32.mrb[0].mxu0
      %v1496 = vadd.f32 0.0, %v1495
      %v1497 = vpop.f32.mrb[0].mxu0
      %1498 = vmatprep.mubr.f32.mxu0 0.0
      %1499 = vmatmul.mubr.f32.gmra.mrb[0].mxu0 %v1333
      %v1500 = vpop.f32.mrb[0].mxu0
      %v1501 = vadd.f32 0.0, %v1500
      %v1502 = vpop.f32.mrb[0].mxu0
      %1503 = vmatprep.mubr.f32.mxu0 0.0
      %1504 = vmatmul.mubr.f32.gmra.mrb[0].mxu0 %v1336
      %v1505 = vpop.f32.mrb[0].mxu0
      %v1506 = vadd.f32 0.0, %v1505
      %v1507 = vpop.f32.mrb[0].mxu0
      %1508 = vmatprep.mubr.f32.mxu0 0.0
      %1509 = vmatmul.mubr.f32.gmra.mrb[0].mxu0 %v1339
      %v1510 = vpop.f32.mrb[0].mxu0
      %v1511 = vadd.f32 0.0, %v1510
      %v1512 = vpop.f32.mrb[0].mxu0
      %1513 = vmatprep.mubr.f32.mxu0 0.0
      %1514 = vmatmul.mubr.f32.gmra.mrb[0].mxu0 %v1342
      %v1515 = vpop.f32.mrb[0].mxu0
      %v1516 = vadd.f32 0.0, %v1515
      %v1517 = vpop.f32.mrb[0].mxu0
      %1518 = vmatprep.mubr.f32.mxu0 0.0
      %1519 = vmatmul.mubr.f32.gmra.mrb[0].mxu0 %v1345
      %v1520 = vpop.f32.mrb[0].mxu0
      %v1521 = vadd.f32 0.0, %v1520
      %v1522 = vpop.f32.mrb[0].mxu0
      %1523 = vmatprep.mubr.f32.mxu0 0.0
      %1524 = vmatmul.mubr.f32.gmra.mrb[0].mxu0 %v1348
      %v1525 = vpop.f32.mrb[0].mxu0
      %v1526 = vadd.f32 0.0, %v1525
      %v1527 = vpop.f32.mrb[0].mxu0
      %1528 = vmatprep.mubr.f32.mxu0 0.0
      %1529 = vmatmul.mubr.f32.gmra.mrb[0].mxu0 %v1351
      %v1530 = vpop.f32.mrb[0].mxu0
      %v1531 = vadd.f32 0.0, %v1530
      %v1532 = vpop.f32.mrb[0].mxu0
      %1533 = vmatprep.mubr.f32.mxu0 0.0
      %1534 = vmatmul.mubr.f32.gmra.mrb[0].mxu0 %v1354
      %v1535 = vpop.f32.mrb[0].mxu0
      %v1536 = vadd.f32 0.0, %v1535
      %v1537 = vpop.f32.mrb[0].mxu0
      %1538 = vmatprep.mubr.f32.mxu0 0.0
      %1539 = vmatmul.mubr.f32.gmra.mrb[0].mxu0 %v1357
      %v1540 = vpop.f32.mrb[0].mxu0
      %v1541 = vadd.f32 0.0, %v1540
      %v1542 = vpop.f32.mrb[0].mxu0
      %1543 = vmatprep.mubr.f32.mxu0 0.0
      %1544 = vmatmul.mubr.f32.gmra.mrb[0].mxu0 %v1360
      %v1545 = vpop.f32.mrb[0].mxu0
      %v1546 = vadd.f32 0.0, %v1545
      %v1547 = vpop.f32.mrb[0].mxu0
      %1548 = vmatprep.mubr.f32.mxu0 0.0
      %1549 = vmatmul.mubr.f32.gmra.mrb[0].mxu0 %v1363
      %v1550 = vpop.f32.mrb[0].mxu0
      %v1551 = vadd.f32 0.0, %v1550
      %v1552 = vpop.f32.mrb[0].mxu0
      %1553 = vmatprep.mubr.f32.mxu0 0.0
      %1554 = vmatmul.mubr.f32.gmra.mrb[0].mxu0 %v1366
      %v1555 = vpop.f32.mrb[0].mxu0
      %v1556 = vadd.f32 0.0, %v1555
      %v1557 = vpop.f32.mrb[0].mxu0
      %1558 = vmatprep.mubr.f32.mxu0 0.0
      %1559 = vmatmul.mubr.f32.gmra.mrb[0].mxu0 %v1369
      %v1560 = vpop.f32.mrb[0].mxu0
      %v1561 = vadd.f32 0.0, %v1560
      %v1562 = vpop.f32.mrb[0].mxu0
      %1563 = vmatprep.mubr.f32.mxu0 0.0
      %1564 = vmatmul.mubr.f32.gmra.mrb[0].mxu0 %v1372
      %v1565 = vpop.f32.mrb[0].mxu0
      %v1566 = vadd.f32 0.0, %v1565
      %v1567 = vpop.f32.mrb[0].mxu0
      %1568 = vmatprep.mubr.f32.mxu0 0.0
      %1569 = vmatmul.mubr.f32.gmra.mrb[0].mxu0 %v1375
      %v1570 = vpop.f32.mrb[0].mxu0
      %v1571 = vadd.f32 0.0, %v1570
      %v1572 = vpop.f32.mrb[0].mxu0
      %1573 = vmatprep.mubr.f32.mxu0 0.0
      %1574 = vmatmul.mubr.f32.gmra.mrb[0].mxu0 %v1378
      %v1575 = vpop.f32.mrb[0].mxu0
      %v1576 = vadd.f32 0.0, %v1575
      %v1577 = vpop.f32.mrb[0].mxu0
      %1578 = vmatprep.mubr.f32.mxu0 0.0
      %1579 = vmatmul.mubr.f32.gmra.mrb[0].mxu0 %v1381
      %v1580 = vpop.f32.mrb[0].mxu0
      %v1581 = vadd.f32 0.0, %v1580
      %v1582 = vpop.f32.mrb[0].mxu0
      %1583 = vmatprep.mubr.f32.mxu0 0.0
      %1584 = vmatmul.mubr.f32.gmra.mrb[0].mxu0 %v1384
      %v1585 = vpop.f32.mrb[0].mxu0
      %v1586 = vadd.f32 0.0, %v1585
      %v1587 = vpop.f32.mrb[0].mxu0
      %1588 = vmatprep.mubr.f32.mxu0 0.0
      %1589 = vmatmul.mubr.f32.gmra.mrb[0].mxu0 %v1387
      %v1590 = vpop.f32.mrb[0].mxu0
      %v1591 = vadd.f32 0.0, %v1590
      %v1592 = vpop.f32.mrb[0].mxu0
      %1593 = vmatprep.mubr.f32.mxu0 0.0
      %1594 = vmatmul.mubr.f32.gmra.mrb[0].mxu0 %v1390
      %v1595 = vpop.f32.mrb[0].mxu0
      %v1596 = vadd.f32 0.0, %v1595
      %v1597 = vpop.f32.mrb[0].mxu0
      %1598 = vmatprep.mubr.f32.mxu0 0.0
      %1599 = vmatmul.mubr.f32.gmra.mrb[0].mxu0 %v1393
      %v1600 = vpop.f32.mrb[0].mxu0
      %v1601 = vadd.f32 0.0, %v1600
      %v1602 = vpop.f32.mrb[0].mxu0
      %1603 = vmatprep.mubr.f32.mxu0 0.0
      %1604 = vmatmul.mubr.f32.gmra.mrb[0].mxu0 %v1396
      %v1605 = vpop.f32.mrb[0].mxu0
      %v1606 = vadd.f32 0.0, %v1605
      %v1607 = vpop.f32.mrb[0].mxu0
      %1608 = vmatprep.mubr.f32.mxu0 0.0
      %1609 = vmatmul.mubr.f32.gmra.mrb[0].mxu0 %v1399
      %v1610 = vpop.f32.mrb[0].mxu0
      %v1611 = vadd.f32 0.0, %v1610
      %v1612 = vpop.f32.mrb[0].mxu0
      %1613 = vmatprep.mubr.f32.mxu0 0.0
      %1614 = vmatmul.mubr.f32.gmra.mrb[0].mxu0 %v1402
      %v1615 = vpop.f32.mrb[0].mxu0
      %v1616 = vadd.f32 0.0, %v1615
      %v1617 = vpop.f32.mrb[0].mxu0
      %1618 = vmatprep.mubr.f32.mxu0 0.0
      %1619 = vmatmul.mubr.f32.gmra.mrb[0].mxu0 %v1405
      %v1620 = vpop.f32.mrb[0].mxu0
      %v1621 = vadd.f32 0.0, %v1620
      %v1622 = vpop.f32.mrb[0].mxu0
      %1623 = vmatprep.mubr.f32.mxu0 0.0
      %1624 = vmatmul.mubr.f32.gmra.mrb[0].mxu0 %v1408
      %v1625 = vpop.f32.mrb[0].mxu0
      %v1626 = vadd.f32 0.0, %v1625
      %v1627 = vpop.f32.mrb[0].mxu0
      %1628 = vmatprep.mubr.f32.mxu0 0.0
      %1629 = vmatmul.mubr.f32.gmra.mrb[0].mxu0 %v1411
      %v1630 = vpop.f32.mrb[0].mxu0
      %v1631 = vadd.f32 0.0, %v1630
      %v1632 = vpop.f32.mrb[0].mxu0
      %1633 = vmatprep.mubr.f32.mxu0 0.0
      %1634 = vmatmul.mubr.f32.gmra.mrb[0].mxu0 %v1414
      %v1635 = vpop.f32.mrb[0].mxu0
      %v1636 = vadd.f32 0.0, %v1635
      %v1637 = vpop.f32.mrb[0].mxu0
      %1638 = vmatprep.mubr.f32.mxu0 0.0
      %1639 = vmatmul.mubr.f32.gmra.mrb[0].mxu0 %v1417
      %v1640 = vpop.f32.mrb[0].mxu0
      %v1641 = vadd.f32 0.0, %v1640
      %v1642 = vpop.f32.mrb[0].mxu0
      %1643 = vdwg.mxu0
      %1644 = vxpose.xlu0.b32.start [1/16] %v1222, 128
      %1645 = vxpose.xlu0.b32.cont [2/16] %v1224, 128
      %1646 = vxpose.xlu0.b32.cont [3/16] 0.0, 128
      %1647 = vxpose.xlu0.b32.cont [4/16] 0.0, 128
      %1648 = vxpose.xlu0.b32.cont [5/16] 0.0, 128
      %1649 = vxpose.xlu0.b32.cont [6/16] 0.0, 128
      %1650 = vxpose.xlu0.b32.cont [7/16] 0.0, 128
      %1651 = vxpose.xlu0.b32.cont [8/16] 0.0, 128
      %1652 = vxpose.xlu0.b32.cont [9/16] 0.0, 128
      %1653 = vxpose.xlu0.b32.cont [10/16] 0.0, 128
      %1654 = vxpose.xlu0.b32.cont [11/16] 0.0, 128
      %1655 = vxpose.xlu0.b32.cont [12/16] 0.0, 128
      %1656 = vxpose.xlu0.b32.cont [13/16] 0.0, 128
      %1657 = vxpose.xlu0.b32.cont [14/16] 0.0, 128
      %1658 = vxpose.xlu0.b32.cont [15/16] 0.0, 128
      %1659 = vxpose.xlu0.b32.end [16/16] 0.0, 128
      %v1660 = vpop.trf.xlu0
      %v1661 = vpop.trf.xlu0
      %v1662 = vpop.trf.xlu0
      %v1663 = vpop.trf.xlu0
      %v1664 = vpop.trf.xlu0
      %v1665 = vpop.trf.xlu0
      %v1666 = vpop.trf.xlu0
      %v1667 = vpop.trf.xlu0
      %v1668 = vpop.trf.xlu0
      %v1669 = vpop.trf.xlu0
      %v1670 = vpop.trf.xlu0
      %v1671 = vpop.trf.xlu0
      %v1672 = vpop.trf.xlu0
      %v1673 = vpop.trf.xlu0
      %v1674 = vpop.trf.xlu0
      %v1675 = vpop.trf.xlu0
      %1676 = vxpose.xlu0.b32.start [1/16] %v1223, 128
      %1677 = vxpose.xlu0.b32.cont [2/16] %v1225, 128
      %1678 = vxpose.xlu0.b32.cont [3/16] 0.0, 128
      %1679 = vxpose.xlu0.b32.cont [4/16] 0.0, 128
      %1680 = vxpose.xlu0.b32.cont [5/16] 0.0, 128
      %1681 = vxpose.xlu0.b32.cont [6/16] 0.0, 128
      %1682 = vxpose.xlu0.b32.cont [7/16] 0.0, 128
      %1683 = vxpose.xlu0.b32.cont [8/16] 0.0, 128
      %1684 = vxpose.xlu0.b32.cont [9/16] 0.0, 128
      %1685 = vxpose.xlu0.b32.cont [10/16] 0.0, 128
      %1686 = vxpose.xlu0.b32.cont [11/16] 0.0, 128
      %1687 = vxpose.xlu0.b32.cont [12/16] 0.0, 128
      %1688 = vxpose.xlu0.b32.cont [13/16] 0.0, 128
      %1689 = vxpose.xlu0.b32.cont [14/16] 0.0, 128
      %1690 = vxpose.xlu0.b32.cont [15/16] 0.0, 128
      %1691 = vxpose.xlu0.b32.end [16/16] 0.0, 128
      %v1692 = vpop.trf.xlu0
      %v1693 = vpop.trf.xlu0
      %v1694 = vpop.trf.xlu0
      %v1695 = vpop.trf.xlu0
      %v1696 = vpop.trf.xlu0
      %v1697 = vpop.trf.xlu0
      %v1698 = vpop.trf.xlu0
      %v1699 = vpop.trf.xlu0
      %v1700 = vpop.trf.xlu0
      %v1701 = vpop.trf.xlu0
      %v1702 = vpop.trf.xlu0
      %v1703 = vpop.trf.xlu0
      %v1704 = vpop.trf.xlu0
      %v1705 = vpop.trf.xlu0
      %v1706 = vpop.trf.xlu0
      %v1707 = vpop.trf.xlu0
      %v1709 = vsel %vm1322, %v1660, 0
      %v1712 = vsel %vm1322, %v1661, 0
      %v1715 = vsel %vm1322, %v1662, 0
      %v1718 = vsel %vm1322, %v1663, 0
      %v1721 = vsel %vm1322, %v1664, 0
      %v1724 = vsel %vm1322, %v1665, 0
      %v1727 = vsel %vm1322, %v1666, 0
      %v1730 = vsel %vm1322, %v1667, 0
      %v1733 = vsel %vm1322, %v1668, 0
      %v1736 = vsel %vm1322, %v1669, 0
      %v1739 = vsel %vm1322, %v1670, 0
      %v1742 = vsel %vm1322, %v1671, 0
      %v1745 = vsel %vm1322, %v1672, 0
      %v1748 = vsel %vm1322, %v1673, 0
      %v1751 = vsel %vm1322, %v1674, 0
      %v1754 = vsel %vm1322, %v1675, 0
      %v1757 = vsel %vm1322, %v1692, 0
      %v1760 = vsel %vm1322, %v1693, 0
      %v1763 = vsel %vm1322, %v1694, 0
      %v1766 = vsel %vm1322, %v1695, 0
      %v1769 = vsel %vm1322, %v1696, 0
      %v1772 = vsel %vm1322, %v1697, 0
      %v1775 = vsel %vm1322, %v1698, 0
      %v1778 = vsel %vm1322, %v1699, 0
      %v1781 = vsel %vm1322, %v1700, 0
      %v1784 = vsel %vm1322, %v1701, 0
      %v1787 = vsel %vm1322, %v1702, 0
      %v1790 = vsel %vm1322, %v1703, 0
      %v1793 = vsel %vm1322, %v1704, 0
      %v1796 = vsel %vm1322, %v1705, 0
      %v1799 = vsel %vm1322, %v1706, 0
      %v1802 = vsel %vm1322, %v1707, 0
      %1804 = vmatprep.subr.mxu0 0.0
      %1805 = vmatpush1.msra.mxu0 %v1030
      %1806 = vmatprep.subr.mxu0 0.0
      %1807 = vmatpush1.msra.mxu0 %v1034
      %1808 = vmatprep.subr.mxu0 0.0
      %1809 = vmatpush1.msra.mxu0 0.0
      %1810 = vmatprep.subr.mxu0 0.0
      %1811 = vmatpush1.msra.mxu0 0.0
      %1812 = vmatprep.subr.mxu0 0.0
      %1813 = vmatpush1.msra.mxu0 0.0
      %1814 = vmatprep.subr.mxu0 0.0
      %1815 = vmatpush1.msra.mxu0 0.0
      %1816 = vmatprep.subr.mxu0 0.0
      %1817 = vmatpush1.msra.mxu0 0.0
      %1818 = vmatprep.subr.mxu0 0.0
      %1819 = vmatpush1.msra.mxu0 0.0
      %1820 = vmatprep.subr.mxu0 0.0
      %1821 = vmatpush1.msra.mxu0 0.0
      %1822 = vmatprep.subr.mxu0 0.0
      %1823 = vmatpush1.msra.mxu0 0.0
      %1824 = vmatprep.subr.mxu0 0.0
      %1825 = vmatpush1.msra.mxu0 0.0
      %1826 = vmatprep.subr.mxu0 0.0
      %1827 = vmatpush1.msra.mxu0 0.0
      %1828 = vmatprep.subr.mxu0 0.0
      %1829 = vmatpush1.msra.mxu0 0.0
      %1830 = vmatprep.subr.mxu0 0.0
      %1831 = vmatpush1.msra.mxu0 0.0
      %1832 = vmatprep.subr.mxu0 0.0
      %1833 = vmatpush1.msra.mxu0 0.0
      %1834 = vmatprep.subr.mxu0 0.0
      %1835 = vmatpush1.msra.mxu0 0.0
      %1836 = vmatprep.subr.mxu0 0.0
      %1837 = vmatpush1.msra.mxu0 0.0
      %1838 = vmatprep.subr.mxu0 0.0
      %1839 = vmatpush1.msra.mxu0 0.0
      %1840 = vmatprep.subr.mxu0 0.0
      %1841 = vmatpush1.msra.mxu0 0.0
      %1842 = vmatprep.subr.mxu0 0.0
      %1843 = vmatpush1.msra.mxu0 0.0
      %1844 = vmatprep.subr.mxu0 0.0
      %1845 = vmatpush1.msra.mxu0 0.0
      %1846 = vmatprep.subr.mxu0 0.0
      %1847 = vmatpush1.msra.mxu0 0.0
      %1848 = vmatprep.subr.mxu0 0.0
      %1849 = vmatpush1.msra.mxu0 0.0
      %1850 = vmatprep.subr.mxu0 0.0
      %1851 = vmatpush1.msra.mxu0 0.0
      %1852 = vmatprep.subr.mxu0 0.0
      %1853 = vmatpush1.msra.mxu0 0.0
      %1854 = vmatprep.subr.mxu0 0.0
      %1855 = vmatpush1.msra.mxu0 0.0
      %1856 = vmatprep.subr.mxu0 0.0
      %1857 = vmatpush1.msra.mxu0 0.0
      %1858 = vmatprep.subr.mxu0 0.0
      %1859 = vmatpush1.msra.mxu0 0.0
      %1860 = vmatprep.subr.mxu0 0.0
      %1861 = vmatpush1.msra.mxu0 0.0
      %1862 = vmatprep.subr.mxu0 0.0
      %1863 = vmatpush1.msra.mxu0 0.0
      %1864 = vmatprep.subr.mxu0 0.0
      %1865 = vmatpush1.msra.mxu0 0.0
      %1866 = vmatprep.subr.mxu0 0.0
      %1867 = vmatpush1.msra.mxu0 0.0
      %1868 = vmatprep.mubr.f32.mxu0 0.0
      %1869 = vmatmul.mubr.f32.gmra.mrb[0].mxu0 %v1709
      %v1870 = vpop.f32.mrb[0].mxu0
      %v1871 = vadd.f32 0.0, %v1870
      %v1872 = vpop.f32.mrb[0].mxu0
      %1873 = vmatprep.mubr.f32.mxu0 0.0
      %1874 = vmatmul.mubr.f32.gmra.mrb[0].mxu0 %v1712
      %v1875 = vpop.f32.mrb[0].mxu0
      %v1876 = vadd.f32 0.0, %v1875
      %v1877 = vpop.f32.mrb[0].mxu0
      %1878 = vmatprep.mubr.f32.mxu0 0.0
      %1879 = vmatmul.mubr.f32.gmra.mrb[0].mxu0 %v1715
      %v1880 = vpop.f32.mrb[0].mxu0
      %v1881 = vadd.f32 0.0, %v1880
      %v1882 = vpop.f32.mrb[0].mxu0
      %1883 = vmatprep.mubr.f32.mxu0 0.0
      %1884 = vmatmul.mubr.f32.gmra.mrb[0].mxu0 %v1718
      %v1885 = vpop.f32.mrb[0].mxu0
      %v1886 = vadd.f32 0.0, %v1885
      %v1887 = vpop.f32.mrb[0].mxu0
      %1888 = vmatprep.mubr.f32.mxu0 0.0
      %1889 = vmatmul.mubr.f32.gmra.mrb[0].mxu0 %v1721
      %v1890 = vpop.f32.mrb[0].mxu0
      %v1891 = vadd.f32 0.0, %v1890
      %v1892 = vpop.f32.mrb[0].mxu0
      %1893 = vmatprep.mubr.f32.mxu0 0.0
      %1894 = vmatmul.mubr.f32.gmra.mrb[0].mxu0 %v1724
      %v1895 = vpop.f32.mrb[0].mxu0
      %v1896 = vadd.f32 0.0, %v1895
      %v1897 = vpop.f32.mrb[0].mxu0
      %1898 = vmatprep.mubr.f32.mxu0 0.0
      %1899 = vmatmul.mubr.f32.gmra.mrb[0].mxu0 %v1727
      %v1900 = vpop.f32.mrb[0].mxu0
      %v1901 = vadd.f32 0.0, %v1900
      %v1902 = vpop.f32.mrb[0].mxu0
      %1903 = vmatprep.mubr.f32.mxu0 0.0
      %1904 = vmatmul.mubr.f32.gmra.mrb[0].mxu0 %v1730
      %v1905 = vpop.f32.mrb[0].mxu0
      %v1906 = vadd.f32 0.0, %v1905
      %v1907 = vpop.f32.mrb[0].mxu0
      %1908 = vmatprep.mubr.f32.mxu0 0.0
      %1909 = vmatmul.mubr.f32.gmra.mrb[0].mxu0 %v1733
      %v1910 = vpop.f32.mrb[0].mxu0
      %v1911 = vadd.f32 0.0, %v1910
      %v1912 = vpop.f32.mrb[0].mxu0
      %1913 = vmatprep.mubr.f32.mxu0 0.0
      %1914 = vmatmul.mubr.f32.gmra.mrb[0].mxu0 %v1736
      %v1915 = vpop.f32.mrb[0].mxu0
      %v1916 = vadd.f32 0.0, %v1915
      %v1917 = vpop.f32.mrb[0].mxu0
      %1918 = vmatprep.mubr.f32.mxu0 0.0
      %1919 = vmatmul.mubr.f32.gmra.mrb[0].mxu0 %v1739
      %v1920 = vpop.f32.mrb[0].mxu0
      %v1921 = vadd.f32 0.0, %v1920
      %v1922 = vpop.f32.mrb[0].mxu0
      %1923 = vmatprep.mubr.f32.mxu0 0.0
      %1924 = vmatmul.mubr.f32.gmra.mrb[0].mxu0 %v1742
      %v1925 = vpop.f32.mrb[0].mxu0
      %v1926 = vadd.f32 0.0, %v1925
      %v1927 = vpop.f32.mrb[0].mxu0
      %1928 = vmatprep.mubr.f32.mxu0 0.0
      %1929 = vmatmul.mubr.f32.gmra.mrb[0].mxu0 %v1745
      %v1930 = vpop.f32.mrb[0].mxu0
      %v1931 = vadd.f32 0.0, %v1930
      %v1932 = vpop.f32.mrb[0].mxu0
      %1933 = vmatprep.mubr.f32.mxu0 0.0
      %1934 = vmatmul.mubr.f32.gmra.mrb[0].mxu0 %v1748
      %v1935 = vpop.f32.mrb[0].mxu0
      %v1936 = vadd.f32 0.0, %v1935
      %v1937 = vpop.f32.mrb[0].mxu0
      %1938 = vmatprep.mubr.f32.mxu0 0.0
      %1939 = vmatmul.mubr.f32.gmra.mrb[0].mxu0 %v1751
      %v1940 = vpop.f32.mrb[0].mxu0
      %v1941 = vadd.f32 0.0, %v1940
      %v1942 = vpop.f32.mrb[0].mxu0
      %1943 = vmatprep.mubr.f32.mxu0 0.0
      %1944 = vmatmul.mubr.f32.gmra.mrb[0].mxu0 %v1754
      %v1945 = vpop.f32.mrb[0].mxu0
      %v1946 = vadd.f32 0.0, %v1945
      %v1947 = vpop.f32.mrb[0].mxu0
      %1948 = vmatprep.mubr.f32.mxu0 0.0
      %1949 = vmatmul.mubr.f32.gmra.mrb[0].mxu0 %v1757
      %v1950 = vpop.f32.mrb[0].mxu0
      %v1951 = vadd.f32 0.0, %v1950
      %v1952 = vpop.f32.mrb[0].mxu0
      %1953 = vmatprep.mubr.f32.mxu0 0.0
      %1954 = vmatmul.mubr.f32.gmra.mrb[0].mxu0 %v1760
      %v1955 = vpop.f32.mrb[0].mxu0
      %v1956 = vadd.f32 0.0, %v1955
      %v1957 = vpop.f32.mrb[0].mxu0
      %1958 = vmatprep.mubr.f32.mxu0 0.0
      %1959 = vmatmul.mubr.f32.gmra.mrb[0].mxu0 %v1763
      %v1960 = vpop.f32.mrb[0].mxu0
      %v1961 = vadd.f32 0.0, %v1960
      %v1962 = vpop.f32.mrb[0].mxu0
      %1963 = vmatprep.mubr.f32.mxu0 0.0
      %1964 = vmatmul.mubr.f32.gmra.mrb[0].mxu0 %v1766
      %v1965 = vpop.f32.mrb[0].mxu0
      %v1966 = vadd.f32 0.0, %v1965
      %v1967 = vpop.f32.mrb[0].mxu0
      %1968 = vmatprep.mubr.f32.mxu0 0.0
      %1969 = vmatmul.mubr.f32.gmra.mrb[0].mxu0 %v1769
      %v1970 = vpop.f32.mrb[0].mxu0
      %v1971 = vadd.f32 0.0, %v1970
      %v1972 = vpop.f32.mrb[0].mxu0
      %1973 = vmatprep.mubr.f32.mxu0 0.0
      %1974 = vmatmul.mubr.f32.gmra.mrb[0].mxu0 %v1772
      %v1975 = vpop.f32.mrb[0].mxu0
      %v1976 = vadd.f32 0.0, %v1975
      %v1977 = vpop.f32.mrb[0].mxu0
      %1978 = vmatprep.mubr.f32.mxu0 0.0
      %1979 = vmatmul.mubr.f32.gmra.mrb[0].mxu0 %v1775
      %v1980 = vpop.f32.mrb[0].mxu0
      %v1981 = vadd.f32 0.0, %v1980
      %v1982 = vpop.f32.mrb[0].mxu0
      %1983 = vmatprep.mubr.f32.mxu0 0.0
      %1984 = vmatmul.mubr.f32.gmra.mrb[0].mxu0 %v1778
      %v1985 = vpop.f32.mrb[0].mxu0
      %v1986 = vadd.f32 0.0, %v1985
      %v1987 = vpop.f32.mrb[0].mxu0
      %1988 = vmatprep.mubr.f32.mxu0 0.0
      %1989 = vmatmul.mubr.f32.gmra.mrb[0].mxu0 %v1781
      %v1990 = vpop.f32.mrb[0].mxu0
      %v1991 = vadd.f32 0.0, %v1990
      %v1992 = vpop.f32.mrb[0].mxu0
      %1993 = vmatprep.mubr.f32.mxu0 0.0
      %1994 = vmatmul.mubr.f32.gmra.mrb[0].mxu0 %v1784
      %v1995 = vpop.f32.mrb[0].mxu0
      %v1996 = vadd.f32 0.0, %v1995
      %v1997 = vpop.f32.mrb[0].mxu0
      %1998 = vmatprep.mubr.f32.mxu0 0.0
      %1999 = vmatmul.mubr.f32.gmra.mrb[0].mxu0 %v1787
      %v2000 = vpop.f32.mrb[0].mxu0
      %v2001 = vadd.f32 0.0, %v2000
      %v2002 = vpop.f32.mrb[0].mxu0
      %2003 = vmatprep.mubr.f32.mxu0 0.0
      %2004 = vmatmul.mubr.f32.gmra.mrb[0].mxu0 %v1790
      %v2005 = vpop.f32.mrb[0].mxu0
      %v2006 = vadd.f32 0.0, %v2005
      %v2007 = vpop.f32.mrb[0].mxu0
      %2008 = vmatprep.mubr.f32.mxu0 0.0
      %2009 = vmatmul.mubr.f32.gmra.mrb[0].mxu0 %v1793
      %v2010 = vpop.f32.mrb[0].mxu0
      %v2011 = vadd.f32 0.0, %v2010
      %v2012 = vpop.f32.mrb[0].mxu0
      %2013 = vmatprep.mubr.f32.mxu0 0.0
      %2014 = vmatmul.mubr.f32.gmra.mrb[0].mxu0 %v1796
      %v2015 = vpop.f32.mrb[0].mxu0
      %v2016 = vadd.f32 0.0, %v2015
      %v2017 = vpop.f32.mrb[0].mxu0
      %2018 = vmatprep.mubr.f32.mxu0 0.0
      %2019 = vmatmul.mubr.f32.gmra.mrb[0].mxu0 %v1799
      %v2020 = vpop.f32.mrb[0].mxu0
      %v2021 = vadd.f32 0.0, %v2020
      %v2022 = vpop.f32.mrb[0].mxu0
      %2023 = vmatprep.mubr.f32.mxu0 0.0
      %2024 = vmatmul.mubr.f32.gmra.mrb[0].mxu0 %v1802
      %v2025 = vpop.f32.mrb[0].mxu0
      %v2026 = vadd.f32 0.0, %v2025
      %v2027 = vpop.f32.mrb[0].mxu0
      %2028 = vdwg.mxu0
      %v2029 = vmul.f32 %v1486, %v1226
      %v2030 = vmul.f32 %v1491, %v1227
      %v2031 = vmul.f32 %v1496, %v1228
      %v2032 = vmul.f32 %v1501, %v1229
      %v2033 = vmul.f32 %v1506, %v1230
      %v2034 = vmul.f32 %v1511, %v1231
      %v2035 = vmul.f32 %v1516, %v1232
      %v2036 = vmul.f32 %v1521, %v1233
      %v2037 = vmul.f32 %v1526, %v1234
      %v2038 = vmul.f32 %v1531, %v1235
      %v2039 = vmul.f32 %v1536, %v1236
      %v2040 = vmul.f32 %v1541, %v1237
      %v2041 = vmul.f32 %v1546, %v1238
      %v2042 = vmul.f32 %v1551, %v1239
      %v2043 = vmul.f32 %v1556, %v1240
      %v2044 = vmul.f32 %v1561, %v1241
      %v2045 = vmul.f32 %v1566, %v1242
      %v2046 = vmul.f32 %v1571, %v1243
      %v2047 = vmul.f32 %v1576, %v1244
      %v2048 = vmul.f32 %v1581, %v1245
      %v2049 = vmul.f32 %v1586, %v1246
      %v2050 = vmul.f32 %v1591, %v1247
      %v2051 = vmul.f32 %v1596, %v1248
      %v2052 = vmul.f32 %v1601, %v1249
      %v2053 = vmul.f32 %v1606, %v1250
      %v2054 = vmul.f32 %v1611, %v1251
      %v2055 = vmul.f32 %v1616, %v1252
      %v2056 = vmul.f32 %v1621, %v1253
      %v2057 = vmul.f32 %v1626, %v1254
      %v2058 = vmul.f32 %v1631, %v1255
      %v2059 = vmul.f32 %v1636, %v1256
      %v2060 = vmul.f32 %v1641, %v1257
      %v2061 = vmul.f32 %v1871, %v1226
      %v2062 = vmul.f32 %v1876, %v1227
      %v2063 = vmul.f32 %v1881, %v1228
      %v2064 = vmul.f32 %v1886, %v1229
      %v2065 = vmul.f32 %v1891, %v1230
      %v2066 = vmul.f32 %v1896, %v1231
      %v2067 = vmul.f32 %v1901, %v1232
      %v2068 = vmul.f32 %v1906, %v1233
      %v2069 = vmul.f32 %v1911, %v1234
      %v2070 = vmul.f32 %v1916, %v1235
      %v2071 = vmul.f32 %v1921, %v1236
      %v2072 = vmul.f32 %v1926, %v1237
      %v2073 = vmul.f32 %v1931, %v1238
      %v2074 = vmul.f32 %v1936, %v1239
      %v2075 = vmul.f32 %v1941, %v1240
      %v2076 = vmul.f32 %v1946, %v1241
      %v2077 = vmul.f32 %v1951, %v1242
      %v2078 = vmul.f32 %v1956, %v1243
      %v2079 = vmul.f32 %v1961, %v1244
      %v2080 = vmul.f32 %v1966, %v1245
      %v2081 = vmul.f32 %v1971, %v1246
      %v2082 = vmul.f32 %v1976, %v1247
      %v2083 = vmul.f32 %v1981, %v1248
      %v2084 = vmul.f32 %v1986, %v1249
      %v2085 = vmul.f32 %v1991, %v1250
      %v2086 = vmul.f32 %v1996, %v1251
      %v2087 = vmul.f32 %v2001, %v1252
      %v2088 = vmul.f32 %v2006, %v1253
      %v2089 = vmul.f32 %v2011, %v1254
      %v2090 = vmul.f32 %v2016, %v1255
      %v2091 = vmul.f32 %v2021, %v1256
      %v2092 = vmul.f32 %v2026, %v1257
      %2093 = vmatprep.subr.mxu0 0.0
      %2094 = vmatpush1.msra.mxu0 %v2029
      %2095 = vmatprep.subr.mxu0 0.0
      %2096 = vmatpush1.msra.mxu0 %v2030
      %2097 = vmatprep.subr.mxu0 0.0
      %2098 = vmatpush1.msra.mxu0 %v2031
      %2099 = vmatprep.subr.mxu0 0.0
      %2100 = vmatpush1.msra.mxu0 %v2032
      %2101 = vmatprep.subr.mxu0 0.0
      %2102 = vmatpush1.msra.mxu0 %v2033
      %2103 = vmatprep.subr.mxu0 0.0
      %2104 = vmatpush1.msra.mxu0 %v2034
      %2105 = vmatprep.subr.mxu0 0.0
      %2106 = vmatpush1.msra.mxu0 %v2035
      %2107 = vmatprep.subr.mxu0 0.0
      %2108 = vmatpush1.msra.mxu0 %v2036
      %2109 = vmatprep.subr.mxu0 0.0
      %2110 = vmatpush1.msra.mxu0 %v2037
      %2111 = vmatprep.subr.mxu0 0.0
      %2112 = vmatpush1.msra.mxu0 %v2038
      %2113 = vmatprep.subr.mxu0 0.0
      %2114 = vmatpush1.msra.mxu0 %v2039
      %2115 = vmatprep.subr.mxu0 0.0
      %2116 = vmatpush1.msra.mxu0 %v2040
      %2117 = vmatprep.subr.mxu0 0.0
      %2118 = vmatpush1.msra.mxu0 %v2041
      %2119 = vmatprep.subr.mxu0 0.0
      %2120 = vmatpush1.msra.mxu0 %v2042
      %2121 = vmatprep.subr.mxu0 0.0
      %2122 = vmatpush1.msra.mxu0 %v2043
      %2123 = vmatprep.subr.mxu0 0.0
      %2124 = vmatpush1.msra.mxu0 %v2044
      %2125 = vmatprep.subr.mxu0 0.0
      %2126 = vmatpush1.msra.mxu0 %v2045
      %2127 = vmatprep.subr.mxu0 0.0
      %2128 = vmatpush1.msra.mxu0 %v2046
      %2129 = vmatprep.subr.mxu0 0.0
      %2130 = vmatpush1.msra.mxu0 %v2047
      %2131 = vmatprep.subr.mxu0 0.0
      %2132 = vmatpush1.msra.mxu0 %v2048
      %2133 = vmatprep.subr.mxu0 0.0
      %2134 = vmatpush1.msra.mxu0 %v2049
      %2135 = vmatprep.subr.mxu0 0.0
      %2136 = vmatpush1.msra.mxu0 %v2050
      %2137 = vmatprep.subr.mxu0 0.0
      %2138 = vmatpush1.msra.mxu0 %v2051
      %2139 = vmatprep.subr.mxu0 0.0
      %2140 = vmatpush1.msra.mxu0 %v2052
      %2141 = vmatprep.subr.mxu0 0.0
      %2142 = vmatpush1.msra.mxu0 %v2053
      %2143 = vmatprep.subr.mxu0 0.0
      %2144 = vmatpush1.msra.mxu0 %v2054
      %2145 = vmatprep.subr.mxu0 0.0
      %2146 = vmatpush1.msra.mxu0 %v2055
      %2147 = vmatprep.subr.mxu0 0.0
      %2148 = vmatpush1.msra.mxu0 %v2056
      %2149 = vmatprep.subr.mxu0 0.0
      %2150 = vmatpush1.msra.mxu0 %v2057
      %2151 = vmatprep.subr.mxu0 0.0
      %2152 = vmatpush1.msra.mxu0 %v2058
      %2153 = vmatprep.subr.mxu0 0.0
      %2154 = vmatpush1.msra.mxu0 %v2059
      %2155 = vmatprep.subr.mxu0 0.0
      %2156 = vmatpush1.msra.mxu0 %v2060
      %2157 = vmatprep.mubr.f32.mxu0 %v1146
      %2158 = vmatmul.mubr.f32.gmra.mrb[0].mxu0 %v1145
      %v2159 = vpop.f32.mrb[0].mxu0
      %v2160 = vadd.f32 0.0, %v2159
      %v2161 = vpop.f32.mrb[0].mxu0
      %2162 = vmatprep.mubr.f32.mxu0 %v1148
      %2163 = vmatmul.mubr.f32.gmra.mrb[0].mxu0 %v1147
      %v2164 = vpop.f32.mrb[0].mxu0
      %v2165 = vadd.f32 0.0, %v2164
      %v2166 = vpop.f32.mrb[0].mxu0
      %2167 = vdwg.mxu0
      %2168 = vmatprep.subr.mxu0 0.0
      %2169 = vmatpush1.msra.mxu0 %v2061
      %2170 = vmatprep.subr.mxu0 0.0
      %2171 = vmatpush1.msra.mxu0 %v2062
      %2172 = vmatprep.subr.mxu0 0.0
      %2173 = vmatpush1.msra.mxu0 %v2063
      %2174 = vmatprep.subr.mxu0 0.0
      %2175 = vmatpush1.msra.mxu0 %v2064
      %2176 = vmatprep.subr.mxu0 0.0
      %2177 = vmatpush1.msra.mxu0 %v2065
      %2178 = vmatprep.subr.mxu0 0.0
      %2179 = vmatpush1.msra.mxu0 %v2066
      %2180 = vmatprep.subr.mxu0 0.0
      %2181 = vmatpush1.msra.mxu0 %v2067
      %2182 = vmatprep.subr.mxu0 0.0
      %2183 = vmatpush1.msra.mxu0 %v2068
      %2184 = vmatprep.subr.mxu0 0.0
      %2185 = vmatpush1.msra.mxu0 %v2069
      %2186 = vmatprep.subr.mxu0 0.0
      %2187 = vmatpush1.msra.mxu0 %v2070
      %2188 = vmatprep.subr.mxu0 0.0
      %2189 = vmatpush1.msra.mxu0 %v2071
      %2190 = vmatprep.subr.mxu0 0.0
      %2191 = vmatpush1.msra.mxu0 %v2072
      %2192 = vmatprep.subr.mxu0 0.0
      %2193 = vmatpush1.msra.mxu0 %v2073
      %2194 = vmatprep.subr.mxu0 0.0
      %2195 = vmatpush1.msra.mxu0 %v2074
      %2196 = vmatprep.subr.mxu0 0.0
      %2197 = vmatpush1.msra.mxu0 %v2075
      %2198 = vmatprep.subr.mxu0 0.0
      %2199 = vmatpush1.msra.mxu0 %v2076
      %2200 = vmatprep.subr.mxu0 0.0
      %2201 = vmatpush1.msra.mxu0 %v2077
      %2202 = vmatprep.subr.mxu0 0.0
      %2203 = vmatpush1.msra.mxu0 %v2078
      %2204 = vmatprep.subr.mxu0 0.0
      %2205 = vmatpush1.msra.mxu0 %v2079
      %2206 = vmatprep.subr.mxu0 0.0
      %2207 = vmatpush1.msra.mxu0 %v2080
      %2208 = vmatprep.subr.mxu0 0.0
      %2209 = vmatpush1.msra.mxu0 %v2081
      %2210 = vmatprep.subr.mxu0 0.0
      %2211 = vmatpush1.msra.mxu0 %v2082
      %2212 = vmatprep.subr.mxu0 0.0
      %2213 = vmatpush1.msra.mxu0 %v2083
      %2214 = vmatprep.subr.mxu0 0.0
      %2215 = vmatpush1.msra.mxu0 %v2084
      %2216 = vmatprep.subr.mxu0 0.0
      %2217 = vmatpush1.msra.mxu0 %v2085
      %2218 = vmatprep.subr.mxu0 0.0
      %2219 = vmatpush1.msra.mxu0 %v2086
      %2220 = vmatprep.subr.mxu0 0.0
      %2221 = vmatpush1.msra.mxu0 %v2087
      %2222 = vmatprep.subr.mxu0 0.0
      %2223 = vmatpush1.msra.mxu0 %v2088
      %2224 = vmatprep.subr.mxu0 0.0
      %2225 = vmatpush1.msra.mxu0 %v2089
      %2226 = vmatprep.subr.mxu0 0.0
      %2227 = vmatpush1.msra.mxu0 %v2090
      %2228 = vmatprep.subr.mxu0 0.0
      %2229 = vmatpush1.msra.mxu0 %v2091
      %2230 = vmatprep.subr.mxu0 0.0
      %2231 = vmatpush1.msra.mxu0 %v2092
      %2232 = vmatprep.mubr.f32.mxu0 %v1150
      %2233 = vmatmul.mubr.f32.gmra.mrb[0].mxu0 %v1149
      %v2234 = vpop.f32.mrb[0].mxu0
      %v2235 = vadd.f32 0.0, %v2234
      %v2236 = vpop.f32.mrb[0].mxu0
      %2237 = vmatprep.mubr.f32.mxu0 %v1152
      %2238 = vmatmul.mubr.f32.gmra.mrb[0].mxu0 %v1151
      %v2239 = vpop.f32.mrb[0].mxu0
      %v2240 = vadd.f32 0.0, %v2239
      %v2241 = vpop.f32.mrb[0].mxu0
      %2242 = vdwg.mxu0
      %v2243 = vadd.f32 %v1218, %v1220
      %v2244 = vrot.slane %v2243, 4
      %v2245 = vadd.f32 %v2243, %v2244
      %v2246 = vrot.slane %v2245, 2
      %v2247 = vadd.f32 %v2245, %v2246
      %v2248 = vrot.slane %v2247, 1
      %v2249 = vadd.f32 %v2247, %v2248
      %v2250 = vadd.f32 %v1219, %v1221
      %v2251 = vrot.slane %v2250, 4
      %v2252 = vadd.f32 %v2250, %v2251
      %v2253 = vrot.slane %v2252, 2
      %v2254 = vadd.f32 %v2252, %v2253
      %v2255 = vrot.slane %v2254, 1
      %v2256 = vadd.f32 %v2254, %v2255
      %v2257 = vadd.f32 %v1222, %v1224
      %v2258 = vrot.slane %v2257, 4
      %v2259 = vadd.f32 %v2257, %v2258
      %v2260 = vrot.slane %v2259, 2
      %v2261 = vadd.f32 %v2259, %v2260
      %v2262 = vrot.slane %v2261, 1
      %v2263 = vadd.f32 %v2261, %v2262
      %v2264 = vadd.f32 %v1223, %v1225
      %v2265 = vrot.slane %v2264, 4
      %v2266 = vadd.f32 %v2264, %v2265
      %v2267 = vrot.slane %v2266, 2
      %v2268 = vadd.f32 %v2266, %v2267
      %v2269 = vrot.slane %v2268, 1
      %v2270 = vadd.f32 %v2268, %v2269
      %v2271 = vmul.f32 %v1145, %v2249
      %v2272 = vmul.f32 %v1146, %v2256
      %v2273 = vmul.f32 %v1147, %v2249
      %v2274 = vmul.f32 %v1148, %v2256
      %v2275 = vmul.f32 %v1149, %v2263
      %v2276 = vmul.f32 %v1150, %v2270
      %v2277 = vmul.f32 %v1151, %v2263
      %v2278 = vmul.f32 %v1152, %v2270
      %2279 = vmatprep.subr.mxu0 0.0
      %2280 = vmatpush1.msra.mxu0 %v1226
      %2281 = vmatprep.subr.mxu0 0.0
      %2282 = vmatpush1.msra.mxu0 %v1227
      %2283 = vmatprep.subr.mxu0 0.0
      %2284 = vmatpush1.msra.mxu0 %v1228
      %2285 = vmatprep.subr.mxu0 0.0
      %2286 = vmatpush1.msra.mxu0 %v1229
      %2287 = vmatprep.subr.mxu0 0.0
      %2288 = vmatpush1.msra.mxu0 %v1230
      %2289 = vmatprep.subr.mxu0 0.0
      %2290 = vmatpush1.msra.mxu0 %v1231
      %2291 = vmatprep.subr.mxu0 0.0
      %2292 = vmatpush1.msra.mxu0 %v1232
      %2293 = vmatprep.subr.mxu0 0.0
      %2294 = vmatpush1.msra.mxu0 %v1233
      %2295 = vmatprep.subr.mxu0 0.0
      %2296 = vmatpush1.msra.mxu0 %v1234
      %2297 = vmatprep.subr.mxu0 0.0
      %2298 = vmatpush1.msra.mxu0 %v1235
      %2299 = vmatprep.subr.mxu0 0.0
      %2300 = vmatpush1.msra.mxu0 %v1236
      %2301 = vmatprep.subr.mxu0 0.0
      %2302 = vmatpush1.msra.mxu0 %v1237
      %2303 = vmatprep.subr.mxu0 0.0
      %2304 = vmatpush1.msra.mxu0 %v1238
      %2305 = vmatprep.subr.mxu0 0.0
      %2306 = vmatpush1.msra.mxu0 %v1239
      %2307 = vmatprep.subr.mxu0 0.0
      %2308 = vmatpush1.msra.mxu0 %v1240
      %2309 = vmatprep.subr.mxu0 0.0
      %2310 = vmatpush1.msra.mxu0 %v1241
      %2311 = vmatprep.subr.mxu0 0.0
      %2312 = vmatpush1.msra.mxu0 %v1242
      %2313 = vmatprep.subr.mxu0 0.0
      %2314 = vmatpush1.msra.mxu0 %v1243
      %2315 = vmatprep.subr.mxu0 0.0
      %2316 = vmatpush1.msra.mxu0 %v1244
      %2317 = vmatprep.subr.mxu0 0.0
      %2318 = vmatpush1.msra.mxu0 %v1245
      %2319 = vmatprep.subr.mxu0 0.0
      %2320 = vmatpush1.msra.mxu0 %v1246
      %2321 = vmatprep.subr.mxu0 0.0
      %2322 = vmatpush1.msra.mxu0 %v1247
      %2323 = vmatprep.subr.mxu0 0.0
      %2324 = vmatpush1.msra.mxu0 %v1248
      %2325 = vmatprep.subr.mxu0 0.0
      %2326 = vmatpush1.msra.mxu0 %v1249
      %2327 = vmatprep.subr.mxu0 0.0
      %2328 = vmatpush1.msra.mxu0 %v1250
      %2329 = vmatprep.subr.mxu0 0.0
      %2330 = vmatpush1.msra.mxu0 %v1251
      %2331 = vmatprep.subr.mxu0 0.0
      %2332 = vmatpush1.msra.mxu0 %v1252
      %2333 = vmatprep.subr.mxu0 0.0
      %2334 = vmatpush1.msra.mxu0 %v1253
      %2335 = vmatprep.subr.mxu0 0.0
      %2336 = vmatpush1.msra.mxu0 %v1254
      %2337 = vmatprep.subr.mxu0 0.0
      %2338 = vmatpush1.msra.mxu0 %v1255
      %2339 = vmatprep.subr.mxu0 0.0
      %2340 = vmatpush1.msra.mxu0 %v1256
      %2341 = vmatprep.subr.mxu0 0.0
      %2342 = vmatpush1.msra.mxu0 %v1257
      %2343 = vmatprep.mubr.f32.mxu0 %v2272
      %2344 = vmatmul.mubr.f32.gmra.mrb[0].mxu0 %v2271
      %v2345 = vpop.f32.mrb[0].mxu0
      %v2346 = vadd.f32 1e-06, %v2345
      %v2347 = vpop.f32.mrb[0].mxu0
      %2348 = vmatprep.mubr.f32.mxu0 %v2274
      %2349 = vmatmul.mubr.f32.gmra.mrb[0].mxu0 %v2273
      %v2350 = vpop.f32.mrb[0].mxu0
      %v2351 = vadd.f32 1e-06, %v2350
      %v2352 = vpop.f32.mrb[0].mxu0
      %2353 = vmatprep.mubr.f32.mxu0 %v2276
      %2354 = vmatmul.mubr.f32.gmra.mrb[0].mxu0 %v2275
      %v2355 = vpop.f32.mrb[0].mxu0
      %v2356 = vadd.f32 1e-06, %v2355
      %v2357 = vpop.f32.mrb[0].mxu0
      %2358 = vmatprep.mubr.f32.mxu0 %v2278
      %2359 = vmatmul.mubr.f32.gmra.mrb[0].mxu0 %v2277
      %v2360 = vpop.f32.mrb[0].mxu0
      %v2361 = vadd.f32 1e-06, %v2360
      %v2362 = vpop.f32.mrb[0].mxu0
      %2363 = vdwg.mxu0
      %v2364 = vrcp.pop %v2346
      %v2365 = vrcp.pop %v2351
      %v2366 = vrcp.pop %v2356
      %v2367 = vrcp.pop %v2361
      %v2368 = vmul.f32 %v2160, %v2364
      %v2369 = vmul.f32 %v2165, %v2365
      %v2370 = vmul.f32 %v2235, %v2366
      %v2371 = vmul.f32 %v2240, %v2367
      %v2372 = vpack.c.bf16 %v2369, %v2368
      %v2373 = vpack.c.bf16 %v2371, %v2370
      %v2374 = vld [vmem:[%s783] sm:$0xf]
      %v2375 = vld [vmem:[%s783 + $0x4] sm:$0xf]
      %v2376 = vld [vmem:[%s783 + $0x8] sm:$0xf]
      %v2377 = vld [vmem:[%s783 + $0xc] sm:$0xf]
      %v2378 = vld [vmem:[%s783 + $0x10] sm:$0xf]
      %v2379 = vld [vmem:[%s783 + $0x14] sm:$0xf]
      %v2380 = vld [vmem:[%s783 + $0x18] sm:$0xf]
      %v2381 = vld [vmem:[%s783 + $0x1c] sm:$0xf]
      %v2390 = vunpack.c.l.b16 %v2374
      %v2391 = vunpack.c.l.b16 %v2375
      %v2392 = vunpack.c.l.b16 %v2376
      %v2393 = vunpack.c.l.b16 %v2377
      %v2394 = vunpack.c.l.b16 %v2378
      %v2395 = vunpack.c.l.b16 %v2379
      %v2396 = vunpack.c.l.b16 %v2380
      %v2397 = vunpack.c.l.b16 %v2381
      %v2398 = vpack.c.b16 %v2391, %v2390
      %v2399 = vpack.c.b16 %v2393, %v2392
      %v2400 = vpack.c.b16 %v2395, %v2394
      %v2401 = vpack.c.b16 %v2397, %v2396
      %v2407 = vsel %vm841, %v2372, 0
      %v2410 = vsel %vm841, %v2373, 0
      %2412 = vmatprep.subr.bf16.mxu0 0
      %2413 = vmatpush1.bf16.msra.mxu0 %v2398
      %2414 = vmatprep.subr.bf16.mxu0 0
      %2415 = vmatpush1.bf16.msra.mxu0 %v2399
      %2416 = vmatprep.subr.bf16.mxu0 0
      %2417 = vmatpush1.bf16.msra.mxu0 %v2400
      %2418 = vmatprep.subr.bf16.mxu0 0
      %2419 = vmatpush1.bf16.msra.mxu0 %v2401
      %2420 = vmatprep.subr.bf16.mxu0 0
      %2421 = vmatpush1.bf16.msra.mxu0 0
      %2422 = vmatprep.subr.bf16.mxu0 0
      %2423 = vmatpush1.bf16.msra.mxu0 0
      %2424 = vmatprep.subr.bf16.mxu0 0
      %2425 = vmatpush1.bf16.msra.mxu0 0
      %2426 = vmatprep.subr.bf16.mxu0 0
      %2427 = vmatpush1.bf16.msra.mxu0 0
      %2428 = vmatprep.subr.bf16.mxu0 0
      %2429 = vmatpush1.bf16.msra.mxu0 0
      %2430 = vmatprep.subr.bf16.mxu0 0
      %2431 = vmatpush1.bf16.msra.mxu0 0
      %2432 = vmatprep.subr.bf16.mxu0 0
      %2433 = vmatpush1.bf16.msra.mxu0 0
      %2434 = vmatprep.subr.bf16.mxu0 0
      %2435 = vmatpush1.bf16.msra.mxu0 0
      %2436 = vmatprep.subr.bf16.mxu0 0
      %2437 = vmatpush1.bf16.msra.mxu0 0
      %2438 = vmatprep.subr.bf16.mxu0 0
      %2439 = vmatpush1.bf16.msra.mxu0 0
      %2440 = vmatprep.subr.bf16.mxu0 0
      %2441 = vmatpush1.bf16.msra.mxu0 0
      %2442 = vmatprep.subr.bf16.mxu0 0
      %2443 = vmatpush1.bf16.msra.mxu0 0
      %2444 = vmatprep.mubr.bf16.mxu0 0
      %2445 = vmatmul.mubr.bf16.gmra.mrb[0].mxu0 %v2407
      %v2446 = vpop.f32.mrb[0].mxu0
      %v2447 = vadd.f32 0.0, %v2446
      %v2448 = vpop.f32.mrb[0].mxu0
      %v2449 = vpop.f32.mrb[0].mxu0
      %v2450 = vadd.f32 0.0, %v2449
      %v2451 = vpop.f32.mrb[0].mxu0
      %2452 = vmatprep.mubr.bf16.mxu0 0
      %2453 = vmatmul.mubr.bf16.gmra.mrb[0].mxu0 %v2410
      %v2454 = vpop.f32.mrb[0].mxu0
      %v2455 = vadd.f32 0.0, %v2454
      %v2456 = vpop.f32.mrb[0].mxu0
      %v2457 = vpop.f32.mrb[0].mxu0
      %v2458 = vadd.f32 0.0, %v2457
      %v2459 = vpop.f32.mrb[0].mxu0
      %2460 = vdwg.mxu0
      %v2461 = vadd.f32 %v835, %v2447
      %v2462 = vadd.f32 %v836, %v2450
      %v2463 = vadd.f32 %v837, %v2455
      %v2464 = vadd.f32 %v838, %v2458
      %v2465 = vld [vmem:[%s786] sm:$0x1]
      %v2467 = vlaneseq
      %v2468 = vshrl.u32 %v2467, 7
      %v2469 = vsub.s32 0, %v2468
      %v2470 = vrot.slane %v2465, %v2469
      %v2472 = vadd.f32 %v2461, %v2470
      %v2473 = vadd.f32 %v2462, %v2470
      %v2474 = vadd.f32 %v2463, %v2470
      %v2475 = vadd.f32 %v2464, %v2470
      %v2476 = vld [vmem:[%s790] sm:$0x7]
      %v2477 = vld [vmem:[%s1] sm:$0xff]
      %v2478 = vld [vmem:[%s1 + $0x8] sm:$0xff]
      %v2479 = vld [vmem:[%s1 + $0x10] sm:$0xff]
      %v2480 = vld [vmem:[%s1 + $0x18] sm:$0xff]
      %vm2481 = vcmask 261120
      %v2483 = vsel %vm2481, %v2477, 0
      %v2486 = vsel %vm2481, %v2478, 0
      %v2489 = vsel %vm2481, %v2479, 0
      %v2492 = vsel %vm2481, %v2480, 0
      %2494 = vmatprep.subr.mxu0 0.0
      %2495 = vmatpush1.msra.mxu0 %v2472
      %2496 = vmatprep.subr.mxu0 0.0
      %2497 = vmatpush1.msra.mxu0 %v2473
      %2498 = vmatprep.subr.mxu0 0.0
      %2499 = vmatpush1.msra.mxu0 %v2474
      %2500 = vmatprep.subr.mxu0 0.0
      %2501 = vmatpush1.msra.mxu0 %v2475
      %2502 = vmatprep.subr.mxu0 0.0
      %2503 = vmatpush1.msra.mxu0 0.0
      %2504 = vmatprep.subr.mxu0 0.0
      %2505 = vmatpush1.msra.mxu0 0.0
      %2506 = vmatprep.subr.mxu0 0.0
      %2507 = vmatpush1.msra.mxu0 0.0
      %2508 = vmatprep.subr.mxu0 0.0
      %2509 = vmatpush1.msra.mxu0 0.0
      %2510 = vmatprep.subr.mxu0 0.0
      %2511 = vmatpush1.msra.mxu0 0.0
      %2512 = vmatprep.subr.mxu0 0.0
      %2513 = vmatpush1.msra.mxu0 0.0
      %2514 = vmatprep.subr.mxu0 0.0
      %2515 = vmatpush1.msra.mxu0 0.0
      %2516 = vmatprep.subr.mxu0 0.0
      %2517 = vmatpush1.msra.mxu0 0.0
      %2518 = vmatprep.subr.mxu0 0.0
      %2519 = vmatpush1.msra.mxu0 0.0
      %2520 = vmatprep.subr.mxu0 0.0
      %2521 = vmatpush1.msra.mxu0 0.0
      %2522 = vmatprep.subr.mxu0 0.0
      %2523 = vmatpush1.msra.mxu0 0.0
      %2524 = vmatprep.subr.mxu0 0.0
      %2525 = vmatpush1.msra.mxu0 0.0
      %2526 = vmatprep.subr.mxu0 0.0
      %2527 = vmatpush1.msra.mxu0 0.0
      %2528 = vmatprep.subr.mxu0 0.0
      %2529 = vmatpush1.msra.mxu0 0.0
      %2530 = vmatprep.subr.mxu0 0.0
      %2531 = vmatpush1.msra.mxu0 0.0
      %2532 = vmatprep.subr.mxu0 0.0
      %2533 = vmatpush1.msra.mxu0 0.0
      %2534 = vmatprep.subr.mxu0 0.0
      %2535 = vmatpush1.msra.mxu0 0.0
      %2536 = vmatprep.subr.mxu0 0.0
      %2537 = vmatpush1.msra.mxu0 0.0
      %2538 = vmatprep.subr.mxu0 0.0
      %2539 = vmatpush1.msra.mxu0 0.0
      %2540 = vmatprep.subr.mxu0 0.0
      %2541 = vmatpush1.msra.mxu0 0.0
      %2542 = vmatprep.subr.mxu0 0.0
      %2543 = vmatpush1.msra.mxu0 0.0
      %2544 = vmatprep.subr.mxu0 0.0
      %2545 = vmatpush1.msra.mxu0 0.0
      %2546 = vmatprep.subr.mxu0 0.0
      %2547 = vmatpush1.msra.mxu0 0.0
      %2548 = vmatprep.subr.mxu0 0.0
      %2549 = vmatpush1.msra.mxu0 0.0
      %2550 = vmatprep.subr.mxu0 0.0
      %2551 = vmatpush1.msra.mxu0 0.0
      %2552 = vmatprep.subr.mxu0 0.0
      %2553 = vmatpush1.msra.mxu0 0.0
      %2554 = vmatprep.subr.mxu0 0.0
      %2555 = vmatpush1.msra.mxu0 0.0
      %2556 = vmatprep.subr.mxu0 0.0
      %2557 = vmatpush1.msra.mxu0 0.0
      %2558 = vmatprep.mubr.f32.mxu0 0.0
      %2559 = vmatmul.mubr.f32.gmra.mrb[0].mxu0 %v2483
      %v2560 = vpop.f32.mrb[0].mxu0
      %v2561 = vadd.f32 0.0, %v2560
      %v2562 = vpop.f32.mrb[0].mxu0
      %2563 = vmatprep.mubr.f32.mxu0 0.0
      %2564 = vmatmul.mubr.f32.gmra.mrb[0].mxu0 %v2486
      %v2565 = vpop.f32.mrb[0].mxu0
      %v2566 = vadd.f32 0.0, %v2565
      %v2567 = vpop.f32.mrb[0].mxu0
      %2568 = vmatprep.mubr.f32.mxu0 0.0
      %2569 = vmatmul.mubr.f32.gmra.mrb[0].mxu0 %v2489
      %v2570 = vpop.f32.mrb[0].mxu0
      %v2571 = vadd.f32 0.0, %v2570
      %v2572 = vpop.f32.mrb[0].mxu0
      %2573 = vmatprep.mubr.f32.mxu0 0.0
      %2574 = vmatmul.mubr.f32.gmra.mrb[0].mxu0 %v2492
      %v2575 = vpop.f32.mrb[0].mxu0
      %v2576 = vadd.f32 0.0, %v2575
      %v2577 = vpop.f32.mrb[0].mxu0
      %2578 = vdwg.mxu0
      %v2579 = vld [vmem:[%s2] sm:$0xff]
      %v2580 = vld [vmem:[%s2 + $0x8] sm:$0xff]
      %v2581 = vld [vmem:[%s2 + $0x10] sm:$0xff]
      %v2582 = vld [vmem:[%s2 + $0x18] sm:$0xff]
      %v2584 = vsel %vm2481, %v2579, 0
      %v2587 = vsel %vm2481, %v2580, 0
      %v2590 = vsel %vm2481, %v2581, 0
      %v2593 = vsel %vm2481, %v2582, 0
      %2595 = vmatprep.subr.mxu0 0.0
      %2596 = vmatpush1.msra.mxu0 %v2472
      %2597 = vmatprep.subr.mxu0 0.0
      %2598 = vmatpush1.msra.mxu0 %v2473
      %2599 = vmatprep.subr.mxu0 0.0
      %2600 = vmatpush1.msra.mxu0 %v2474
      %2601 = vmatprep.subr.mxu0 0.0
      %2602 = vmatpush1.msra.mxu0 %v2475
      %2603 = vmatprep.subr.mxu0 0.0
      %2604 = vmatpush1.msra.mxu0 0.0
      %2605 = vmatprep.subr.mxu0 0.0
      %2606 = vmatpush1.msra.mxu0 0.0
      %2607 = vmatprep.subr.mxu0 0.0
      %2608 = vmatpush1.msra.mxu0 0.0
      %2609 = vmatprep.subr.mxu0 0.0
      %2610 = vmatpush1.msra.mxu0 0.0
      %2611 = vmatprep.subr.mxu0 0.0
      %2612 = vmatpush1.msra.mxu0 0.0
      %2613 = vmatprep.subr.mxu0 0.0
      %2614 = vmatpush1.msra.mxu0 0.0
      %2615 = vmatprep.subr.mxu0 0.0
      %2616 = vmatpush1.msra.mxu0 0.0
      %2617 = vmatprep.subr.mxu0 0.0
      %2618 = vmatpush1.msra.mxu0 0.0
      %2619 = vmatprep.subr.mxu0 0.0
      %2620 = vmatpush1.msra.mxu0 0.0
      %2621 = vmatprep.subr.mxu0 0.0
      %2622 = vmatpush1.msra.mxu0 0.0
      %2623 = vmatprep.subr.mxu0 0.0
      %2624 = vmatpush1.msra.mxu0 0.0
      %2625 = vmatprep.subr.mxu0 0.0
      %2626 = vmatpush1.msra.mxu0 0.0
      %2627 = vmatprep.subr.mxu0 0.0
      %2628 = vmatpush1.msra.mxu0 0.0
      %2629 = vmatprep.subr.mxu0 0.0
      %2630 = vmatpush1.msra.mxu0 0.0
      %2631 = vmatprep.subr.mxu0 0.0
      %2632 = vmatpush1.msra.mxu0 0.0
      %2633 = vmatprep.subr.mxu0 0.0
      %2634 = vmatpush1.msra.mxu0 0.0
      %2635 = vmatprep.subr.mxu0 0.0
      %2636 = vmatpush1.msra.mxu0 0.0
      %2637 = vmatprep.subr.mxu0 0.0
      %2638 = vmatpush1.msra.mxu0 0.0
      %2639 = vmatprep.subr.mxu0 0.0
      %2640 = vmatpush1.msra.mxu0 0.0
      %2641 = vmatprep.subr.mxu0 0.0
      %2642 = vmatpush1.msra.mxu0 0.0
      %2643 = vmatprep.subr.mxu0 0.0
      %2644 = vmatpush1.msra.mxu0 0.0
      %2645 = vmatprep.subr.mxu0 0.0
      %2646 = vmatpush1.msra.mxu0 0.0
      %2647 = vmatprep.subr.mxu0 0.0
      %2648 = vmatpush1.msra.mxu0 0.0
      %2649 = vmatprep.subr.mxu0 0.0
      %2650 = vmatpush1.msra.mxu0 0.0
      %2651 = vmatprep.subr.mxu0 0.0
      %2652 = vmatpush1.msra.mxu0 0.0
      %2653 = vmatprep.subr.mxu0 0.0
      %2654 = vmatpush1.msra.mxu0 0.0
      %2655 = vmatprep.subr.mxu0 0.0
      %2656 = vmatpush1.msra.mxu0 0.0
      %2657 = vmatprep.subr.mxu0 0.0
      %2658 = vmatpush1.msra.mxu0 0.0
      %2659 = vmatprep.mubr.f32.mxu0 0.0
      %2660 = vmatmul.mubr.f32.gmra.mrb[0].mxu0 %v2584
      %v2661 = vpop.f32.mrb[0].mxu0
      %v2662 = vadd.f32 0.0, %v2661
      %v2663 = vpop.f32.mrb[0].mxu0
      %2664 = vmatprep.mubr.f32.mxu0 0.0
      %2665 = vmatmul.mubr.f32.gmra.mrb[0].mxu0 %v2587
      %v2666 = vpop.f32.mrb[0].mxu0
      %v2667 = vadd.f32 0.0, %v2666
      %v2668 = vpop.f32.mrb[0].mxu0
      %2669 = vmatprep.mubr.f32.mxu0 0.0
      %2670 = vmatmul.mubr.f32.gmra.mrb[0].mxu0 %v2590
      %v2671 = vpop.f32.mrb[0].mxu0
      %v2672 = vadd.f32 0.0, %v2671
      %v2673 = vpop.f32.mrb[0].mxu0
      %2674 = vmatprep.mubr.f32.mxu0 0.0
      %2675 = vmatmul.mubr.f32.gmra.mrb[0].mxu0 %v2593
      %v2676 = vpop.f32.mrb[0].mxu0
      %v2677 = vadd.f32 0.0, %v2676
      %v2678 = vpop.f32.mrb[0].mxu0
      %2679 = vdwg.mxu0
      %v2680 = vlaneseq
      %v2681 = vshrl.u32 %v2680, 7
      %v2682 = vsub.s32 0, %v2681
      %v2683 = vrot.slane %v2476, %v2682
      %v2684 = vmul.f32 %v2561, %v2683
      %v2685 = vmul.f32 %v2566, %v2683
      %v2686 = vmul.f32 %v2571, %v2683
      %v2687 = vmul.f32 %v2576, %v2683
      %v2688 = vlaneseq
      %v2689 = vshrl.u32 %v2688, 7
      %v2690 = vsub.s32 1, %v2689
      %v2691 = vrot.slane %v2476, %v2690
      %v2692 = vmul.f32 %v2472, %v2691
      %v2693 = vmul.f32 %v2473, %v2691
      %v2694 = vmul.f32 %v2474, %v2691
      %v2695 = vmul.f32 %v2475, %v2691
      %v2696 = vadd.f32 %v2684, %v2692
      %v2697 = vadd.f32 %v2685, %v2693
      %v2698 = vadd.f32 %v2686, %v2694
      %v2699 = vadd.f32 %v2687, %v2695
      %v2700 = vlaneseq
      %v2701 = vshrl.u32 %v2700, 7
      %v2702 = vsub.s32 2, %v2701
      %v2703 = vrot.slane %v2476, %v2702
      %v2704 = vmul.f32 %v2662, %v2703
      %v2705 = vmul.f32 %v2667, %v2703
      %v2706 = vmul.f32 %v2672, %v2703
      %v2707 = vmul.f32 %v2677, %v2703
      %v2708 = vadd.f32 %v2696, %v2704
      %v2709 = vadd.f32 %v2697, %v2705
      %v2710 = vadd.f32 %v2698, %v2706
      %v2711 = vadd.f32 %v2699, %v2707
      %v2712 = vld [vmem:[%s793] sm:$0x1]
      %v2714 = vlaneseq
      %v2715 = vshrl.u32 %v2714, 7
      %v2716 = vsub.s32 0, %v2715
      %v2717 = vrot.slane %v2712, %v2716
      %v2719 = vadd.f32 %v2708, %v2717
      %v2720 = vadd.f32 %v2709, %v2717
      %v2721 = vadd.f32 %v2710, %v2717
      %v2722 = vadd.f32 %v2711, %v2717
      %v2723 = vadd.f32 %v2472, %v2719
      %v2724 = vadd.f32 %v2473, %v2720
      %v2725 = vadd.f32 %v2474, %v2721
      %v2726 = vadd.f32 %v2475, %v2722
      %v2727 = vld [vmem:[%s796] sm:$0x1]
      %v2728 = vld [vmem:[%s799] sm:$0x1]
      %v2729 = vsel %vm841, %v2723, 0.0
      %2730 = vadd.xlane.f32.xlu0 %v2729
      %v2731 = vpop.xlane.xlu0 %2730
      %v2732 = vsel %vm841, %v2724, 0.0
      %2733 = vadd.xlane.f32.xlu0 %v2732
      %v2734 = vpop.xlane.xlu0 %2733
      %v2735 = vsel %vm841, %v2725, 0.0
      %2736 = vadd.xlane.f32.xlu0 %v2735
      %v2737 = vpop.xlane.xlu0 %2736
      %v2738 = vsel %vm841, %v2726, 0.0
      %2739 = vadd.xlane.f32.xlu0 %v2738
      %v2740 = vpop.xlane.xlu0 %2739
      %v2741 = vmul.f32 %v2731, %v854
      %v2742 = vmul.f32 %v2734, %v854
      %v2743 = vmul.f32 %v2737, %v854
      %v2744 = vmul.f32 %v2740, %v854
      %v2745 = vsub.f32 %v2723, %v2741
      %v2746 = vsub.f32 %v2724, %v2742
      %v2747 = vsub.f32 %v2725, %v2743
      %v2748 = vsub.f32 %v2726, %v2744
      %v2749 = vmul.f32 %v2745, %v2745
      %v2750 = vmul.f32 %v2746, %v2746
      %v2751 = vmul.f32 %v2747, %v2747
      %v2752 = vmul.f32 %v2748, %v2748
      %v2753 = vsel %vm841, %v2749, 0.0
      %2754 = vadd.xlane.f32.xlu0 %v2753
      %v2755 = vpop.xlane.xlu0 %2754
      %v2756 = vsel %vm841, %v2750, 0.0
      %2757 = vadd.xlane.f32.xlu0 %v2756
      %v2758 = vpop.xlane.xlu0 %2757
      %v2759 = vsel %vm841, %v2751, 0.0
      %2760 = vadd.xlane.f32.xlu0 %v2759
      %v2761 = vpop.xlane.xlu0 %2760
      %v2762 = vsel %vm841, %v2752, 0.0
      %2763 = vadd.xlane.f32.xlu0 %v2762
      %v2764 = vpop.xlane.xlu0 %2763
      %v2765 = vmul.f32 %v2755, %v854
      %v2766 = vmul.f32 %v2758, %v854
      %v2767 = vmul.f32 %v2761, %v854
      %v2768 = vmul.f32 %v2764, %v854
      %v2769 = vadd.f32 %v2765, 1e-05
      %v2770 = vadd.f32 %v2766, 1e-05
      %v2771 = vadd.f32 %v2767, 1e-05
      %v2772 = vadd.f32 %v2768, 1e-05
      %v2773 = vrsqrt.pop %v2769
      %v2774 = vrsqrt.pop %v2770
      %v2775 = vrsqrt.pop %v2771
      %v2776 = vrsqrt.pop %v2772
      %v2777 = vmul.f32 %v2745, %v2773
      %v2778 = vmul.f32 %v2746, %v2774
      %v2779 = vmul.f32 %v2747, %v2775
      %v2780 = vmul.f32 %v2748, %v2776
      %v2782 = vlaneseq
      %v2783 = vshrl.u32 %v2782, 7
      %v2784 = vsub.s32 0, %v2783
      %v2785 = vrot.slane %v2727, %v2784
      %v2787 = vmul.f32 %v2777, %v2785
      %v2788 = vmul.f32 %v2778, %v2785
      %v2789 = vmul.f32 %v2779, %v2785
      %v2790 = vmul.f32 %v2780, %v2785
      %v2792 = vlaneseq
      %v2793 = vshrl.u32 %v2792, 7
      %v2794 = vsub.s32 0, %v2793
      %v2795 = vrot.slane %v2728, %v2794
      %v2797 = vadd.f32 %v2787, %v2795
      %v2798 = vadd.f32 %v2788, %v2795
      %v2799 = vadd.f32 %v2789, %v2795
      %v2800 = vadd.f32 %v2790, %v2795
      %v2801 = vpack.c.bf16 %v2798, %v2797
      %v2802 = vpack.c.bf16 %v2800, %v2799
      %v2803 = vld [vmem:[%s804] sm:$0xff]
      %v2804 = vld [vmem:[%s804 + $0x8] sm:$0xff]
      %v2805 = vld [vmem:[%s804 + $0x10] sm:$0xff]
      %v2806 = vld [vmem:[%s804 + $0x18] sm:$0xff]
      %v2807 = vld [vmem:[%s804 + $0x20] sm:$0xff]
      %v2808 = vld [vmem:[%s804 + $0x28] sm:$0xff]
      %v2809 = vld [vmem:[%s804 + $0x30] sm:$0xff]
      %v2810 = vld [vmem:[%s804 + $0x38] sm:$0xff]
      %v2811 = vld [vmem:[%s804 + $0x40] sm:$0xff]
      %v2812 = vld [vmem:[%s804 + $0x48] sm:$0xff]
      %v2813 = vld [vmem:[%s804 + $0x50] sm:$0xff]
      %v2814 = vld [vmem:[%s804 + $0x58] sm:$0xff]
      %v2815 = vld [vmem:[%s804 + $0x60] sm:$0xff]
      %v2816 = vld [vmem:[%s804 + $0x68] sm:$0xff]
      %v2817 = vld [vmem:[%s804 + $0x70] sm:$0xff]
      %v2818 = vld [vmem:[%s804 + $0x78] sm:$0xff]
      %v2819 = vld [vmem:[%s808] sm:$0xf]
      %v2821 = vlaneseq
      %v2822 = vshrl.u32 %v2821, 7
      %v2823 = vsub.s32 0, %v2822
      %v2824 = vrot.slane %v2819, %v2823
      %v2825 = vlaneseq
      %v2826 = vshrl.u32 %v2825, 7
      %v2827 = vsub.s32 1, %v2826
      %v2828 = vrot.slane %v2819, %v2827
      %v2829 = vlaneseq
      %v2830 = vshrl.u32 %v2829, 7
      %v2831 = vsub.s32 2, %v2830
      %v2832 = vrot.slane %v2819, %v2831
      %v2833 = vlaneseq
      %v2834 = vshrl.u32 %v2833, 7
      %v2835 = vsub.s32 3, %v2834
      %v2836 = vrot.slane %v2819, %v2835
      %v2857 = vunpack.c.l.b16 %v2803
      %v2858 = vunpack.c.h.b16 %v2803
      %v2859 = vunpack.c.l.b16 %v2804
      %v2860 = vunpack.c.h.b16 %v2804
      %v2861 = vunpack.c.l.b16 %v2805
      %v2862 = vunpack.c.h.b16 %v2805
      %v2863 = vunpack.c.l.b16 %v2806
      %v2864 = vunpack.c.h.b16 %v2806
      %v2865 = vunpack.c.l.b16 %v2807
      %v2866 = vunpack.c.h.b16 %v2807
      %v2867 = vunpack.c.l.b16 %v2808
      %v2868 = vunpack.c.h.b16 %v2808
      %v2869 = vunpack.c.l.b16 %v2809
      %v2870 = vunpack.c.h.b16 %v2809
      %v2871 = vunpack.c.l.b16 %v2810
      %v2872 = vunpack.c.h.b16 %v2810
      %v2873 = vunpack.c.l.b16 %v2811
      %v2874 = vunpack.c.h.b16 %v2811
      %v2875 = vunpack.c.l.b16 %v2812
      %v2876 = vunpack.c.h.b16 %v2812
      %v2877 = vunpack.c.l.b16 %v2813
      %v2878 = vunpack.c.h.b16 %v2813
      %v2879 = vunpack.c.l.b16 %v2814
      %v2880 = vunpack.c.h.b16 %v2814
      %v2881 = vunpack.c.l.b16 %v2815
      %v2882 = vunpack.c.h.b16 %v2815
      %v2883 = vunpack.c.l.b16 %v2816
      %v2884 = vunpack.c.h.b16 %v2816
      %v2885 = vunpack.c.l.b16 %v2817
      %v2886 = vunpack.c.h.b16 %v2817
      %v2887 = vunpack.c.l.b16 %v2818
      %v2888 = vunpack.c.h.b16 %v2818
      %v2889 = vpack.c.b16 %v2861, %v2857
      %v2890 = vpack.c.b16 %v2862, %v2858
      %v2891 = vpack.c.b16 %v2863, %v2859
      %v2892 = vpack.c.b16 %v2864, %v2860
      %v2893 = vpack.c.b16 %v2869, %v2865
      %v2894 = vpack.c.b16 %v2870, %v2866
      %v2895 = vpack.c.b16 %v2871, %v2867
      %v2896 = vpack.c.b16 %v2872, %v2868
      %v2897 = vpack.c.b16 %v2877, %v2873
      %v2898 = vpack.c.b16 %v2878, %v2874
      %v2899 = vpack.c.b16 %v2879, %v2875
      %v2900 = vpack.c.b16 %v2880, %v2876
      %v2901 = vpack.c.b16 %v2885, %v2881
      %v2902 = vpack.c.b16 %v2886, %v2882
      %v2903 = vpack.c.b16 %v2887, %v2883
      %v2904 = vpack.c.b16 %v2888, %v2884
      %v2922 = vsel %vm841, %v2801, 0
      %v2925 = vsel %vm841, %v2802, 0
      %2927 = vmatprep.subr.bf16.mxu0 %v2890
      %2928 = vmatpush1.bf16.msra.mxu0 %v2889
      %2929 = vmatprep.subr.bf16.mxu0 %v2894
      %2930 = vmatpush1.bf16.msra.mxu0 %v2893
      %2931 = vmatprep.subr.bf16.mxu0 %v2898
      %2932 = vmatpush1.bf16.msra.mxu0 %v2897
      %2933 = vmatprep.subr.bf16.mxu0 %v2902
      %2934 = vmatpush1.bf16.msra.mxu0 %v2901
      %2935 = vmatprep.subr.bf16.mxu0 0
      %2936 = vmatpush1.bf16.msra.mxu0 0
      %2937 = vmatprep.subr.bf16.mxu0 0
      %2938 = vmatpush1.bf16.msra.mxu0 0
      %2939 = vmatprep.subr.bf16.mxu0 0
      %2940 = vmatpush1.bf16.msra.mxu0 0
      %2941 = vmatprep.subr.bf16.mxu0 0
      %2942 = vmatpush1.bf16.msra.mxu0 0
      %2943 = vmatprep.subr.bf16.mxu0 0
      %2944 = vmatpush1.bf16.msra.mxu0 0
      %2945 = vmatprep.subr.bf16.mxu0 0
      %2946 = vmatpush1.bf16.msra.mxu0 0
      %2947 = vmatprep.subr.bf16.mxu0 0
      %2948 = vmatpush1.bf16.msra.mxu0 0
      %2949 = vmatprep.subr.bf16.mxu0 0
      %2950 = vmatpush1.bf16.msra.mxu0 0
      %2951 = vmatprep.subr.bf16.mxu0 0
      %2952 = vmatpush1.bf16.msra.mxu0 0
      %2953 = vmatprep.subr.bf16.mxu0 0
      %2954 = vmatpush1.bf16.msra.mxu0 0
      %2955 = vmatprep.subr.bf16.mxu0 0
      %2956 = vmatpush1.bf16.msra.mxu0 0
      %2957 = vmatprep.subr.bf16.mxu0 0
      %2958 = vmatpush1.bf16.msra.mxu0 0
      %2959 = vmatprep.mubr.bf16.mxu0 0
      %2960 = vmatmul.mubr.bf16.gmra.mrb[0].mxu0 %v2922
      %v2961 = vpop.f32.mrb[0].mxu0
      %v2962 = vadd.f32 %v2824, %v2961
      %v2963 = vpop.f32.mrb[0].mxu0
      %v2964 = vadd.f32 %v2828, %v2963
      %v2965 = vpop.f32.mrb[0].mxu0
      %v2966 = vadd.f32 %v2824, %v2965
      %v2967 = vpop.f32.mrb[0].mxu0
      %v2968 = vadd.f32 %v2828, %v2967
      %2969 = vmatprep.mubr.bf16.mxu0 0
      %2970 = vmatmul.mubr.bf16.gmra.mrb[0].mxu0 %v2925
      %v2971 = vpop.f32.mrb[0].mxu0
      %v2972 = vadd.f32 %v2824, %v2971
      %v2973 = vpop.f32.mrb[0].mxu0
      %v2974 = vadd.f32 %v2828, %v2973
      %v2975 = vpop.f32.mrb[0].mxu0
      %v2976 = vadd.f32 %v2824, %v2975
      %v2977 = vpop.f32.mrb[0].mxu0
      %v2978 = vadd.f32 %v2828, %v2977
      %2979 = vdwg.mxu0
      %2980 = vmatprep.subr.bf16.mxu0 %v2892
      %2981 = vmatpush1.bf16.msra.mxu0 %v2891
      %2982 = vmatprep.subr.bf16.mxu0 %v2896
      %2983 = vmatpush1.bf16.msra.mxu0 %v2895
      %2984 = vmatprep.subr.bf16.mxu0 %v2900
      %2985 = vmatpush1.bf16.msra.mxu0 %v2899
      %2986 = vmatprep.subr.bf16.mxu0 %v2904
      %2987 = vmatpush1.bf16.msra.mxu0 %v2903
      %2988 = vmatprep.subr.bf16.mxu0 0
      %2989 = vmatpush1.bf16.msra.mxu0 0
      %2990 = vmatprep.subr.bf16.mxu0 0
      %2991 = vmatpush1.bf16.msra.mxu0 0
      %2992 = vmatprep.subr.bf16.mxu0 0
      %2993 = vmatpush1.bf16.msra.mxu0 0
      %2994 = vmatprep.subr.bf16.mxu0 0
      %2995 = vmatpush1.bf16.msra.mxu0 0
      %2996 = vmatprep.subr.bf16.mxu0 0
      %2997 = vmatpush1.bf16.msra.mxu0 0
      %2998 = vmatprep.subr.bf16.mxu0 0
      %2999 = vmatpush1.bf16.msra.mxu0 0
      %3000 = vmatprep.subr.bf16.mxu0 0
      %3001 = vmatpush1.bf16.msra.mxu0 0
      %3002 = vmatprep.subr.bf16.mxu0 0
      %3003 = vmatpush1.bf16.msra.mxu0 0
      %3004 = vmatprep.subr.bf16.mxu0 0
      %3005 = vmatpush1.bf16.msra.mxu0 0
      %3006 = vmatprep.subr.bf16.mxu0 0
      %3007 = vmatpush1.bf16.msra.mxu0 0
      %3008 = vmatprep.subr.bf16.mxu0 0
      %3009 = vmatpush1.bf16.msra.mxu0 0
      %3010 = vmatprep.subr.bf16.mxu0 0
      %3011 = vmatpush1.bf16.msra.mxu0 0
      %3012 = vmatprep.mubr.bf16.mxu0 0
      %3013 = vmatmul.mubr.bf16.gmra.mrb[0].mxu0 %v2922
      %v3014 = vpop.f32.mrb[0].mxu0
      %v3015 = vadd.f32 %v2832, %v3014
      %v3016 = vpop.f32.mrb[0].mxu0
      %v3017 = vadd.f32 %v2836, %v3016
      %v3018 = vpop.f32.mrb[0].mxu0
      %v3019 = vadd.f32 %v2832, %v3018
      %v3020 = vpop.f32.mrb[0].mxu0
      %v3021 = vadd.f32 %v2836, %v3020
      %3022 = vmatprep.mubr.bf16.mxu0 0
      %3023 = vmatmul.mubr.bf16.gmra.mrb[0].mxu0 %v2925
      %v3024 = vpop.f32.mrb[0].mxu0
      %v3025 = vadd.f32 %v2832, %v3024
      %v3026 = vpop.f32.mrb[0].mxu0
      %v3027 = vadd.f32 %v2836, %v3026
      %v3028 = vpop.f32.mrb[0].mxu0
      %v3029 = vadd.f32 %v2832, %v3028
      %v3030 = vpop.f32.mrb[0].mxu0
      %v3031 = vadd.f32 %v2836, %v3030
      %3032 = vdwg.mxu0
      %v3033 = vmul.f32 %v2962, 0.5
      %v3034 = vmul.f32 %v2964, 0.5
      %v3035 = vmul.f32 %v2966, 0.5
      %v3036 = vmul.f32 %v2968, 0.5
      %v3037 = vmul.f32 %v2972, 0.5
      %v3038 = vmul.f32 %v2974, 0.5
      %v3039 = vmul.f32 %v2976, 0.5
      %v3040 = vmul.f32 %v2978, 0.5
      %v3041 = vmul.f32 %v2962, 0.70710677
      %v3042 = vmul.f32 %v2964, 0.70710677
      %v3043 = vmul.f32 %v2966, 0.70710677
      %v3044 = vmul.f32 %v2968, 0.70710677
      %v3045 = vmul.f32 %v2972, 0.70710677
      %v3046 = vmul.f32 %v2974, 0.70710677
      %v3047 = vmul.f32 %v2976, 0.70710677
      %v3048 = vmul.f32 %v2978, 0.70710677
      %v3049 = verf.f32.pop %v3041
      %v3050 = verf.f32.pop %v3042
      %v3051 = verf.f32.pop %v3043
      %v3052 = verf.f32.pop %v3044
      %v3053 = verf.f32.pop %v3045
      %v3054 = verf.f32.pop %v3046
      %v3055 = verf.f32.pop %v3047
      %v3056 = verf.f32.pop %v3048
      %v3057 = vadd.f32 %v3049, 1.0
      %v3058 = vadd.f32 %v3050, 1.0
      %v3059 = vadd.f32 %v3051, 1.0
      %v3060 = vadd.f32 %v3052, 1.0
      %v3061 = vadd.f32 %v3053, 1.0
      %v3062 = vadd.f32 %v3054, 1.0
      %v3063 = vadd.f32 %v3055, 1.0
      %v3064 = vadd.f32 %v3056, 1.0
      %v3065 = vmul.f32 %v3033, %v3057
      %v3066 = vmul.f32 %v3034, %v3058
      %v3067 = vmul.f32 %v3035, %v3059
      %v3068 = vmul.f32 %v3036, %v3060
      %v3069 = vmul.f32 %v3037, %v3061
      %v3070 = vmul.f32 %v3038, %v3062
      %v3071 = vmul.f32 %v3039, %v3063
      %v3072 = vmul.f32 %v3040, %v3064
      %v3073 = vxor.u32 %v3015, 2147483648
      %v3074 = vxor.u32 %v3017, 2147483648
      %v3075 = vxor.u32 %v3019, 2147483648
      %v3076 = vxor.u32 %v3021, 2147483648
      %v3077 = vxor.u32 %v3025, 2147483648
      %v3078 = vxor.u32 %v3027, 2147483648
      %v3079 = vxor.u32 %v3029, 2147483648
      %v3080 = vxor.u32 %v3031, 2147483648
      %v3081 = vmul.f32 %v3073, 1.442695
      %v3082 = vpow.pop %v3081
      %v3083 = vmul.f32 %v3074, 1.442695
      %v3084 = vpow.pop %v3083
      %v3085 = vmul.f32 %v3075, 1.442695
      %v3086 = vpow.pop %v3085
      %v3087 = vmul.f32 %v3076, 1.442695
      %v3088 = vpow.pop %v3087
      %v3089 = vmul.f32 %v3077, 1.442695
      %v3090 = vpow.pop %v3089
      %v3091 = vmul.f32 %v3078, 1.442695
      %v3092 = vpow.pop %v3091
      %v3093 = vmul.f32 %v3079, 1.442695
      %v3094 = vpow.pop %v3093
      %v3095 = vmul.f32 %v3080, 1.442695
      %v3096 = vpow.pop %v3095
      %v3097 = vadd.f32 %v3082, 1.0
      %v3098 = vadd.f32 %v3084, 1.0
      %v3099 = vadd.f32 %v3086, 1.0
      %v3100 = vadd.f32 %v3088, 1.0
      %v3101 = vadd.f32 %v3090, 1.0
      %v3102 = vadd.f32 %v3092, 1.0
      %v3103 = vadd.f32 %v3094, 1.0
      %v3104 = vadd.f32 %v3096, 1.0
      %v3105 = vrcp.pop %v3097
      %v3106 = vmul.f32 1.0, %v3105
      %v3107 = vrcp.pop %v3098
      %v3108 = vmul.f32 1.0, %v3107
      %v3109 = vrcp.pop %v3099
      %v3110 = vmul.f32 1.0, %v3109
      %v3111 = vrcp.pop %v3100
      %v3112 = vmul.f32 1.0, %v3111
      %v3113 = vrcp.pop %v3101
      %v3114 = vmul.f32 1.0, %v3113
      %v3115 = vrcp.pop %v3102
      %v3116 = vmul.f32 1.0, %v3115
      %v3117 = vrcp.pop %v3103
      %v3118 = vmul.f32 1.0, %v3117
      %v3119 = vrcp.pop %v3104
      %v3120 = vmul.f32 1.0, %v3119
      %v3121 = vmul.f32 %v3065, %v3106
      %v3122 = vmul.f32 %v3066, %v3108
      %v3123 = vmul.f32 %v3067, %v3110
      %v3124 = vmul.f32 %v3068, %v3112
      %v3125 = vmul.f32 %v3069, %v3114
      %v3126 = vmul.f32 %v3070, %v3116
      %v3127 = vmul.f32 %v3071, %v3118
      %v3128 = vmul.f32 %v3072, %v3120
      %v3129 = vpack.c.bf16 %v3123, %v3121
      %v3130 = vpack.c.bf16 %v3124, %v3122
      %v3131 = vpack.c.bf16 %v3127, %v3125
      %v3132 = vpack.c.bf16 %v3128, %v3126
      %v3133 = vld [vmem:[%s813] sm:$0xf]
      %v3134 = vld [vmem:[%s813 + $0x4] sm:$0xf]
      %v3135 = vld [vmem:[%s813 + $0x8] sm:$0xf]
      %v3136 = vld [vmem:[%s813 + $0xc] sm:$0xf]
      %v3137 = vld [vmem:[%s813 + $0x10] sm:$0xf]
      %v3138 = vld [vmem:[%s813 + $0x14] sm:$0xf]
      %v3139 = vld [vmem:[%s813 + $0x18] sm:$0xf]
      %v3140 = vld [vmem:[%s813 + $0x1c] sm:$0xf]
      %v3141 = vld [vmem:[%s813 + $0x20] sm:$0xf]
      %v3142 = vld [vmem:[%s813 + $0x24] sm:$0xf]
      %v3143 = vld [vmem:[%s813 + $0x28] sm:$0xf]
      %v3144 = vld [vmem:[%s813 + $0x2c] sm:$0xf]
      %v3145 = vld [vmem:[%s813 + $0x30] sm:$0xf]
      %v3146 = vld [vmem:[%s813 + $0x34] sm:$0xf]
      %v3147 = vld [vmem:[%s813 + $0x38] sm:$0xf]
      %v3148 = vld [vmem:[%s813 + $0x3c] sm:$0xf]
      %v3149 = vld [vmem:[%s813 + $0x40] sm:$0xf]
      %v3150 = vld [vmem:[%s813 + $0x44] sm:$0xf]
      %v3151 = vld [vmem:[%s813 + $0x48] sm:$0xf]
      %v3152 = vld [vmem:[%s813 + $0x4c] sm:$0xf]
      %v3153 = vld [vmem:[%s813 + $0x50] sm:$0xf]
      %v3154 = vld [vmem:[%s813 + $0x54] sm:$0xf]
      %v3155 = vld [vmem:[%s813 + $0x58] sm:$0xf]
      %v3156 = vld [vmem:[%s813 + $0x5c] sm:$0xf]
      %v3157 = vld [vmem:[%s813 + $0x60] sm:$0xf]
      %v3158 = vld [vmem:[%s813 + $0x64] sm:$0xf]
      %v3159 = vld [vmem:[%s813 + $0x68] sm:$0xf]
      %v3160 = vld [vmem:[%s813 + $0x6c] sm:$0xf]
      %v3161 = vld [vmem:[%s813 + $0x70] sm:$0xf]
      %v3162 = vld [vmem:[%s813 + $0x74] sm:$0xf]
      %v3163 = vld [vmem:[%s813 + $0x78] sm:$0xf]
      %v3164 = vld [vmem:[%s813 + $0x7c] sm:$0xf]
      %v3165 = vld [vmem:[%s816] sm:$0x1]
      %v3167 = vlaneseq
      %v3168 = vshrl.u32 %v3167, 7
      %v3169 = vsub.s32 0, %v3168
      %v3170 = vrot.slane %v3165, %v3169
      %v3204 = vunpack.c.l.b16 %v3133
      %v3205 = vunpack.c.l.b16 %v3134
      %v3206 = vunpack.c.l.b16 %v3135
      %v3207 = vunpack.c.l.b16 %v3136
      %v3208 = vunpack.c.l.b16 %v3137
      %v3209 = vunpack.c.l.b16 %v3138
      %v3210 = vunpack.c.l.b16 %v3139
      %v3211 = vunpack.c.l.b16 %v3140
      %v3212 = vunpack.c.l.b16 %v3141
      %v3213 = vunpack.c.l.b16 %v3142
      %v3214 = vunpack.c.l.b16 %v3143
      %v3215 = vunpack.c.l.b16 %v3144
      %v3216 = vunpack.c.l.b16 %v3145
      %v3217 = vunpack.c.l.b16 %v3146
      %v3218 = vunpack.c.l.b16 %v3147
      %v3219 = vunpack.c.l.b16 %v3148
      %v3220 = vunpack.c.l.b16 %v3149
      %v3221 = vunpack.c.l.b16 %v3150
      %v3222 = vunpack.c.l.b16 %v3151
      %v3223 = vunpack.c.l.b16 %v3152
      %v3224 = vunpack.c.l.b16 %v3153
      %v3225 = vunpack.c.l.b16 %v3154
      %v3226 = vunpack.c.l.b16 %v3155
      %v3227 = vunpack.c.l.b16 %v3156
      %v3228 = vunpack.c.l.b16 %v3157
      %v3229 = vunpack.c.l.b16 %v3158
      %v3230 = vunpack.c.l.b16 %v3159
      %v3231 = vunpack.c.l.b16 %v3160
      %v3232 = vunpack.c.l.b16 %v3161
      %v3233 = vunpack.c.l.b16 %v3162
      %v3234 = vunpack.c.l.b16 %v3163
      %v3235 = vunpack.c.l.b16 %v3164
      %v3236 = vpack.c.b16 %v3205, %v3204
      %v3237 = vpack.c.b16 %v3207, %v3206
      %v3238 = vpack.c.b16 %v3209, %v3208
      %v3239 = vpack.c.b16 %v3211, %v3210
      %v3240 = vpack.c.b16 %v3213, %v3212
      %v3241 = vpack.c.b16 %v3215, %v3214
      %v3242 = vpack.c.b16 %v3217, %v3216
      %v3243 = vpack.c.b16 %v3219, %v3218
      %v3244 = vpack.c.b16 %v3221, %v3220
      %v3245 = vpack.c.b16 %v3223, %v3222
      %v3246 = vpack.c.b16 %v3225, %v3224
      %v3247 = vpack.c.b16 %v3227, %v3226
      %v3248 = vpack.c.b16 %v3229, %v3228
      %v3249 = vpack.c.b16 %v3231, %v3230
      %v3250 = vpack.c.b16 %v3233, %v3232
      %v3251 = vpack.c.b16 %v3235, %v3234
      %3268 = vmatprep.subr.bf16.mxu0 0
      %3269 = vmatpush1.bf16.msra.mxu0 %v3236
      %3270 = vmatprep.subr.bf16.mxu0 0
      %3271 = vmatpush1.bf16.msra.mxu0 %v3237
      %3272 = vmatprep.subr.bf16.mxu0 0
      %3273 = vmatpush1.bf16.msra.mxu0 %v3238
      %3274 = vmatprep.subr.bf16.mxu0 0
      %3275 = vmatpush1.bf16.msra.mxu0 %v3239
      %3276 = vmatprep.subr.bf16.mxu0 0
      %3277 = vmatpush1.bf16.msra.mxu0 %v3240
      %3278 = vmatprep.subr.bf16.mxu0 0
      %3279 = vmatpush1.bf16.msra.mxu0 %v3241
      %3280 = vmatprep.subr.bf16.mxu0 0
      %3281 = vmatpush1.bf16.msra.mxu0 %v3242
      %3282 = vmatprep.subr.bf16.mxu0 0
      %3283 = vmatpush1.bf16.msra.mxu0 %v3243
      %3284 = vmatprep.subr.bf16.mxu0 0
      %3285 = vmatpush1.bf16.msra.mxu0 %v3244
      %3286 = vmatprep.subr.bf16.mxu0 0
      %3287 = vmatpush1.bf16.msra.mxu0 %v3245
      %3288 = vmatprep.subr.bf16.mxu0 0
      %3289 = vmatpush1.bf16.msra.mxu0 %v3246
      %3290 = vmatprep.subr.bf16.mxu0 0
      %3291 = vmatpush1.bf16.msra.mxu0 %v3247
      %3292 = vmatprep.subr.bf16.mxu0 0
      %3293 = vmatpush1.bf16.msra.mxu0 %v3248
      %3294 = vmatprep.subr.bf16.mxu0 0
      %3295 = vmatpush1.bf16.msra.mxu0 %v3249
      %3296 = vmatprep.subr.bf16.mxu0 0
      %3297 = vmatpush1.bf16.msra.mxu0 %v3250
      %3298 = vmatprep.subr.bf16.mxu0 0
      %3299 = vmatpush1.bf16.msra.mxu0 %v3251
      %3300 = vmatprep.mubr.bf16.mxu0 %v3130
      %3301 = vmatmul.mubr.bf16.gmra.mrb[0].mxu0 %v3129
      %v3302 = vpop.f32.mrb[0].mxu0
      %v3303 = vadd.f32 %v3170, %v3302
      %v3304 = vpop.f32.mrb[0].mxu0
      %v3305 = vpop.f32.mrb[0].mxu0
      %v3306 = vadd.f32 %v3170, %v3305
      %v3307 = vpop.f32.mrb[0].mxu0
      %3308 = vmatprep.mubr.bf16.mxu0 %v3132
      %3309 = vmatmul.mubr.bf16.gmra.mrb[0].mxu0 %v3131
      %v3310 = vpop.f32.mrb[0].mxu0
      %v3311 = vadd.f32 %v3170, %v3310
      %v3312 = vpop.f32.mrb[0].mxu0
      %v3313 = vpop.f32.mrb[0].mxu0
      %v3314 = vadd.f32 %v3170, %v3313
      %v3315 = vpop.f32.mrb[0].mxu0
      %3316 = vdwg.mxu0
      %v3317 = vadd.f32 %v2472, %v3303
      %v3318 = vadd.f32 %v2473, %v3306
      %v3319 = vadd.f32 %v2474, %v3311
      %v3320 = vadd.f32 %v2475, %v3314
      %3321 = vst.msk [vmem:[#allocation2] sm:$0xff] %vm841, %v3317
      %3322 = vst.msk [vmem:[#allocation2 + $0x8] sm:$0xff] %vm841, %v3318
      %3323 = vst.msk [vmem:[#allocation2 + $0x10] sm:$0xff] %vm841, %v3319
      %3324 = vst.msk [vmem:[#allocation2 + $0x18] sm:$0xff] %vm841, %v3320
      %v3325 = vpack.c.bf16 %v3318, %v3317
      %v3326 = vpack.c.bf16 %v3320, %v3319
      %v3329 = vunpack.c.l.b16 %v3325
      %v3330 = vunpack.c.h.b16 %v3325
      %v3331 = vunpack.c.l.b16 %v3326
      %v3332 = vunpack.c.h.b16 %v3326
      %v3333 = vpack.c.b16 %v3329, %v3329
      %v3334 = vpack.c.b16 %v3330, %v3330
      %v3335 = vpack.c.b16 %v3331, %v3331
      %v3336 = vpack.c.b16 %v3332, %v3332
      %vm3341 = vcmask 519168
      %3342 = vst.msk [vmem:[%s19] sm:$0xf] %vm3341, %v3333
      %3343 = vst.msk [vmem:[%s19 + $0x4] sm:$0xf] %vm3341, %v3334
      %3344 = vst.msk [vmem:[%s19 + $0x8] sm:$0xf] %vm3341, %v3335
      %3345 = vst.msk [vmem:[%s19 + $0xc] sm:$0xf] %vm3341, %v3336
      // Predicated region
      $region101: #{msfaet_forward.4} parent=95 // pred_check
        %p3346 = pneg %p517
      $region102: #{msfaet_forward.4} parent=95 // pred_check_branch
        %3348 = sbr.rel (%p3346) target = $region104
      $region103: #{msfaet_forward.4} parent=95 // pred_region
        _
      $region104: #{msfaet_forward.4} parent=95 // pred_fallthru
        _
      // Predicated region
      $region105: #{msfaet_forward.4} parent=95 // pred_check
        %p3349 = pneg %p517
      $region106: #{msfaet_forward.4} parent=95 // pred_check_branch
        %3351 = sbr.rel (%p3349) target = $region108
      $region107: #{msfaet_forward.4} parent=95 // pred_region
        _
      $region108: #{msfaet_forward.4} parent=95 // pred_fallthru
        _
    $region96: #{msfaet_forward.4} parent=5 // pred_fallthru
      _
    %p3352 = scmp.le.s32.totalorder 2, %s25
    // Predicated region
    $region109: #{msfaet_forward.4} parent=5 // pred_check
      %p3353 = pneg %p3352
    $region110: #{msfaet_forward.4} parent=5 // pred_check_branch
      %3355 = sbr.rel (%p3353) target = $region112
    $region111: #{msfaet_forward.4} parent=5 // pred_region
      %s3356 = ssub.s32 %s25, 2
    $region112: #{msfaet_forward.4} parent=5 // pred_fallthru
      _
  $region6: #{msfaet_forward.4} parent=0 // loop_footer
    %s29 = sadd.s32 1, %s25
  $region7: #{msfaet_forward.4} parent=0 // loop_footer_branch
    %24 = sbr.rel target = $region3
  $region8: #{msfaet_forward.4} parent=0 // loop_exit
    _

</llo_original>
